<compile_context>
chip_gen: v7x
topology: tpu7x:2x2x1
jax: 0.10.0
libtpu: 0.0.40
codegen_flags: <defaults>
</compile_context>

<pallas_src>
import functools

import jax
import jax.numpy as jnp
from jax.experimental import pallas as pl
from jax.experimental.pallas import tpu as pltpu


def _sepconv_conv_stats_kernel(x_ref, w_ref, conv_ref, stats_ref, *, rows):
    """One grid step = one 128-lane output-channel block x one batch element.

    x_ref:     (1, S, S, Hpp, Wpp, CB)  VMEM, phase-major padded input
               (element [0, ph, pw, a, b, c] = padded x[a*S+ph, b*S+pw, c]).
    w_ref:     (K, K, CB)               per-lane depthwise taps (f32).
    conv_ref:  (1, Ho, Wo, CB)          raw conv output tile (input dtype).
    stats_ref: (1, 2, CB)               per-step partial [sum, sumsq] (f32).
    """
    _, Ho, Wo, CB = conv_ref.shape
    K = w_ref.shape[0]
    S = x_ref.shape[1]
    n_chunks = Ho // rows

    def chunk_body(r, carry):
        s1, s2 = carry
        row0 = pl.multiple_of(r * rows, rows)
        # Accumulator covers only `rows` output rows -> stays in vregs
        # (review item 8: bounded live range via the fori_loop boundary).
        acc = jnp.zeros((1, rows, Wo, CB), jnp.float32)
        for kh in range(K):
            qh, ph = divmod(kh, S)          # input row = (ho+qh)*S + ph
            for kw in range(K):
                qw, pw = divmod(kw, S)      # input col = (wo+qw)*S + pw
                patch = x_ref[:, ph, pw, pl.ds(row0 + qh, rows), qw:qw + Wo, :]
                tap_w = w_ref[kh, kw, :].reshape(1, 1, 1, CB)
                acc = acc + patch.astype(jnp.float32) * tap_w
        conv_ref[:, pl.ds(row0, rows), :, :] = acc.astype(conv_ref.dtype)
        # BN partial stats, f32, direct axis reductions (review item 9).
        ps1 = jnp.sum(acc, axis=(1, 2))          # (1, CB)
        ps2 = jnp.sum(acc * acc, axis=(1, 2))    # (1, CB)
        return s1 + ps1, s2 + ps2

    zero = jnp.zeros((1, CB), jnp.float32)
    s1, s2 = jax.lax.fori_loop(0, n_chunks, chunk_body, (zero, zero))
    stats_ref[...] = jnp.concatenate([s1, s2], axis=0)[None, :, :]


@functools.partial(jax.jit, static_argnames=("stride", "eps"))
def sepconv_bn(x, w, gamma, beta, *, stride, eps=1e-5):
    """x: (N, Cin, H, W); w: (Cout, 1, K, K) grouped-conv weight (groups=Cin)."""
    N, Cin, H, W = x.shape
    Cout = w.shape[0]
    K = w.shape[2]
    assert w.shape == (Cout, 1, K, K)
    assert Cout % Cin == 0, "groups=in_planes requires Cout % Cin == 0"
    m = Cout // Cin
    S = int(stride)
    pad = (K - 1) // 2
    Ho = (H + 2 * pad - K) // S + 1
    Wo = (W + 2 * pad - K) // S + 1

    LANES = 128
    CB = LANES                                # output channels per grid step
    Cp = -(-Cout // LANES) * LANES            # channels padded to lane width
    Hp, Wp = H + 2 * pad, W + 2 * pad
    Hpp, Wpp = -(-Hp // S), -(-Wp // S)       # padded extents, in coarse units

    # Rows per accumulator chunk (review item 8). 8 rows x Wo x 128 lanes of
    # f32 is a handful of vregs; fall back to Ho when it doesn't divide evenly.
    rows = 8 if Ho % 8 == 0 else Ho

    # ---- host-side layout plumbing (single XLA fusion; allow_input_fusion
    # lets XLA pull it into the pallas_call input) -------------------------
    x_nhwc = jnp.transpose(x, (0, 2, 3, 1))               # NCHW -> NHWC
    if m > 1:
        # Grouped conv: output channel c reads input channel c // m.
        # (Review item 2: kept on host but fused into this same layout pass.)
        x_nhwc = jnp.repeat(x_nhwc, m, axis=-1)
    x_pad = jnp.pad(
        x_nhwc,
        ((0, 0),
         (pad, Hpp * S - Hp + pad),
         (pad, Wpp * S - Wp + pad),
         (0, Cp - Cout)))
    # Phase-major layout (review item 1): (N, S, S, Hpp, Wpp, Cp), where
    # [n, ph, pw, a, b, c] = x_pad[n, a*S + ph, b*S + pw, c].
    x6 = jnp.transpose(x_pad.reshape(N, Hpp, S, Wpp, S, Cp), (0, 2, 4, 1, 3, 5))

    # Depthwise taps as per-lane vectors (K, K, Cp), f32.
    w_l = jnp.transpose(w.reshape(Cout, K, K), (1, 2, 0)).astype(jnp.float32)
    w_l = jnp.pad(w_l, ((0, 0), (0, 0), (0, Cp - Cout)))

    kernel = functools.partial(_sepconv_conv_stats_kernel, rows=rows)

    conv, stats = pl.pallas_call(
        kernel,
        out_shape=(
            jax.ShapeDtypeStruct((N, Ho, Wo, Cp), x.dtype),     # raw conv, NHWC
            jax.ShapeDtypeStruct((N, 2, Cp), jnp.float32),       # per-step stats
        ),
        # (channel blocks, batch): both parallel, >= 2 steps total so v7x can
        # use both TensorCores; the batch axis is innermost so the pipeline
        # prefetches batch element n+1's tile while computing n (items 5/6/7).
        grid=(Cp // CB, N),
        in_specs=[
            pl.BlockSpec((1, S, S, Hpp, Wpp, CB),
                         lambda c, n: (n, 0, 0, 0, 0, c)),
            pl.BlockSpec((K, K, CB), lambda c, n: (0, 0, c)),
        ],
        out_specs=(
            pl.BlockSpec((1, Ho, Wo, CB), lambda c, n: (n, 0, 0, c)),
            pl.BlockSpec((1, 2, CB), lambda c, n: (n, 0, c)),
        ),
        compiler_params=pltpu.CompilerParams(
            dimension_semantics=("parallel", "parallel"),
            vmem_limit_bytes=32 * 1024 * 1024,   # explicit (v5e default is 16 MiB)
            allow_input_fusion=[True, True],     # fold layout producer into the call
        ),
    )(x6, w_l)

    # ---- BN finalize: tiny cross-step stat reduction, then scale/shift fused
    # by XLA with the NHWC->NCHW transpose we need anyway (one output pass). --
    inv_cnt = 1.0 / float(N * Ho * Wo)
    s = jnp.sum(stats, axis=0)                          # (2, Cp)
    mean = s[0, :Cout] * inv_cnt
    var = s[1, :Cout] * inv_cnt - mean * mean           # biased (training-mode BN)
    scale = gamma.astype(jnp.float32) * jax.lax.rsqrt(var + eps)
    shift = beta.astype(jnp.float32) - mean * scale

    y = conv[..., :Cout].astype(jnp.float32) * scale + shift
    return jnp.transpose(y, (0, 3, 1, 2)).astype(x.dtype)   # back to NCHW


if __name__ == "__main__":
    key = jax.random.PRNGKey(0)
    k1, k2 = jax.random.split(key)

    # SepConv(in_planes=4, out_planes=8, kernel_size=7, stride=2)
    N, Cin, H, W = 2, 4, 16, 16
    Cout, K, S = 8, 7, 2

    x = jax.random.normal(k1, (N, Cin, H, W), jnp.float32)
    w = jax.random.normal(k2, (Cout, 1, K, K), jnp.float32) * 0.1
    gamma = 1.0 + 0.1 * jnp.arange(Cout, dtype=jnp.float32)
    beta = 0.05 * jnp.arange(Cout, dtype=jnp.float32)

    out = jax.block_until_ready(sepconv_bn(x, w, gamma, beta, stride=S))

    # Pure-JAX reference (grouped conv + training-mode BatchNorm2d).
    pad = (K - 1) // 2
    conv_xla = jax.lax.conv_general_dilated(
        x, w, window_strides=(S, S), padding=((pad, pad), (pad, pad)),
        dimension_numbers=("NCHW", "OIHW", "NCHW"), feature_group_count=Cin)
    mu = conv_xla.mean(axis=(0, 2, 3), keepdims=True)
    var = conv_xla.var(axis=(0, 2, 3), keepdims=True)        # biased variance
    ref = (conv_xla - mu) / jnp.sqrt(var + 1e-5) * gamma[None, :, None, None] \
          + beta[None, :, None, None]

    Ho = (H + 2 * pad - K) // S + 1
    Wo = (W + 2 * pad - K) // S + 1
    assert out.shape == (N, Cout, Ho, Wo), out.shape
    err = float(jnp.max(jnp.abs(out - ref)))
    assert jnp.allclose(out, ref, atol=1e-3, rtol=1e-3), f"max abs err {err}"
    print("KERNEL_OK")
</pallas_src>

<mosaic_0001>
module attributes {stable_mosaic.version = 11 : i64} {
  func.func @_sepconv_conv_stats_kernel(%arg0: i32, %arg1: i32, %arg2: memref<1x2x2x11x11x128xf32, #tpu.memory_space<vmem>>, %arg3: memref<7x7x128xf32, #tpu.memory_space<vmem>>, %arg4: memref<1x8x8x128xf32, #tpu.memory_space<vmem>>, %arg5: memref<1x2x128xf32, #tpu.memory_space<vmem>>) attributes {dimension_semantics = [#tpu.dimension_semantics<parallel>, #tpu.dimension_semantics<parallel>], iteration_bounds = array<i64: 1, 2>, scalar_prefetch = 0 : i64, scratch_operands = 0 : i64, tpu.core_type = #tpu.core_type<tc>, window_params = [{transform_indices = @transform_0, window_bounds = array<i64: 1, 2, 2, 11, 11, 128>}, {transform_indices = @transform_1, window_bounds = array<i64: 7, 7, 128>}, {transform_indices = @transform_2, window_bounds = array<i64: 1, 8, 8, 128>}, {transform_indices = @transform_3, window_bounds = array<i64: 1, 2, 128>}]} {
    %cst = arith.constant 0.000000e+00 : f32
    %0 = vector.broadcast %cst : f32 to vector<1x128xf32>
    %c0_i32 = arith.constant 0 : i32
    %c8_i32 = arith.constant 8 : i32
    %1 = arith.muli %c0_i32, %c8_i32 : i32
    %2 = tpu.assume_multiple %1, 8 : i32
    %cst_0 = arith.constant 0.000000e+00 : f32
    %3 = vector.broadcast %cst_0 : f32 to vector<1x8x8x128xf32>
    %c0_i32_1 = arith.constant 0 : i32
    %4 = arith.addi %2, %c0_i32_1 : i32
    %c0 = arith.constant 0 : index
    %c0_2 = arith.constant 0 : index
    %c0_3 = arith.constant 0 : index
    %5 = arith.index_cast %4 : i32 to index
    %c0_4 = arith.constant 0 : index
    %c0_5 = arith.constant 0 : index
    %6 = vector.load %arg2[%c0, %c0_2, %c0_3, %5, %c0_4, %c0_5] : memref<1x2x2x11x11x128xf32, #tpu.memory_space<vmem>>, vector<1x1x1x8x8x128xf32>
    %7 = vector.shape_cast %6 : vector<1x1x1x8x8x128xf32> to vector<1x8x8x128xf32>
    %c0_6 = arith.constant 0 : index
    %c0_7 = arith.constant 0 : index
    %c0_8 = arith.constant 0 : index
    %8 = vector.load %arg3[%c0_6, %c0_7, %c0_8] : memref<7x7x128xf32, #tpu.memory_space<vmem>>, vector<1x1x128xf32>
    %9 = vector.shape_cast %8 : vector<1x1x128xf32> to vector<128xf32>
    %10 = vector.shape_cast %9 : vector<128xf32> to vector<1x1x1x128xf32>
    %11 = vector.broadcast %10 : vector<1x1x1x128xf32> to vector<1x8x8x128xf32>
    %12 = arith.mulf %7, %11 : vector<1x8x8x128xf32>
    %13 = arith.addf %3, %12 : vector<1x8x8x128xf32>
    %c0_i32_9 = arith.constant 0 : i32
    %14 = arith.addi %2, %c0_i32_9 : i32
    %c0_10 = arith.constant 0 : index
    %c0_11 = arith.constant 0 : index
    %c1 = arith.constant 1 : index
    %15 = arith.index_cast %14 : i32 to index
    %c0_12 = arith.constant 0 : index
    %c0_13 = arith.constant 0 : index
    %16 = vector.load %arg2[%c0_10, %c0_11, %c1, %15, %c0_12, %c0_13] : memref<1x2x2x11x11x128xf32, #tpu.memory_space<vmem>>, vector<1x1x1x8x8x128xf32>
    %17 = vector.shape_cast %16 : vector<1x1x1x8x8x128xf32> to vector<1x8x8x128xf32>
    %c0_14 = arith.constant 0 : index
    %c1_15 = arith.constant 1 : index
    %c0_16 = arith.constant 0 : index
    %18 = vector.load %arg3[%c0_14, %c1_15, %c0_16] : memref<7x7x128xf32, #tpu.memory_space<vmem>>, vector<1x1x128xf32>
    %19 = vector.shape_cast %18 : vector<1x1x128xf32> to vector<128xf32>
    %20 = vector.shape_cast %19 : vector<128xf32> to vector<1x1x1x128xf32>
    %21 = vector.broadcast %20 : vector<1x1x1x128xf32> to vector<1x8x8x128xf32>
    %22 = arith.mulf %17, %21 : vector<1x8x8x128xf32>
    %23 = arith.addf %13, %22 : vector<1x8x8x128xf32>
    %c0_i32_17 = arith.constant 0 : i32
    %24 = arith.addi %2, %c0_i32_17 : i32
    %c0_18 = arith.constant 0 : index
    %c0_19 = arith.constant 0 : index
    %c0_20 = arith.constant 0 : index
    %25 = arith.index_cast %24 : i32 to index
    %c1_21 = arith.constant 1 : index
    %c0_22 = arith.constant 0 : index
    %26 = vector.load %arg2[%c0_18, %c0_19, %c0_20, %25, %c1_21, %c0_22] : memref<1x2x2x11x11x128xf32, #tpu.memory_space<vmem>>, vector<1x1x1x8x8x128xf32>
    %27 = vector.shape_cast %26 : vector<1x1x1x8x8x128xf32> to vector<1x8x8x128xf32>
    %c0_23 = arith.constant 0 : index
    %c2 = arith.constant 2 : index
    %c0_24 = arith.constant 0 : index
    %28 = vector.load %arg3[%c0_23, %c2, %c0_24] : memref<7x7x128xf32, #tpu.memory_space<vmem>>, vector<1x1x128xf32>
    %29 = vector.shape_cast %28 : vector<1x1x128xf32> to vector<128xf32>
    %30 = vector.shape_cast %29 : vector<128xf32> to vector<1x1x1x128xf32>
    %31 = vector.broadcast %30 : vector<1x1x1x128xf32> to vector<1x8x8x128xf32>
    %32 = arith.mulf %27, %31 : vector<1x8x8x128xf32>
    %33 = arith.addf %23, %32 : vector<1x8x8x128xf32>
    %c0_i32_25 = arith.constant 0 : i32
    %34 = arith.addi %2, %c0_i32_25 : i32
    %c0_26 = arith.constant 0 : index
    %c0_27 = arith.constant 0 : index
    %c1_28 = arith.constant 1 : index
    %35 = arith.index_cast %34 : i32 to index
    %c1_29 = arith.constant 1 : index
    %c0_30 = arith.constant 0 : index
    %36 = vector.load %arg2[%c0_26, %c0_27, %c1_28, %35, %c1_29, %c0_30] : memref<1x2x2x11x11x128xf32, #tpu.memory_space<vmem>>, vector<1x1x1x8x8x128xf32>
    %37 = vector.shape_cast %36 : vector<1x1x1x8x8x128xf32> to vector<1x8x8x128xf32>
    %c0_31 = arith.constant 0 : index
    %c3 = arith.constant 3 : index
    %c0_32 = arith.constant 0 : index
    %38 = vector.load %arg3[%c0_31, %c3, %c0_32] : memref<7x7x128xf32, #tpu.memory_space<vmem>>, vector<1x1x128xf32>
    %39 = vector.shape_cast %38 : vector<1x1x128xf32> to vector<128xf32>
    %40 = vector.shape_cast %39 : vector<128xf32> to vector<1x1x1x128xf32>
    %41 = vector.broadcast %40 : vector<1x1x1x128xf32> to vector<1x8x8x128xf32>
    %42 = arith.mulf %37, %41 : vector<1x8x8x128xf32>
    %43 = arith.addf %33, %42 : vector<1x8x8x128xf32>
    %c0_i32_33 = arith.constant 0 : i32
    %44 = arith.addi %2, %c0_i32_33 : i32
    %c0_34 = arith.constant 0 : index
    %c0_35 = arith.constant 0 : index
    %c0_36 = arith.constant 0 : index
    %45 = arith.index_cast %44 : i32 to index
    %c2_37 = arith.constant 2 : index
    %c0_38 = arith.constant 0 : index
    %46 = vector.load %arg2[%c0_34, %c0_35, %c0_36, %45, %c2_37, %c0_38] : memref<1x2x2x11x11x128xf32, #tpu.memory_space<vmem>>, vector<1x1x1x8x8x128xf32>
    %47 = vector.shape_cast %46 : vector<1x1x1x8x8x128xf32> to vector<1x8x8x128xf32>
    %c0_39 = arith.constant 0 : index
    %c4 = arith.constant 4 : index
    %c0_40 = arith.constant 0 : index
    %48 = vector.load %arg3[%c0_39, %c4, %c0_40] : memref<7x7x128xf32, #tpu.memory_space<vmem>>, vector<1x1x128xf32>
    %49 = vector.shape_cast %48 : vector<1x1x128xf32> to vector<128xf32>
    %50 = vector.shape_cast %49 : vector<128xf32> to vector<1x1x1x128xf32>
    %51 = vector.broadcast %50 : vector<1x1x1x128xf32> to vector<1x8x8x128xf32>
    %52 = arith.mulf %47, %51 : vector<1x8x8x128xf32>
    %53 = arith.addf %43, %52 : vector<1x8x8x128xf32>
    %c0_i32_41 = arith.constant 0 : i32
    %54 = arith.addi %2, %c0_i32_41 : i32
    %c0_42 = arith.constant 0 : index
    %c0_43 = arith.constant 0 : index
    %c1_44 = arith.constant 1 : index
    %55 = arith.index_cast %54 : i32 to index
    %c2_45 = arith.constant 2 : index
    %c0_46 = arith.constant 0 : index
    %56 = vector.load %arg2[%c0_42, %c0_43, %c1_44, %55, %c2_45, %c0_46] : memref<1x2x2x11x11x128xf32, #tpu.memory_space<vmem>>, vector<1x1x1x8x8x128xf32>
    %57 = vector.shape_cast %56 : vector<1x1x1x8x8x128xf32> to vector<1x8x8x128xf32>
    %c0_47 = arith.constant 0 : index
    %c5 = arith.constant 5 : index
    %c0_48 = arith.constant 0 : index
    %58 = vector.load %arg3[%c0_47, %c5, %c0_48] : memref<7x7x128xf32, #tpu.memory_space<vmem>>, vector<1x1x128xf32>
    %59 = vector.shape_cast %58 : vector<1x1x128xf32> to vector<128xf32>
    %60 = vector.shape_cast %59 : vector<128xf32> to vector<1x1x1x128xf32>
    %61 = vector.broadcast %60 : vector<1x1x1x128xf32> to vector<1x8x8x128xf32>
    %62 = arith.mulf %57, %61 : vector<1x8x8x128xf32>
    %63 = arith.addf %53, %62 : vector<1x8x8x128xf32>
    %c0_i32_49 = arith.constant 0 : i32
    %64 = arith.addi %2, %c0_i32_49 : i32
    %c0_50 = arith.constant 0 : index
    %c0_51 = arith.constant 0 : index
    %c0_52 = arith.constant 0 : index
    %65 = arith.index_cast %64 : i32 to index
    %c3_53 = arith.constant 3 : index
    %c0_54 = arith.constant 0 : index
    %66 = vector.load %arg2[%c0_50, %c0_51, %c0_52, %65, %c3_53, %c0_54] : memref<1x2x2x11x11x128xf32, #tpu.memory_space<vmem>>, vector<1x1x1x8x8x128xf32>
    %67 = vector.shape_cast %66 : vector<1x1x1x8x8x128xf32> to vector<1x8x8x128xf32>
    %c0_55 = arith.constant 0 : index
    %c6 = arith.constant 6 : index
    %c0_56 = arith.constant 0 : index
    %68 = vector.load %arg3[%c0_55, %c6, %c0_56] : memref<7x7x128xf32, #tpu.memory_space<vmem>>, vector<1x1x128xf32>
    %69 = vector.shape_cast %68 : vector<1x1x128xf32> to vector<128xf32>
    %70 = vector.shape_cast %69 : vector<128xf32> to vector<1x1x1x128xf32>
    %71 = vector.broadcast %70 : vector<1x1x1x128xf32> to vector<1x8x8x128xf32>
    %72 = arith.mulf %67, %71 : vector<1x8x8x128xf32>
    %73 = arith.addf %63, %72 : vector<1x8x8x128xf32>
    %c0_i32_57 = arith.constant 0 : i32
    %74 = arith.addi %2, %c0_i32_57 : i32
    %c0_58 = arith.constant 0 : index
    %c1_59 = arith.constant 1 : index
    %c0_60 = arith.constant 0 : index
    %75 = arith.index_cast %74 : i32 to index
    %c0_61 = arith.constant 0 : index
    %c0_62 = arith.constant 0 : index
    %76 = vector.load %arg2[%c0_58, %c1_59, %c0_60, %75, %c0_61, %c0_62] : memref<1x2x2x11x11x128xf32, #tpu.memory_space<vmem>>, vector<1x1x1x8x8x128xf32>
    %77 = vector.shape_cast %76 : vector<1x1x1x8x8x128xf32> to vector<1x8x8x128xf32>
    %c1_63 = arith.constant 1 : index
    %c0_64 = arith.constant 0 : index
    %c0_65 = arith.constant 0 : index
    %78 = vector.load %arg3[%c1_63, %c0_64, %c0_65] : memref<7x7x128xf32, #tpu.memory_space<vmem>>, vector<1x1x128xf32>
    %79 = vector.shape_cast %78 : vector<1x1x128xf32> to vector<128xf32>
    %80 = vector.shape_cast %79 : vector<128xf32> to vector<1x1x1x128xf32>
    %81 = vector.broadcast %80 : vector<1x1x1x128xf32> to vector<1x8x8x128xf32>
    %82 = arith.mulf %77, %81 : vector<1x8x8x128xf32>
    %83 = arith.addf %73, %82 : vector<1x8x8x128xf32>
    %c0_i32_66 = arith.constant 0 : i32
    %84 = arith.addi %2, %c0_i32_66 : i32
    %c0_67 = arith.constant 0 : index
    %c1_68 = arith.constant 1 : index
    %c1_69 = arith.constant 1 : index
    %85 = arith.index_cast %84 : i32 to index
    %c0_70 = arith.constant 0 : index
    %c0_71 = arith.constant 0 : index
    %86 = vector.load %arg2[%c0_67, %c1_68, %c1_69, %85, %c0_70, %c0_71] : memref<1x2x2x11x11x128xf32, #tpu.memory_space<vmem>>, vector<1x1x1x8x8x128xf32>
    %87 = vector.shape_cast %86 : vector<1x1x1x8x8x128xf32> to vector<1x8x8x128xf32>
    %c1_72 = arith.constant 1 : index
    %c1_73 = arith.constant 1 : index
    %c0_74 = arith.constant 0 : index
    %88 = vector.load %arg3[%c1_72, %c1_73, %c0_74] : memref<7x7x128xf32, #tpu.memory_space<vmem>>, vector<1x1x128xf32>
    %89 = vector.shape_cast %88 : vector<1x1x128xf32> to vector<128xf32>
    %90 = vector.shape_cast %89 : vector<128xf32> to vector<1x1x1x128xf32>
    %91 = vector.broadcast %90 : vector<1x1x1x128xf32> to vector<1x8x8x128xf32>
    %92 = arith.mulf %87, %91 : vector<1x8x8x128xf32>
    %93 = arith.addf %83, %92 : vector<1x8x8x128xf32>
    %c0_i32_75 = arith.constant 0 : i32
    %94 = arith.addi %2, %c0_i32_75 : i32
    %c0_76 = arith.constant 0 : index
    %c1_77 = arith.constant 1 : index
    %c0_78 = arith.constant 0 : index
    %95 = arith.index_cast %94 : i32 to index
    %c1_79 = arith.constant 1 : index
    %c0_80 = arith.constant 0 : index
    %96 = vector.load %arg2[%c0_76, %c1_77, %c0_78, %95, %c1_79, %c0_80] : memref<1x2x2x11x11x128xf32, #tpu.memory_space<vmem>>, vector<1x1x1x8x8x128xf32>
    %97 = vector.shape_cast %96 : vector<1x1x1x8x8x128xf32> to vector<1x8x8x128xf32>
    %c1_81 = arith.constant 1 : index
    %c2_82 = arith.constant 2 : index
    %c0_83 = arith.constant 0 : index
    %98 = vector.load %arg3[%c1_81, %c2_82, %c0_83] : memref<7x7x128xf32, #tpu.memory_space<vmem>>, vector<1x1x128xf32>
    %99 = vector.shape_cast %98 : vector<1x1x128xf32> to vector<128xf32>
    %100 = vector.shape_cast %99 : vector<128xf32> to vector<1x1x1x128xf32>
    %101 = vector.broadcast %100 : vector<1x1x1x128xf32> to vector<1x8x8x128xf32>
    %102 = arith.mulf %97, %101 : vector<1x8x8x128xf32>
    %103 = arith.addf %93, %102 : vector<1x8x8x128xf32>
    %c0_i32_84 = arith.constant 0 : i32
    %104 = arith.addi %2, %c0_i32_84 : i32
    %c0_85 = arith.constant 0 : index
    %c1_86 = arith.constant 1 : index
    %c1_87 = arith.constant 1 : index
    %105 = arith.index_cast %104 : i32 to index
    %c1_88 = arith.constant 1 : index
    %c0_89 = arith.constant 0 : index
    %106 = vector.load %arg2[%c0_85, %c1_86, %c1_87, %105, %c1_88, %c0_89] : memref<1x2x2x11x11x128xf32, #tpu.memory_space<vmem>>, vector<1x1x1x8x8x128xf32>
    %107 = vector.shape_cast %106 : vector<1x1x1x8x8x128xf32> to vector<1x8x8x128xf32>
    %c1_90 = arith.constant 1 : index
    %c3_91 = arith.constant 3 : index
    %c0_92 = arith.constant 0 : index
    %108 = vector.load %arg3[%c1_90, %c3_91, %c0_92] : memref<7x7x128xf32, #tpu.memory_space<vmem>>, vector<1x1x128xf32>
    %109 = vector.shape_cast %108 : vector<1x1x128xf32> to vector<128xf32>
    %110 = vector.shape_cast %109 : vector<128xf32> to vector<1x1x1x128xf32>
    %111 = vector.broadcast %110 : vector<1x1x1x128xf32> to vector<1x8x8x128xf32>
    %112 = arith.mulf %107, %111 : vector<1x8x8x128xf32>
    %113 = arith.addf %103, %112 : vector<1x8x8x128xf32>
    %c0_i32_93 = arith.constant 0 : i32
    %114 = arith.addi %2, %c0_i32_93 : i32
    %c0_94 = arith.constant 0 : index
    %c1_95 = arith.constant 1 : index
    %c0_96 = arith.constant 0 : index
    %115 = arith.index_cast %114 : i32 to index
    %c2_97 = arith.constant 2 : index
    %c0_98 = arith.constant 0 : index
    %116 = vector.load %arg2[%c0_94, %c1_95, %c0_96, %115, %c2_97, %c0_98] : memref<1x2x2x11x11x128xf32, #tpu.memory_space<vmem>>, vector<1x1x1x8x8x128xf32>
    %117 = vector.shape_cast %116 : vector<1x1x1x8x8x128xf32> to vector<1x8x8x128xf32>
    %c1_99 = arith.constant 1 : index
    %c4_100 = arith.constant 4 : index
    %c0_101 = arith.constant 0 : index
    %118 = vector.load %arg3[%c1_99, %c4_100, %c0_101] : memref<7x7x128xf32, #tpu.memory_space<vmem>>, vector<1x1x128xf32>
    %119 = vector.shape_cast %118 : vector<1x1x128xf32> to vector<128xf32>
    %120 = vector.shape_cast %119 : vector<128xf32> to vector<1x1x1x128xf32>
    %121 = vector.broadcast %120 : vector<1x1x1x128xf32> to vector<1x8x8x128xf32>
    %122 = arith.mulf %117, %121 : vector<1x8x8x128xf32>
    %123 = arith.addf %113, %122 : vector<1x8x8x128xf32>
    %c0_i32_102 = arith.constant 0 : i32
    %124 = arith.addi %2, %c0_i32_102 : i32
    %c0_103 = arith.constant 0 : index
    %c1_104 = arith.constant 1 : index
    %c1_105 = arith.constant 1 : index
    %125 = arith.index_cast %124 : i32 to index
    %c2_106 = arith.constant 2 : index
    %c0_107 = arith.constant 0 : index
    %126 = vector.load %arg2[%c0_103, %c1_104, %c1_105, %125, %c2_106, %c0_107] : memref<1x2x2x11x11x128xf32, #tpu.memory_space<vmem>>, vector<1x1x1x8x8x128xf32>
    %127 = vector.shape_cast %126 : vector<1x1x1x8x8x128xf32> to vector<1x8x8x128xf32>
    %c1_108 = arith.constant 1 : index
    %c5_109 = arith.constant 5 : index
    %c0_110 = arith.constant 0 : index
    %128 = vector.load %arg3[%c1_108, %c5_109, %c0_110] : memref<7x7x128xf32, #tpu.memory_space<vmem>>, vector<1x1x128xf32>
    %129 = vector.shape_cast %128 : vector<1x1x128xf32> to vector<128xf32>
    %130 = vector.shape_cast %129 : vector<128xf32> to vector<1x1x1x128xf32>
    %131 = vector.broadcast %130 : vector<1x1x1x128xf32> to vector<1x8x8x128xf32>
    %132 = arith.mulf %127, %131 : vector<1x8x8x128xf32>
    %133 = arith.addf %123, %132 : vector<1x8x8x128xf32>
    %c0_i32_111 = arith.constant 0 : i32
    %134 = arith.addi %2, %c0_i32_111 : i32
    %c0_112 = arith.constant 0 : index
    %c1_113 = arith.constant 1 : index
    %c0_114 = arith.constant 0 : index
    %135 = arith.index_cast %134 : i32 to index
    %c3_115 = arith.constant 3 : index
    %c0_116 = arith.constant 0 : index
    %136 = vector.load %arg2[%c0_112, %c1_113, %c0_114, %135, %c3_115, %c0_116] : memref<1x2x2x11x11x128xf32, #tpu.memory_space<vmem>>, vector<1x1x1x8x8x128xf32>
    %137 = vector.shape_cast %136 : vector<1x1x1x8x8x128xf32> to vector<1x8x8x128xf32>
    %c1_117 = arith.constant 1 : index
    %c6_118 = arith.constant 6 : index
    %c0_119 = arith.constant 0 : index
    %138 = vector.load %arg3[%c1_117, %c6_118, %c0_119] : memref<7x7x128xf32, #tpu.memory_space<vmem>>, vector<1x1x128xf32>
    %139 = vector.shape_cast %138 : vector<1x1x128xf32> to vector<128xf32>
    %140 = vector.shape_cast %139 : vector<128xf32> to vector<1x1x1x128xf32>
    %141 = vector.broadcast %140 : vector<1x1x1x128xf32> to vector<1x8x8x128xf32>
    %142 = arith.mulf %137, %141 : vector<1x8x8x128xf32>
    %143 = arith.addf %133, %142 : vector<1x8x8x128xf32>
    %c1_i32 = arith.constant 1 : i32
    %144 = arith.addi %2, %c1_i32 : i32
    %c0_120 = arith.constant 0 : index
    %c0_121 = arith.constant 0 : index
    %c0_122 = arith.constant 0 : index
    %145 = arith.index_cast %144 : i32 to index
    %c0_123 = arith.constant 0 : index
    %c0_124 = arith.constant 0 : index
    %146 = vector.load %arg2[%c0_120, %c0_121, %c0_122, %145, %c0_123, %c0_124] : memref<1x2x2x11x11x128xf32, #tpu.memory_space<vmem>>, vector<1x1x1x8x8x128xf32>
    %147 = vector.shape_cast %146 : vector<1x1x1x8x8x128xf32> to vector<1x8x8x128xf32>
    %c2_125 = arith.constant 2 : index
    %c0_126 = arith.constant 0 : index
    %c0_127 = arith.constant 0 : index
    %148 = vector.load %arg3[%c2_125, %c0_126, %c0_127] : memref<7x7x128xf32, #tpu.memory_space<vmem>>, vector<1x1x128xf32>
    %149 = vector.shape_cast %148 : vector<1x1x128xf32> to vector<128xf32>
    %150 = vector.shape_cast %149 : vector<128xf32> to vector<1x1x1x128xf32>
    %151 = vector.broadcast %150 : vector<1x1x1x128xf32> to vector<1x8x8x128xf32>
    %152 = arith.mulf %147, %151 : vector<1x8x8x128xf32>
    %153 = arith.addf %143, %152 : vector<1x8x8x128xf32>
    %c1_i32_128 = arith.constant 1 : i32
    %154 = arith.addi %2, %c1_i32_128 : i32
    %c0_129 = arith.constant 0 : index
    %c0_130 = arith.constant 0 : index
    %c1_131 = arith.constant 1 : index
    %155 = arith.index_cast %154 : i32 to index
    %c0_132 = arith.constant 0 : index
    %c0_133 = arith.constant 0 : index
    %156 = vector.load %arg2[%c0_129, %c0_130, %c1_131, %155, %c0_132, %c0_133] : memref<1x2x2x11x11x128xf32, #tpu.memory_space<vmem>>, vector<1x1x1x8x8x128xf32>
    %157 = vector.shape_cast %156 : vector<1x1x1x8x8x128xf32> to vector<1x8x8x128xf32>
    %c2_134 = arith.constant 2 : index
    %c1_135 = arith.constant 1 : index
    %c0_136 = arith.constant 0 : index
    %158 = vector.load %arg3[%c2_134, %c1_135, %c0_136] : memref<7x7x128xf32, #tpu.memory_space<vmem>>, vector<1x1x128xf32>
    %159 = vector.shape_cast %158 : vector<1x1x128xf32> to vector<128xf32>
    %160 = vector.shape_cast %159 : vector<128xf32> to vector<1x1x1x128xf32>
    %161 = vector.broadcast %160 : vector<1x1x1x128xf32> to vector<1x8x8x128xf32>
    %162 = arith.mulf %157, %161 : vector<1x8x8x128xf32>
    %163 = arith.addf %153, %162 : vector<1x8x8x128xf32>
    %c1_i32_137 = arith.constant 1 : i32
    %164 = arith.addi %2, %c1_i32_137 : i32
    %c0_138 = arith.constant 0 : index
    %c0_139 = arith.constant 0 : index
    %c0_140 = arith.constant 0 : index
    %165 = arith.index_cast %164 : i32 to index
    %c1_141 = arith.constant 1 : index
    %c0_142 = arith.constant 0 : index
    %166 = vector.load %arg2[%c0_138, %c0_139, %c0_140, %165, %c1_141, %c0_142] : memref<1x2x2x11x11x128xf32, #tpu.memory_space<vmem>>, vector<1x1x1x8x8x128xf32>
    %167 = vector.shape_cast %166 : vector<1x1x1x8x8x128xf32> to vector<1x8x8x128xf32>
    %c2_143 = arith.constant 2 : index
    %c2_144 = arith.constant 2 : index
    %c0_145 = arith.constant 0 : index
    %168 = vector.load %arg3[%c2_143, %c2_144, %c0_145] : memref<7x7x128xf32, #tpu.memory_space<vmem>>, vector<1x1x128xf32>
    %169 = vector.shape_cast %168 : vector<1x1x128xf32> to vector<128xf32>
    %170 = vector.shape_cast %169 : vector<128xf32> to vector<1x1x1x128xf32>
    %171 = vector.broadcast %170 : vector<1x1x1x128xf32> to vector<1x8x8x128xf32>
    %172 = arith.mulf %167, %171 : vector<1x8x8x128xf32>
    %173 = arith.addf %163, %172 : vector<1x8x8x128xf32>
    %c1_i32_146 = arith.constant 1 : i32
    %174 = arith.addi %2, %c1_i32_146 : i32
    %c0_147 = arith.constant 0 : index
    %c0_148 = arith.constant 0 : index
    %c1_149 = arith.constant 1 : index
    %175 = arith.index_cast %174 : i32 to index
    %c1_150 = arith.constant 1 : index
    %c0_151 = arith.constant 0 : index
    %176 = vector.load %arg2[%c0_147, %c0_148, %c1_149, %175, %c1_150, %c0_151] : memref<1x2x2x11x11x128xf32, #tpu.memory_space<vmem>>, vector<1x1x1x8x8x128xf32>
    %177 = vector.shape_cast %176 : vector<1x1x1x8x8x128xf32> to vector<1x8x8x128xf32>
    %c2_152 = arith.constant 2 : index
    %c3_153 = arith.constant 3 : index
    %c0_154 = arith.constant 0 : index
    %178 = vector.load %arg3[%c2_152, %c3_153, %c0_154] : memref<7x7x128xf32, #tpu.memory_space<vmem>>, vector<1x1x128xf32>
    %179 = vector.shape_cast %178 : vector<1x1x128xf32> to vector<128xf32>
    %180 = vector.shape_cast %179 : vector<128xf32> to vector<1x1x1x128xf32>
    %181 = vector.broadcast %180 : vector<1x1x1x128xf32> to vector<1x8x8x128xf32>
    %182 = arith.mulf %177, %181 : vector<1x8x8x128xf32>
    %183 = arith.addf %173, %182 : vector<1x8x8x128xf32>
    %c1_i32_155 = arith.constant 1 : i32
    %184 = arith.addi %2, %c1_i32_155 : i32
    %c0_156 = arith.constant 0 : index
    %c0_157 = arith.constant 0 : index
    %c0_158 = arith.constant 0 : index
    %185 = arith.index_cast %184 : i32 to index
    %c2_159 = arith.constant 2 : index
    %c0_160 = arith.constant 0 : index
    %186 = vector.load %arg2[%c0_156, %c0_157, %c0_158, %185, %c2_159, %c0_160] : memref<1x2x2x11x11x128xf32, #tpu.memory_space<vmem>>, vector<1x1x1x8x8x128xf32>
    %187 = vector.shape_cast %186 : vector<1x1x1x8x8x128xf32> to vector<1x8x8x128xf32>
    %c2_161 = arith.constant 2 : index
    %c4_162 = arith.constant 4 : index
    %c0_163 = arith.constant 0 : index
    %188 = vector.load %arg3[%c2_161, %c4_162, %c0_163] : memref<7x7x128xf32, #tpu.memory_space<vmem>>, vector<1x1x128xf32>
    %189 = vector.shape_cast %188 : vector<1x1x128xf32> to vector<128xf32>
    %190 = vector.shape_cast %189 : vector<128xf32> to vector<1x1x1x128xf32>
    %191 = vector.broadcast %190 : vector<1x1x1x128xf32> to vector<1x8x8x128xf32>
    %192 = arith.mulf %187, %191 : vector<1x8x8x128xf32>
    %193 = arith.addf %183, %192 : vector<1x8x8x128xf32>
    %c1_i32_164 = arith.constant 1 : i32
    %194 = arith.addi %2, %c1_i32_164 : i32
    %c0_165 = arith.constant 0 : index
    %c0_166 = arith.constant 0 : index
    %c1_167 = arith.constant 1 : index
    %195 = arith.index_cast %194 : i32 to index
    %c2_168 = arith.constant 2 : index
    %c0_169 = arith.constant 0 : index
    %196 = vector.load %arg2[%c0_165, %c0_166, %c1_167, %195, %c2_168, %c0_169] : memref<1x2x2x11x11x128xf32, #tpu.memory_space<vmem>>, vector<1x1x1x8x8x128xf32>
    %197 = vector.shape_cast %196 : vector<1x1x1x8x8x128xf32> to vector<1x8x8x128xf32>
    %c2_170 = arith.constant 2 : index
    %c5_171 = arith.constant 5 : index
    %c0_172 = arith.constant 0 : index
    %198 = vector.load %arg3[%c2_170, %c5_171, %c0_172] : memref<7x7x128xf32, #tpu.memory_space<vmem>>, vector<1x1x128xf32>
    %199 = vector.shape_cast %198 : vector<1x1x128xf32> to vector<128xf32>
    %200 = vector.shape_cast %199 : vector<128xf32> to vector<1x1x1x128xf32>
    %201 = vector.broadcast %200 : vector<1x1x1x128xf32> to vector<1x8x8x128xf32>
    %202 = arith.mulf %197, %201 : vector<1x8x8x128xf32>
    %203 = arith.addf %193, %202 : vector<1x8x8x128xf32>
    %c1_i32_173 = arith.constant 1 : i32
    %204 = arith.addi %2, %c1_i32_173 : i32
    %c0_174 = arith.constant 0 : index
    %c0_175 = arith.constant 0 : index
    %c0_176 = arith.constant 0 : index
    %205 = arith.index_cast %204 : i32 to index
    %c3_177 = arith.constant 3 : index
    %c0_178 = arith.constant 0 : index
    %206 = vector.load %arg2[%c0_174, %c0_175, %c0_176, %205, %c3_177, %c0_178] : memref<1x2x2x11x11x128xf32, #tpu.memory_space<vmem>>, vector<1x1x1x8x8x128xf32>
    %207 = vector.shape_cast %206 : vector<1x1x1x8x8x128xf32> to vector<1x8x8x128xf32>
    %c2_179 = arith.constant 2 : index
    %c6_180 = arith.constant 6 : index
    %c0_181 = arith.constant 0 : index
    %208 = vector.load %arg3[%c2_179, %c6_180, %c0_181] : memref<7x7x128xf32, #tpu.memory_space<vmem>>, vector<1x1x128xf32>
    %209 = vector.shape_cast %208 : vector<1x1x128xf32> to vector<128xf32>
    %210 = vector.shape_cast %209 : vector<128xf32> to vector<1x1x1x128xf32>
    %211 = vector.broadcast %210 : vector<1x1x1x128xf32> to vector<1x8x8x128xf32>
    %212 = arith.mulf %207, %211 : vector<1x8x8x128xf32>
    %213 = arith.addf %203, %212 : vector<1x8x8x128xf32>
    %c1_i32_182 = arith.constant 1 : i32
    %214 = arith.addi %2, %c1_i32_182 : i32
    %c0_183 = arith.constant 0 : index
    %c1_184 = arith.constant 1 : index
    %c0_185 = arith.constant 0 : index
    %215 = arith.index_cast %214 : i32 to index
    %c0_186 = arith.constant 0 : index
    %c0_187 = arith.constant 0 : index
    %216 = vector.load %arg2[%c0_183, %c1_184, %c0_185, %215, %c0_186, %c0_187] : memref<1x2x2x11x11x128xf32, #tpu.memory_space<vmem>>, vector<1x1x1x8x8x128xf32>
    %217 = vector.shape_cast %216 : vector<1x1x1x8x8x128xf32> to vector<1x8x8x128xf32>
    %c3_188 = arith.constant 3 : index
    %c0_189 = arith.constant 0 : index
    %c0_190 = arith.constant 0 : index
    %218 = vector.load %arg3[%c3_188, %c0_189, %c0_190] : memref<7x7x128xf32, #tpu.memory_space<vmem>>, vector<1x1x128xf32>
    %219 = vector.shape_cast %218 : vector<1x1x128xf32> to vector<128xf32>
    %220 = vector.shape_cast %219 : vector<128xf32> to vector<1x1x1x128xf32>
    %221 = vector.broadcast %220 : vector<1x1x1x128xf32> to vector<1x8x8x128xf32>
    %222 = arith.mulf %217, %221 : vector<1x8x8x128xf32>
    %223 = arith.addf %213, %222 : vector<1x8x8x128xf32>
    %c1_i32_191 = arith.constant 1 : i32
    %224 = arith.addi %2, %c1_i32_191 : i32
    %c0_192 = arith.constant 0 : index
    %c1_193 = arith.constant 1 : index
    %c1_194 = arith.constant 1 : index
    %225 = arith.index_cast %224 : i32 to index
    %c0_195 = arith.constant 0 : index
    %c0_196 = arith.constant 0 : index
    %226 = vector.load %arg2[%c0_192, %c1_193, %c1_194, %225, %c0_195, %c0_196] : memref<1x2x2x11x11x128xf32, #tpu.memory_space<vmem>>, vector<1x1x1x8x8x128xf32>
    %227 = vector.shape_cast %226 : vector<1x1x1x8x8x128xf32> to vector<1x8x8x128xf32>
    %c3_197 = arith.constant 3 : index
    %c1_198 = arith.constant 1 : index
    %c0_199 = arith.constant 0 : index
    %228 = vector.load %arg3[%c3_197, %c1_198, %c0_199] : memref<7x7x128xf32, #tpu.memory_space<vmem>>, vector<1x1x128xf32>
    %229 = vector.shape_cast %228 : vector<1x1x128xf32> to vector<128xf32>
    %230 = vector.shape_cast %229 : vector<128xf32> to vector<1x1x1x128xf32>
    %231 = vector.broadcast %230 : vector<1x1x1x128xf32> to vector<1x8x8x128xf32>
    %232 = arith.mulf %227, %231 : vector<1x8x8x128xf32>
    %233 = arith.addf %223, %232 : vector<1x8x8x128xf32>
    %c1_i32_200 = arith.constant 1 : i32
    %234 = arith.addi %2, %c1_i32_200 : i32
    %c0_201 = arith.constant 0 : index
    %c1_202 = arith.constant 1 : index
    %c0_203 = arith.constant 0 : index
    %235 = arith.index_cast %234 : i32 to index
    %c1_204 = arith.constant 1 : index
    %c0_205 = arith.constant 0 : index
    %236 = vector.load %arg2[%c0_201, %c1_202, %c0_203, %235, %c1_204, %c0_205] : memref<1x2x2x11x11x128xf32, #tpu.memory_space<vmem>>, vector<1x1x1x8x8x128xf32>
    %237 = vector.shape_cast %236 : vector<1x1x1x8x8x128xf32> to vector<1x8x8x128xf32>
    %c3_206 = arith.constant 3 : index
    %c2_207 = arith.constant 2 : index
    %c0_208 = arith.constant 0 : index
    %238 = vector.load %arg3[%c3_206, %c2_207, %c0_208] : memref<7x7x128xf32, #tpu.memory_space<vmem>>, vector<1x1x128xf32>
    %239 = vector.shape_cast %238 : vector<1x1x128xf32> to vector<128xf32>
    %240 = vector.shape_cast %239 : vector<128xf32> to vector<1x1x1x128xf32>
    %241 = vector.broadcast %240 : vector<1x1x1x128xf32> to vector<1x8x8x128xf32>
    %242 = arith.mulf %237, %241 : vector<1x8x8x128xf32>
    %243 = arith.addf %233, %242 : vector<1x8x8x128xf32>
    %c1_i32_209 = arith.constant 1 : i32
    %244 = arith.addi %2, %c1_i32_209 : i32
    %c0_210 = arith.constant 0 : index
    %c1_211 = arith.constant 1 : index
    %c1_212 = arith.constant 1 : index
    %245 = arith.index_cast %244 : i32 to index
    %c1_213 = arith.constant 1 : index
    %c0_214 = arith.constant 0 : index
    %246 = vector.load %arg2[%c0_210, %c1_211, %c1_212, %245, %c1_213, %c0_214] : memref<1x2x2x11x11x128xf32, #tpu.memory_space<vmem>>, vector<1x1x1x8x8x128xf32>
    %247 = vector.shape_cast %246 : vector<1x1x1x8x8x128xf32> to vector<1x8x8x128xf32>
    %c3_215 = arith.constant 3 : index
    %c3_216 = arith.constant 3 : index
    %c0_217 = arith.constant 0 : index
    %248 = vector.load %arg3[%c3_215, %c3_216, %c0_217] : memref<7x7x128xf32, #tpu.memory_space<vmem>>, vector<1x1x128xf32>
    %249 = vector.shape_cast %248 : vector<1x1x128xf32> to vector<128xf32>
    %250 = vector.shape_cast %249 : vector<128xf32> to vector<1x1x1x128xf32>
    %251 = vector.broadcast %250 : vector<1x1x1x128xf32> to vector<1x8x8x128xf32>
    %252 = arith.mulf %247, %251 : vector<1x8x8x128xf32>
    %253 = arith.addf %243, %252 : vector<1x8x8x128xf32>
    %c1_i32_218 = arith.constant 1 : i32
    %254 = arith.addi %2, %c1_i32_218 : i32
    %c0_219 = arith.constant 0 : index
    %c1_220 = arith.constant 1 : index
    %c0_221 = arith.constant 0 : index
    %255 = arith.index_cast %254 : i32 to index
    %c2_222 = arith.constant 2 : index
    %c0_223 = arith.constant 0 : index
    %256 = vector.load %arg2[%c0_219, %c1_220, %c0_221, %255, %c2_222, %c0_223] : memref<1x2x2x11x11x128xf32, #tpu.memory_space<vmem>>, vector<1x1x1x8x8x128xf32>
    %257 = vector.shape_cast %256 : vector<1x1x1x8x8x128xf32> to vector<1x8x8x128xf32>
    %c3_224 = arith.constant 3 : index
    %c4_225 = arith.constant 4 : index
    %c0_226 = arith.constant 0 : index
    %258 = vector.load %arg3[%c3_224, %c4_225, %c0_226] : memref<7x7x128xf32, #tpu.memory_space<vmem>>, vector<1x1x128xf32>
    %259 = vector.shape_cast %258 : vector<1x1x128xf32> to vector<128xf32>
    %260 = vector.shape_cast %259 : vector<128xf32> to vector<1x1x1x128xf32>
    %261 = vector.broadcast %260 : vector<1x1x1x128xf32> to vector<1x8x8x128xf32>
    %262 = arith.mulf %257, %261 : vector<1x8x8x128xf32>
    %263 = arith.addf %253, %262 : vector<1x8x8x128xf32>
    %c1_i32_227 = arith.constant 1 : i32
    %264 = arith.addi %2, %c1_i32_227 : i32
    %c0_228 = arith.constant 0 : index
    %c1_229 = arith.constant 1 : index
    %c1_230 = arith.constant 1 : index
    %265 = arith.index_cast %264 : i32 to index
    %c2_231 = arith.constant 2 : index
    %c0_232 = arith.constant 0 : index
    %266 = vector.load %arg2[%c0_228, %c1_229, %c1_230, %265, %c2_231, %c0_232] : memref<1x2x2x11x11x128xf32, #tpu.memory_space<vmem>>, vector<1x1x1x8x8x128xf32>
    %267 = vector.shape_cast %266 : vector<1x1x1x8x8x128xf32> to vector<1x8x8x128xf32>
    %c3_233 = arith.constant 3 : index
    %c5_234 = arith.constant 5 : index
    %c0_235 = arith.constant 0 : index
    %268 = vector.load %arg3[%c3_233, %c5_234, %c0_235] : memref<7x7x128xf32, #tpu.memory_space<vmem>>, vector<1x1x128xf32>
    %269 = vector.shape_cast %268 : vector<1x1x128xf32> to vector<128xf32>
    %270 = vector.shape_cast %269 : vector<128xf32> to vector<1x1x1x128xf32>
    %271 = vector.broadcast %270 : vector<1x1x1x128xf32> to vector<1x8x8x128xf32>
    %272 = arith.mulf %267, %271 : vector<1x8x8x128xf32>
    %273 = arith.addf %263, %272 : vector<1x8x8x128xf32>
    %c1_i32_236 = arith.constant 1 : i32
    %274 = arith.addi %2, %c1_i32_236 : i32
    %c0_237 = arith.constant 0 : index
    %c1_238 = arith.constant 1 : index
    %c0_239 = arith.constant 0 : index
    %275 = arith.index_cast %274 : i32 to index
    %c3_240 = arith.constant 3 : index
    %c0_241 = arith.constant 0 : index
    %276 = vector.load %arg2[%c0_237, %c1_238, %c0_239, %275, %c3_240, %c0_241] : memref<1x2x2x11x11x128xf32, #tpu.memory_space<vmem>>, vector<1x1x1x8x8x128xf32>
    %277 = vector.shape_cast %276 : vector<1x1x1x8x8x128xf32> to vector<1x8x8x128xf32>
    %c3_242 = arith.constant 3 : index
    %c6_243 = arith.constant 6 : index
    %c0_244 = arith.constant 0 : index
    %278 = vector.load %arg3[%c3_242, %c6_243, %c0_244] : memref<7x7x128xf32, #tpu.memory_space<vmem>>, vector<1x1x128xf32>
    %279 = vector.shape_cast %278 : vector<1x1x128xf32> to vector<128xf32>
    %280 = vector.shape_cast %279 : vector<128xf32> to vector<1x1x1x128xf32>
    %281 = vector.broadcast %280 : vector<1x1x1x128xf32> to vector<1x8x8x128xf32>
    %282 = arith.mulf %277, %281 : vector<1x8x8x128xf32>
    %283 = arith.addf %273, %282 : vector<1x8x8x128xf32>
    %c2_i32 = arith.constant 2 : i32
    %284 = arith.addi %2, %c2_i32 : i32
    %c0_245 = arith.constant 0 : index
    %c0_246 = arith.constant 0 : index
    %c0_247 = arith.constant 0 : index
    %285 = arith.index_cast %284 : i32 to index
    %c0_248 = arith.constant 0 : index
    %c0_249 = arith.constant 0 : index
    %286 = vector.load %arg2[%c0_245, %c0_246, %c0_247, %285, %c0_248, %c0_249] : memref<1x2x2x11x11x128xf32, #tpu.memory_space<vmem>>, vector<1x1x1x8x8x128xf32>
    %287 = vector.shape_cast %286 : vector<1x1x1x8x8x128xf32> to vector<1x8x8x128xf32>
    %c4_250 = arith.constant 4 : index
    %c0_251 = arith.constant 0 : index
    %c0_252 = arith.constant 0 : index
    %288 = vector.load %arg3[%c4_250, %c0_251, %c0_252] : memref<7x7x128xf32, #tpu.memory_space<vmem>>, vector<1x1x128xf32>
    %289 = vector.shape_cast %288 : vector<1x1x128xf32> to vector<128xf32>
    %290 = vector.shape_cast %289 : vector<128xf32> to vector<1x1x1x128xf32>
    %291 = vector.broadcast %290 : vector<1x1x1x128xf32> to vector<1x8x8x128xf32>
    %292 = arith.mulf %287, %291 : vector<1x8x8x128xf32>
    %293 = arith.addf %283, %292 : vector<1x8x8x128xf32>
    %c2_i32_253 = arith.constant 2 : i32
    %294 = arith.addi %2, %c2_i32_253 : i32
    %c0_254 = arith.constant 0 : index
    %c0_255 = arith.constant 0 : index
    %c1_256 = arith.constant 1 : index
    %295 = arith.index_cast %294 : i32 to index
    %c0_257 = arith.constant 0 : index
    %c0_258 = arith.constant 0 : index
    %296 = vector.load %arg2[%c0_254, %c0_255, %c1_256, %295, %c0_257, %c0_258] : memref<1x2x2x11x11x128xf32, #tpu.memory_space<vmem>>, vector<1x1x1x8x8x128xf32>
    %297 = vector.shape_cast %296 : vector<1x1x1x8x8x128xf32> to vector<1x8x8x128xf32>
    %c4_259 = arith.constant 4 : index
    %c1_260 = arith.constant 1 : index
    %c0_261 = arith.constant 0 : index
    %298 = vector.load %arg3[%c4_259, %c1_260, %c0_261] : memref<7x7x128xf32, #tpu.memory_space<vmem>>, vector<1x1x128xf32>
    %299 = vector.shape_cast %298 : vector<1x1x128xf32> to vector<128xf32>
    %300 = vector.shape_cast %299 : vector<128xf32> to vector<1x1x1x128xf32>
    %301 = vector.broadcast %300 : vector<1x1x1x128xf32> to vector<1x8x8x128xf32>
    %302 = arith.mulf %297, %301 : vector<1x8x8x128xf32>
    %303 = arith.addf %293, %302 : vector<1x8x8x128xf32>
    %c2_i32_262 = arith.constant 2 : i32
    %304 = arith.addi %2, %c2_i32_262 : i32
    %c0_263 = arith.constant 0 : index
    %c0_264 = arith.constant 0 : index
    %c0_265 = arith.constant 0 : index
    %305 = arith.index_cast %304 : i32 to index
    %c1_266 = arith.constant 1 : index
    %c0_267 = arith.constant 0 : index
    %306 = vector.load %arg2[%c0_263, %c0_264, %c0_265, %305, %c1_266, %c0_267] : memref<1x2x2x11x11x128xf32, #tpu.memory_space<vmem>>, vector<1x1x1x8x8x128xf32>
    %307 = vector.shape_cast %306 : vector<1x1x1x8x8x128xf32> to vector<1x8x8x128xf32>
    %c4_268 = arith.constant 4 : index
    %c2_269 = arith.constant 2 : index
    %c0_270 = arith.constant 0 : index
    %308 = vector.load %arg3[%c4_268, %c2_269, %c0_270] : memref<7x7x128xf32, #tpu.memory_space<vmem>>, vector<1x1x128xf32>
    %309 = vector.shape_cast %308 : vector<1x1x128xf32> to vector<128xf32>
    %310 = vector.shape_cast %309 : vector<128xf32> to vector<1x1x1x128xf32>
    %311 = vector.broadcast %310 : vector<1x1x1x128xf32> to vector<1x8x8x128xf32>
    %312 = arith.mulf %307, %311 : vector<1x8x8x128xf32>
    %313 = arith.addf %303, %312 : vector<1x8x8x128xf32>
    %c2_i32_271 = arith.constant 2 : i32
    %314 = arith.addi %2, %c2_i32_271 : i32
    %c0_272 = arith.constant 0 : index
    %c0_273 = arith.constant 0 : index
    %c1_274 = arith.constant 1 : index
    %315 = arith.index_cast %314 : i32 to index
    %c1_275 = arith.constant 1 : index
    %c0_276 = arith.constant 0 : index
    %316 = vector.load %arg2[%c0_272, %c0_273, %c1_274, %315, %c1_275, %c0_276] : memref<1x2x2x11x11x128xf32, #tpu.memory_space<vmem>>, vector<1x1x1x8x8x128xf32>
    %317 = vector.shape_cast %316 : vector<1x1x1x8x8x128xf32> to vector<1x8x8x128xf32>
    %c4_277 = arith.constant 4 : index
    %c3_278 = arith.constant 3 : index
    %c0_279 = arith.constant 0 : index
    %318 = vector.load %arg3[%c4_277, %c3_278, %c0_279] : memref<7x7x128xf32, #tpu.memory_space<vmem>>, vector<1x1x128xf32>
    %319 = vector.shape_cast %318 : vector<1x1x128xf32> to vector<128xf32>
    %320 = vector.shape_cast %319 : vector<128xf32> to vector<1x1x1x128xf32>
    %321 = vector.broadcast %320 : vector<1x1x1x128xf32> to vector<1x8x8x128xf32>
    %322 = arith.mulf %317, %321 : vector<1x8x8x128xf32>
    %323 = arith.addf %313, %322 : vector<1x8x8x128xf32>
    %c2_i32_280 = arith.constant 2 : i32
    %324 = arith.addi %2, %c2_i32_280 : i32
    %c0_281 = arith.constant 0 : index
    %c0_282 = arith.constant 0 : index
    %c0_283 = arith.constant 0 : index
    %325 = arith.index_cast %324 : i32 to index
    %c2_284 = arith.constant 2 : index
    %c0_285 = arith.constant 0 : index
    %326 = vector.load %arg2[%c0_281, %c0_282, %c0_283, %325, %c2_284, %c0_285] : memref<1x2x2x11x11x128xf32, #tpu.memory_space<vmem>>, vector<1x1x1x8x8x128xf32>
    %327 = vector.shape_cast %326 : vector<1x1x1x8x8x128xf32> to vector<1x8x8x128xf32>
    %c4_286 = arith.constant 4 : index
    %c4_287 = arith.constant 4 : index
    %c0_288 = arith.constant 0 : index
    %328 = vector.load %arg3[%c4_286, %c4_287, %c0_288] : memref<7x7x128xf32, #tpu.memory_space<vmem>>, vector<1x1x128xf32>
    %329 = vector.shape_cast %328 : vector<1x1x128xf32> to vector<128xf32>
    %330 = vector.shape_cast %329 : vector<128xf32> to vector<1x1x1x128xf32>
    %331 = vector.broadcast %330 : vector<1x1x1x128xf32> to vector<1x8x8x128xf32>
    %332 = arith.mulf %327, %331 : vector<1x8x8x128xf32>
    %333 = arith.addf %323, %332 : vector<1x8x8x128xf32>
    %c2_i32_289 = arith.constant 2 : i32
    %334 = arith.addi %2, %c2_i32_289 : i32
    %c0_290 = arith.constant 0 : index
    %c0_291 = arith.constant 0 : index
    %c1_292 = arith.constant 1 : index
    %335 = arith.index_cast %334 : i32 to index
    %c2_293 = arith.constant 2 : index
    %c0_294 = arith.constant 0 : index
    %336 = vector.load %arg2[%c0_290, %c0_291, %c1_292, %335, %c2_293, %c0_294] : memref<1x2x2x11x11x128xf32, #tpu.memory_space<vmem>>, vector<1x1x1x8x8x128xf32>
    %337 = vector.shape_cast %336 : vector<1x1x1x8x8x128xf32> to vector<1x8x8x128xf32>
    %c4_295 = arith.constant 4 : index
    %c5_296 = arith.constant 5 : index
    %c0_297 = arith.constant 0 : index
    %338 = vector.load %arg3[%c4_295, %c5_296, %c0_297] : memref<7x7x128xf32, #tpu.memory_space<vmem>>, vector<1x1x128xf32>
    %339 = vector.shape_cast %338 : vector<1x1x128xf32> to vector<128xf32>
    %340 = vector.shape_cast %339 : vector<128xf32> to vector<1x1x1x128xf32>
    %341 = vector.broadcast %340 : vector<1x1x1x128xf32> to vector<1x8x8x128xf32>
    %342 = arith.mulf %337, %341 : vector<1x8x8x128xf32>
    %343 = arith.addf %333, %342 : vector<1x8x8x128xf32>
    %c2_i32_298 = arith.constant 2 : i32
    %344 = arith.addi %2, %c2_i32_298 : i32
    %c0_299 = arith.constant 0 : index
    %c0_300 = arith.constant 0 : index
    %c0_301 = arith.constant 0 : index
    %345 = arith.index_cast %344 : i32 to index
    %c3_302 = arith.constant 3 : index
    %c0_303 = arith.constant 0 : index
    %346 = vector.load %arg2[%c0_299, %c0_300, %c0_301, %345, %c3_302, %c0_303] : memref<1x2x2x11x11x128xf32, #tpu.memory_space<vmem>>, vector<1x1x1x8x8x128xf32>
    %347 = vector.shape_cast %346 : vector<1x1x1x8x8x128xf32> to vector<1x8x8x128xf32>
    %c4_304 = arith.constant 4 : index
    %c6_305 = arith.constant 6 : index
    %c0_306 = arith.constant 0 : index
    %348 = vector.load %arg3[%c4_304, %c6_305, %c0_306] : memref<7x7x128xf32, #tpu.memory_space<vmem>>, vector<1x1x128xf32>
    %349 = vector.shape_cast %348 : vector<1x1x128xf32> to vector<128xf32>
    %350 = vector.shape_cast %349 : vector<128xf32> to vector<1x1x1x128xf32>
    %351 = vector.broadcast %350 : vector<1x1x1x128xf32> to vector<1x8x8x128xf32>
    %352 = arith.mulf %347, %351 : vector<1x8x8x128xf32>
    %353 = arith.addf %343, %352 : vector<1x8x8x128xf32>
    %c2_i32_307 = arith.constant 2 : i32
    %354 = arith.addi %2, %c2_i32_307 : i32
    %c0_308 = arith.constant 0 : index
    %c1_309 = arith.constant 1 : index
    %c0_310 = arith.constant 0 : index
    %355 = arith.index_cast %354 : i32 to index
    %c0_311 = arith.constant 0 : index
    %c0_312 = arith.constant 0 : index
    %356 = vector.load %arg2[%c0_308, %c1_309, %c0_310, %355, %c0_311, %c0_312] : memref<1x2x2x11x11x128xf32, #tpu.memory_space<vmem>>, vector<1x1x1x8x8x128xf32>
    %357 = vector.shape_cast %356 : vector<1x1x1x8x8x128xf32> to vector<1x8x8x128xf32>
    %c5_313 = arith.constant 5 : index
    %c0_314 = arith.constant 0 : index
    %c0_315 = arith.constant 0 : index
    %358 = vector.load %arg3[%c5_313, %c0_314, %c0_315] : memref<7x7x128xf32, #tpu.memory_space<vmem>>, vector<1x1x128xf32>
    %359 = vector.shape_cast %358 : vector<1x1x128xf32> to vector<128xf32>
    %360 = vector.shape_cast %359 : vector<128xf32> to vector<1x1x1x128xf32>
    %361 = vector.broadcast %360 : vector<1x1x1x128xf32> to vector<1x8x8x128xf32>
    %362 = arith.mulf %357, %361 : vector<1x8x8x128xf32>
    %363 = arith.addf %353, %362 : vector<1x8x8x128xf32>
    %c2_i32_316 = arith.constant 2 : i32
    %364 = arith.addi %2, %c2_i32_316 : i32
    %c0_317 = arith.constant 0 : index
    %c1_318 = arith.constant 1 : index
    %c1_319 = arith.constant 1 : index
    %365 = arith.index_cast %364 : i32 to index
    %c0_320 = arith.constant 0 : index
    %c0_321 = arith.constant 0 : index
    %366 = vector.load %arg2[%c0_317, %c1_318, %c1_319, %365, %c0_320, %c0_321] : memref<1x2x2x11x11x128xf32, #tpu.memory_space<vmem>>, vector<1x1x1x8x8x128xf32>
    %367 = vector.shape_cast %366 : vector<1x1x1x8x8x128xf32> to vector<1x8x8x128xf32>
    %c5_322 = arith.constant 5 : index
    %c1_323 = arith.constant 1 : index
    %c0_324 = arith.constant 0 : index
    %368 = vector.load %arg3[%c5_322, %c1_323, %c0_324] : memref<7x7x128xf32, #tpu.memory_space<vmem>>, vector<1x1x128xf32>
    %369 = vector.shape_cast %368 : vector<1x1x128xf32> to vector<128xf32>
    %370 = vector.shape_cast %369 : vector<128xf32> to vector<1x1x1x128xf32>
    %371 = vector.broadcast %370 : vector<1x1x1x128xf32> to vector<1x8x8x128xf32>
    %372 = arith.mulf %367, %371 : vector<1x8x8x128xf32>
    %373 = arith.addf %363, %372 : vector<1x8x8x128xf32>
    %c2_i32_325 = arith.constant 2 : i32
    %374 = arith.addi %2, %c2_i32_325 : i32
    %c0_326 = arith.constant 0 : index
    %c1_327 = arith.constant 1 : index
    %c0_328 = arith.constant 0 : index
    %375 = arith.index_cast %374 : i32 to index
    %c1_329 = arith.constant 1 : index
    %c0_330 = arith.constant 0 : index
    %376 = vector.load %arg2[%c0_326, %c1_327, %c0_328, %375, %c1_329, %c0_330] : memref<1x2x2x11x11x128xf32, #tpu.memory_space<vmem>>, vector<1x1x1x8x8x128xf32>
    %377 = vector.shape_cast %376 : vector<1x1x1x8x8x128xf32> to vector<1x8x8x128xf32>
    %c5_331 = arith.constant 5 : index
    %c2_332 = arith.constant 2 : index
    %c0_333 = arith.constant 0 : index
    %378 = vector.load %arg3[%c5_331, %c2_332, %c0_333] : memref<7x7x128xf32, #tpu.memory_space<vmem>>, vector<1x1x128xf32>
    %379 = vector.shape_cast %378 : vector<1x1x128xf32> to vector<128xf32>
    %380 = vector.shape_cast %379 : vector<128xf32> to vector<1x1x1x128xf32>
    %381 = vector.broadcast %380 : vector<1x1x1x128xf32> to vector<1x8x8x128xf32>
    %382 = arith.mulf %377, %381 : vector<1x8x8x128xf32>
    %383 = arith.addf %373, %382 : vector<1x8x8x128xf32>
    %c2_i32_334 = arith.constant 2 : i32
    %384 = arith.addi %2, %c2_i32_334 : i32
    %c0_335 = arith.constant 0 : index
    %c1_336 = arith.constant 1 : index
    %c1_337 = arith.constant 1 : index
    %385 = arith.index_cast %384 : i32 to index
    %c1_338 = arith.constant 1 : index
    %c0_339 = arith.constant 0 : index
    %386 = vector.load %arg2[%c0_335, %c1_336, %c1_337, %385, %c1_338, %c0_339] : memref<1x2x2x11x11x128xf32, #tpu.memory_space<vmem>>, vector<1x1x1x8x8x128xf32>
    %387 = vector.shape_cast %386 : vector<1x1x1x8x8x128xf32> to vector<1x8x8x128xf32>
    %c5_340 = arith.constant 5 : index
    %c3_341 = arith.constant 3 : index
    %c0_342 = arith.constant 0 : index
    %388 = vector.load %arg3[%c5_340, %c3_341, %c0_342] : memref<7x7x128xf32, #tpu.memory_space<vmem>>, vector<1x1x128xf32>
    %389 = vector.shape_cast %388 : vector<1x1x128xf32> to vector<128xf32>
    %390 = vector.shape_cast %389 : vector<128xf32> to vector<1x1x1x128xf32>
    %391 = vector.broadcast %390 : vector<1x1x1x128xf32> to vector<1x8x8x128xf32>
    %392 = arith.mulf %387, %391 : vector<1x8x8x128xf32>
    %393 = arith.addf %383, %392 : vector<1x8x8x128xf32>
    %c2_i32_343 = arith.constant 2 : i32
    %394 = arith.addi %2, %c2_i32_343 : i32
    %c0_344 = arith.constant 0 : index
    %c1_345 = arith.constant 1 : index
    %c0_346 = arith.constant 0 : index
    %395 = arith.index_cast %394 : i32 to index
    %c2_347 = arith.constant 2 : index
    %c0_348 = arith.constant 0 : index
    %396 = vector.load %arg2[%c0_344, %c1_345, %c0_346, %395, %c2_347, %c0_348] : memref<1x2x2x11x11x128xf32, #tpu.memory_space<vmem>>, vector<1x1x1x8x8x128xf32>
    %397 = vector.shape_cast %396 : vector<1x1x1x8x8x128xf32> to vector<1x8x8x128xf32>
    %c5_349 = arith.constant 5 : index
    %c4_350 = arith.constant 4 : index
    %c0_351 = arith.constant 0 : index
    %398 = vector.load %arg3[%c5_349, %c4_350, %c0_351] : memref<7x7x128xf32, #tpu.memory_space<vmem>>, vector<1x1x128xf32>
    %399 = vector.shape_cast %398 : vector<1x1x128xf32> to vector<128xf32>
    %400 = vector.shape_cast %399 : vector<128xf32> to vector<1x1x1x128xf32>
    %401 = vector.broadcast %400 : vector<1x1x1x128xf32> to vector<1x8x8x128xf32>
    %402 = arith.mulf %397, %401 : vector<1x8x8x128xf32>
    %403 = arith.addf %393, %402 : vector<1x8x8x128xf32>
    %c2_i32_352 = arith.constant 2 : i32
    %404 = arith.addi %2, %c2_i32_352 : i32
    %c0_353 = arith.constant 0 : index
    %c1_354 = arith.constant 1 : index
    %c1_355 = arith.constant 1 : index
    %405 = arith.index_cast %404 : i32 to index
    %c2_356 = arith.constant 2 : index
    %c0_357 = arith.constant 0 : index
    %406 = vector.load %arg2[%c0_353, %c1_354, %c1_355, %405, %c2_356, %c0_357] : memref<1x2x2x11x11x128xf32, #tpu.memory_space<vmem>>, vector<1x1x1x8x8x128xf32>
    %407 = vector.shape_cast %406 : vector<1x1x1x8x8x128xf32> to vector<1x8x8x128xf32>
    %c5_358 = arith.constant 5 : index
    %c5_359 = arith.constant 5 : index
    %c0_360 = arith.constant 0 : index
    %408 = vector.load %arg3[%c5_358, %c5_359, %c0_360] : memref<7x7x128xf32, #tpu.memory_space<vmem>>, vector<1x1x128xf32>
    %409 = vector.shape_cast %408 : vector<1x1x128xf32> to vector<128xf32>
    %410 = vector.shape_cast %409 : vector<128xf32> to vector<1x1x1x128xf32>
    %411 = vector.broadcast %410 : vector<1x1x1x128xf32> to vector<1x8x8x128xf32>
    %412 = arith.mulf %407, %411 : vector<1x8x8x128xf32>
    %413 = arith.addf %403, %412 : vector<1x8x8x128xf32>
    %c2_i32_361 = arith.constant 2 : i32
    %414 = arith.addi %2, %c2_i32_361 : i32
    %c0_362 = arith.constant 0 : index
    %c1_363 = arith.constant 1 : index
    %c0_364 = arith.constant 0 : index
    %415 = arith.index_cast %414 : i32 to index
    %c3_365 = arith.constant 3 : index
    %c0_366 = arith.constant 0 : index
    %416 = vector.load %arg2[%c0_362, %c1_363, %c0_364, %415, %c3_365, %c0_366] : memref<1x2x2x11x11x128xf32, #tpu.memory_space<vmem>>, vector<1x1x1x8x8x128xf32>
    %417 = vector.shape_cast %416 : vector<1x1x1x8x8x128xf32> to vector<1x8x8x128xf32>
    %c5_367 = arith.constant 5 : index
    %c6_368 = arith.constant 6 : index
    %c0_369 = arith.constant 0 : index
    %418 = vector.load %arg3[%c5_367, %c6_368, %c0_369] : memref<7x7x128xf32, #tpu.memory_space<vmem>>, vector<1x1x128xf32>
    %419 = vector.shape_cast %418 : vector<1x1x128xf32> to vector<128xf32>
    %420 = vector.shape_cast %419 : vector<128xf32> to vector<1x1x1x128xf32>
    %421 = vector.broadcast %420 : vector<1x1x1x128xf32> to vector<1x8x8x128xf32>
    %422 = arith.mulf %417, %421 : vector<1x8x8x128xf32>
    %423 = arith.addf %413, %422 : vector<1x8x8x128xf32>
    %c3_i32 = arith.constant 3 : i32
    %424 = arith.addi %2, %c3_i32 : i32
    %c0_370 = arith.constant 0 : index
    %c0_371 = arith.constant 0 : index
    %c0_372 = arith.constant 0 : index
    %425 = arith.index_cast %424 : i32 to index
    %c0_373 = arith.constant 0 : index
    %c0_374 = arith.constant 0 : index
    %426 = vector.load %arg2[%c0_370, %c0_371, %c0_372, %425, %c0_373, %c0_374] : memref<1x2x2x11x11x128xf32, #tpu.memory_space<vmem>>, vector<1x1x1x8x8x128xf32>
    %427 = vector.shape_cast %426 : vector<1x1x1x8x8x128xf32> to vector<1x8x8x128xf32>
    %c6_375 = arith.constant 6 : index
    %c0_376 = arith.constant 0 : index
    %c0_377 = arith.constant 0 : index
    %428 = vector.load %arg3[%c6_375, %c0_376, %c0_377] : memref<7x7x128xf32, #tpu.memory_space<vmem>>, vector<1x1x128xf32>
    %429 = vector.shape_cast %428 : vector<1x1x128xf32> to vector<128xf32>
    %430 = vector.shape_cast %429 : vector<128xf32> to vector<1x1x1x128xf32>
    %431 = vector.broadcast %430 : vector<1x1x1x128xf32> to vector<1x8x8x128xf32>
    %432 = arith.mulf %427, %431 : vector<1x8x8x128xf32>
    %433 = arith.addf %423, %432 : vector<1x8x8x128xf32>
    %c3_i32_378 = arith.constant 3 : i32
    %434 = arith.addi %2, %c3_i32_378 : i32
    %c0_379 = arith.constant 0 : index
    %c0_380 = arith.constant 0 : index
    %c1_381 = arith.constant 1 : index
    %435 = arith.index_cast %434 : i32 to index
    %c0_382 = arith.constant 0 : index
    %c0_383 = arith.constant 0 : index
    %436 = vector.load %arg2[%c0_379, %c0_380, %c1_381, %435, %c0_382, %c0_383] : memref<1x2x2x11x11x128xf32, #tpu.memory_space<vmem>>, vector<1x1x1x8x8x128xf32>
    %437 = vector.shape_cast %436 : vector<1x1x1x8x8x128xf32> to vector<1x8x8x128xf32>
    %c6_384 = arith.constant 6 : index
    %c1_385 = arith.constant 1 : index
    %c0_386 = arith.constant 0 : index
    %438 = vector.load %arg3[%c6_384, %c1_385, %c0_386] : memref<7x7x128xf32, #tpu.memory_space<vmem>>, vector<1x1x128xf32>
    %439 = vector.shape_cast %438 : vector<1x1x128xf32> to vector<128xf32>
    %440 = vector.shape_cast %439 : vector<128xf32> to vector<1x1x1x128xf32>
    %441 = vector.broadcast %440 : vector<1x1x1x128xf32> to vector<1x8x8x128xf32>
    %442 = arith.mulf %437, %441 : vector<1x8x8x128xf32>
    %443 = arith.addf %433, %442 : vector<1x8x8x128xf32>
    %c3_i32_387 = arith.constant 3 : i32
    %444 = arith.addi %2, %c3_i32_387 : i32
    %c0_388 = arith.constant 0 : index
    %c0_389 = arith.constant 0 : index
    %c0_390 = arith.constant 0 : index
    %445 = arith.index_cast %444 : i32 to index
    %c1_391 = arith.constant 1 : index
    %c0_392 = arith.constant 0 : index
    %446 = vector.load %arg2[%c0_388, %c0_389, %c0_390, %445, %c1_391, %c0_392] : memref<1x2x2x11x11x128xf32, #tpu.memory_space<vmem>>, vector<1x1x1x8x8x128xf32>
    %447 = vector.shape_cast %446 : vector<1x1x1x8x8x128xf32> to vector<1x8x8x128xf32>
    %c6_393 = arith.constant 6 : index
    %c2_394 = arith.constant 2 : index
    %c0_395 = arith.constant 0 : index
    %448 = vector.load %arg3[%c6_393, %c2_394, %c0_395] : memref<7x7x128xf32, #tpu.memory_space<vmem>>, vector<1x1x128xf32>
    %449 = vector.shape_cast %448 : vector<1x1x128xf32> to vector<128xf32>
    %450 = vector.shape_cast %449 : vector<128xf32> to vector<1x1x1x128xf32>
    %451 = vector.broadcast %450 : vector<1x1x1x128xf32> to vector<1x8x8x128xf32>
    %452 = arith.mulf %447, %451 : vector<1x8x8x128xf32>
    %453 = arith.addf %443, %452 : vector<1x8x8x128xf32>
    %c3_i32_396 = arith.constant 3 : i32
    %454 = arith.addi %2, %c3_i32_396 : i32
    %c0_397 = arith.constant 0 : index
    %c0_398 = arith.constant 0 : index
    %c1_399 = arith.constant 1 : index
    %455 = arith.index_cast %454 : i32 to index
    %c1_400 = arith.constant 1 : index
    %c0_401 = arith.constant 0 : index
    %456 = vector.load %arg2[%c0_397, %c0_398, %c1_399, %455, %c1_400, %c0_401] : memref<1x2x2x11x11x128xf32, #tpu.memory_space<vmem>>, vector<1x1x1x8x8x128xf32>
    %457 = vector.shape_cast %456 : vector<1x1x1x8x8x128xf32> to vector<1x8x8x128xf32>
    %c6_402 = arith.constant 6 : index
    %c3_403 = arith.constant 3 : index
    %c0_404 = arith.constant 0 : index
    %458 = vector.load %arg3[%c6_402, %c3_403, %c0_404] : memref<7x7x128xf32, #tpu.memory_space<vmem>>, vector<1x1x128xf32>
    %459 = vector.shape_cast %458 : vector<1x1x128xf32> to vector<128xf32>
    %460 = vector.shape_cast %459 : vector<128xf32> to vector<1x1x1x128xf32>
    %461 = vector.broadcast %460 : vector<1x1x1x128xf32> to vector<1x8x8x128xf32>
    %462 = arith.mulf %457, %461 : vector<1x8x8x128xf32>
    %463 = arith.addf %453, %462 : vector<1x8x8x128xf32>
    %c3_i32_405 = arith.constant 3 : i32
    %464 = arith.addi %2, %c3_i32_405 : i32
    %c0_406 = arith.constant 0 : index
    %c0_407 = arith.constant 0 : index
    %c0_408 = arith.constant 0 : index
    %465 = arith.index_cast %464 : i32 to index
    %c2_409 = arith.constant 2 : index
    %c0_410 = arith.constant 0 : index
    %466 = vector.load %arg2[%c0_406, %c0_407, %c0_408, %465, %c2_409, %c0_410] : memref<1x2x2x11x11x128xf32, #tpu.memory_space<vmem>>, vector<1x1x1x8x8x128xf32>
    %467 = vector.shape_cast %466 : vector<1x1x1x8x8x128xf32> to vector<1x8x8x128xf32>
    %c6_411 = arith.constant 6 : index
    %c4_412 = arith.constant 4 : index
    %c0_413 = arith.constant 0 : index
    %468 = vector.load %arg3[%c6_411, %c4_412, %c0_413] : memref<7x7x128xf32, #tpu.memory_space<vmem>>, vector<1x1x128xf32>
    %469 = vector.shape_cast %468 : vector<1x1x128xf32> to vector<128xf32>
    %470 = vector.shape_cast %469 : vector<128xf32> to vector<1x1x1x128xf32>
    %471 = vector.broadcast %470 : vector<1x1x1x128xf32> to vector<1x8x8x128xf32>
    %472 = arith.mulf %467, %471 : vector<1x8x8x128xf32>
    %473 = arith.addf %463, %472 : vector<1x8x8x128xf32>
    %c3_i32_414 = arith.constant 3 : i32
    %474 = arith.addi %2, %c3_i32_414 : i32
    %c0_415 = arith.constant 0 : index
    %c0_416 = arith.constant 0 : index
    %c1_417 = arith.constant 1 : index
    %475 = arith.index_cast %474 : i32 to index
    %c2_418 = arith.constant 2 : index
    %c0_419 = arith.constant 0 : index
    %476 = vector.load %arg2[%c0_415, %c0_416, %c1_417, %475, %c2_418, %c0_419] : memref<1x2x2x11x11x128xf32, #tpu.memory_space<vmem>>, vector<1x1x1x8x8x128xf32>
    %477 = vector.shape_cast %476 : vector<1x1x1x8x8x128xf32> to vector<1x8x8x128xf32>
    %c6_420 = arith.constant 6 : index
    %c5_421 = arith.constant 5 : index
    %c0_422 = arith.constant 0 : index
    %478 = vector.load %arg3[%c6_420, %c5_421, %c0_422] : memref<7x7x128xf32, #tpu.memory_space<vmem>>, vector<1x1x128xf32>
    %479 = vector.shape_cast %478 : vector<1x1x128xf32> to vector<128xf32>
    %480 = vector.shape_cast %479 : vector<128xf32> to vector<1x1x1x128xf32>
    %481 = vector.broadcast %480 : vector<1x1x1x128xf32> to vector<1x8x8x128xf32>
    %482 = arith.mulf %477, %481 : vector<1x8x8x128xf32>
    %483 = arith.addf %473, %482 : vector<1x8x8x128xf32>
    %c3_i32_423 = arith.constant 3 : i32
    %484 = arith.addi %2, %c3_i32_423 : i32
    %c0_424 = arith.constant 0 : index
    %c0_425 = arith.constant 0 : index
    %c0_426 = arith.constant 0 : index
    %485 = arith.index_cast %484 : i32 to index
    %c3_427 = arith.constant 3 : index
    %c0_428 = arith.constant 0 : index
    %486 = vector.load %arg2[%c0_424, %c0_425, %c0_426, %485, %c3_427, %c0_428] : memref<1x2x2x11x11x128xf32, #tpu.memory_space<vmem>>, vector<1x1x1x8x8x128xf32>
    %487 = vector.shape_cast %486 : vector<1x1x1x8x8x128xf32> to vector<1x8x8x128xf32>
    %c6_429 = arith.constant 6 : index
    %c6_430 = arith.constant 6 : index
    %c0_431 = arith.constant 0 : index
    %488 = vector.load %arg3[%c6_429, %c6_430, %c0_431] : memref<7x7x128xf32, #tpu.memory_space<vmem>>, vector<1x1x128xf32>
    %489 = vector.shape_cast %488 : vector<1x1x128xf32> to vector<128xf32>
    %490 = vector.shape_cast %489 : vector<128xf32> to vector<1x1x1x128xf32>
    %491 = vector.broadcast %490 : vector<1x1x1x128xf32> to vector<1x8x8x128xf32>
    %492 = arith.mulf %487, %491 : vector<1x8x8x128xf32>
    %493 = arith.addf %483, %492 : vector<1x8x8x128xf32>
    %c0_432 = arith.constant 0 : index
    %494 = arith.index_cast %2 : i32 to index
    %c0_433 = arith.constant 0 : index
    %c0_434 = arith.constant 0 : index
    %495 = vector.load %arg4[%c0_432, %494, %c0_433, %c0_434] : memref<1x8x8x128xf32, #tpu.memory_space<vmem>>, vector<1x8x8x128xf32>
    tpu.vector_store %arg4[%c0_432, %494, %c0_433, %c0_434], %493 {strides = array<i32>} : memref<1x8x8x128xf32, #tpu.memory_space<vmem>>, vector<1x8x8x128xf32>,
    %cst_435 = arith.constant dense<0.000000e+00> : vector<1x128xf32>
    %496 = vector.multi_reduction <add>, %493, %cst_435 [1, 2] : vector<1x8x8x128xf32> to vector<1x128xf32>
    %497 = arith.mulf %493, %493 : vector<1x8x8x128xf32>
    %cst_436 = arith.constant dense<0.000000e+00> : vector<1x128xf32>
    %498 = vector.multi_reduction <add>, %497, %cst_436 [1, 2] : vector<1x8x8x128xf32> to vector<1x128xf32>
    %499 = arith.addf %0, %496 : vector<1x128xf32>
    %500 = arith.addf %0, %498 : vector<1x128xf32>
    %c1_i32_437 = arith.constant 1 : i32
    %501 = tpu.concatenate %499, %500 in 0 : vector<1x128xf32>, vector<1x128xf32> -> vector<2x128xf32>
    %502 = vector.shape_cast %501 : vector<2x128xf32> to vector<1x2x128xf32>
    %c0_438 = arith.constant 0 : index
    %c0_439 = arith.constant 0 : index
    %c0_440 = arith.constant 0 : index
    %503 = vector.load %arg5[%c0_438, %c0_439, %c0_440] : memref<1x2x128xf32, #tpu.memory_space<vmem>>, vector<1x2x128xf32>
    tpu.vector_store %arg5[%c0_438, %c0_439, %c0_440], %502 {strides = array<i32>} : memref<1x2x128xf32, #tpu.memory_space<vmem>>, vector<1x2x128xf32>,
    return
  }
  func.func @transform_0(%arg0: i32, %arg1: i32) -> (i32, i32, i32, i32, i32, i32) {
    %c0_i32 = arith.constant 0 : i32
    %c0_i32_0 = arith.constant 0 : i32
    %c0_i32_1 = arith.constant 0 : i32
    %c0_i32_2 = arith.constant 0 : i32
    %c0_i32_3 = arith.constant 0 : i32
    return %arg1, %c0_i32, %c0_i32_0, %c0_i32_1, %c0_i32_2, %arg0 : i32, i32, i32, i32, i32, i32
  }
  func.func @transform_1(%arg0: i32, %arg1: i32) -> (i32, i32, i32) {
    %c0_i32 = arith.constant 0 : i32
    %c0_i32_0 = arith.constant 0 : i32
    %c0_i32_1 = arith.constant 0 : i32
    return %c0_i32, %c0_i32_0, %arg0 : i32, i32, i32
  }
  func.func @transform_2(%arg0: i32, %arg1: i32) -> (i32, i32, i32, i32) {
    %c0_i32 = arith.constant 0 : i32
    %c0_i32_0 = arith.constant 0 : i32
    %c0_i32_1 = arith.constant 0 : i32
    return %arg1, %c0_i32, %c0_i32_0, %arg0 : i32, i32, i32, i32
  }
  func.func @transform_3(%arg0: i32, %arg1: i32) -> (i32, i32, i32) {
    %c0_i32 = arith.constant 0 : i32
    %c0_i32_0 = arith.constant 0 : i32
    return %arg1, %c0_i32, %arg0 : i32, i32, i32
  }
}

</mosaic_0001>

<llo_original>
// kernel: sepconv_bn.2
$region0: #{sepconv_bn.2}
  #allocation0 [shape = 'u32[]', space=smem, size = 0x4, offset = 0x4, fixed_abs, tag = 'smem constant byte address 0x4 - core index']
  #allocation1 [shape = 'u32[144,128]{1,0:T(1,128)}', space=vmem, size = 0x12000, scoped, tag = 'internal scratch']
  #allocation2 [shape = 'u32[2048]{0}', space=vmem, size = 0x2000, scoped, tag = 'scoped memory for sepconv_bn.2']
  #allocation3 [shape = 'u32[2048]{0}', space=vmem, size = 0x2000, scoped, tag = 'scoped memory for sepconv_bn.2']
  #allocation4 [shape = 'u32[2048]{0}', space=vmem, size = 0x2000, scoped, tag = 'scoped memory for sepconv_bn.2']
  #allocation5 [shape = 'u32[2048]{0}', space=vmem, size = 0x2000, scoped, tag = 'scoped memory for sepconv_bn.2']
  #allocation6 [shape = 'u32[2048]{0}', space=vmem, size = 0x2000, scoped, tag = 'scoped memory for sepconv_bn.2']
  %s0 = inlined_call_operand.vmem [shape: f32[2,11,2,11,2,128], index: 0, kind: input, shape index: {}]
  %s1 = inlined_call_operand.vmem [shape: f32[7,7,8], index: 1, kind: input, shape index: {}]
  %s2 = inlined_call_operand.<no memory space> [shape: f32[], index: 2, kind: input, shape index: {}]
  %s3 = inlined_call_operand.vmem [shape: f32[2,8,8,128], index: 3, kind: output, shape index: {0}]
  %s4 = inlined_call_operand.vmem [shape: f32[2,2,128], index: 4, kind: output, shape index: {1}]
  %5 = xla_tuple %s3, %s4
  %s6 = sld [smem:[#allocation0]]
  $region49: #{sepconv_bn.2} parent=0
    _
  %s8 = ssub.s32 1, %s6
  %s9 = scalar_select 0, %s8, %s6
  %v10 = vstv %s2
  loop: start=0, step=1, limit=4
  $region2: #{sepconv_bn.2} parent=0 // loop_pre_header
    _
  $region3: #{sepconv_bn.2} parent=0 // loop_header
    %s12 = sphi 0, %s16
    %p13 = scmp.ge.s32.totalorder %s12, 4
    %s19 = sphi 0, %s31
    %s20 = sphi 0, %s27
    %s21 = sphi 0, %s19
    %s22 = sphi 0, %s20
    %s23 = sphi 0, %s21
    %s24 = sphi 0, %s22
    %s36 = sphi 0, %s38
    %s39 = sphi 0, %s36
    %s40 = sphi 0, %s39
    %s56 = sphi 0, %s40
    %s62 = sphi 0, %s64
    %s65 = sphi 0, %s62
    %s66 = sphi 0, %s65
    %s82 = sphi 0, %s66
    %s90 = sphi 0, %s92
    %s93 = sphi 0, %s90
    %s94 = sphi 0, %s93
    %s110 = sphi 0, %s94
    %s118 = sphi 0, %s120
    %s121 = sphi 0, %s118
    %s122 = sphi 0, %s121
    %s138 = sphi 0, %s122
  $region4: #{sepconv_bn.2} parent=0 // loop_header_branch
    %15 = sbr.rel (%p13) target = $region8
  $region5: #{sepconv_bn.2} parent=0 // loop_body
    %s17 = ssub.s32 %s12, 1
    %s18 = ssub.s32 %s12, 2
    %s25 = sadd.s32 1, %s20
    %p26 = scmp.ge.s32.totalorder %s25, 2
    %s27 = scalar_select %p26, 0, %s25
    %s28 = sadd.s32 1, %s19
    %s29 = scalar_select %p26, %s28, %s19
    %p30 = scmp.ge.s32.totalorder %s29, 1
    %s31 = scalar_select %p30, 0, %s29
    %s32 = ssub.s32 %s20, %s27
    %s33 = ssub.s32 %s19, %s31
    %s34 = sor.u32 %s32, %s33
    %p35 = scmp.eq.s32.totalorder %s34, 0
    %s37 = sadd.s32 %s36, 1
    %s38 = scalar_select %p35, %s36, %s37
    %p41 = pneg %p35
    %p42 = scmp.eq.s32.totalorder %s12, 1
    %p43 = por %p41, %p42
    %p44 = scmp.ne.s32.totalorder %s36, %s39
    %p45 = scmp.eq.s32.totalorder %s12, 0
    %p46 = por %p44, %p45
    %p47 = scmp.ne.s32.totalorder %s36, %s39
    %p48 = scmp.eq.s32.totalorder %s17, 1
    %p49 = por %p47, %p48
    %p50 = scmp.ne.s32.totalorder %s39, %s40
    %p51 = scmp.eq.s32.totalorder %s17, 0
    %p52 = por %p50, %p51
    %p53 = scmp.ne.s32.totalorder %s39, %s40
    %p54 = scmp.eq.s32.totalorder %s18, 1
    %p55 = por %p53, %p54
    %p57 = scmp.ne.s32.totalorder %s40, %s56
    %p58 = scmp.eq.s32.totalorder %s18, 0
    %p59 = por %p57, %p58
    %s60 = ssub.s32 %s19, %s31
    %p61 = scmp.eq.s32.totalorder %s60, 0
    %s63 = sadd.s32 %s62, 1
    %s64 = scalar_select %p61, %s62, %s63
    %p67 = pneg %p61
    %p68 = scmp.eq.s32.totalorder %s12, 1
    %p69 = por %p67, %p68
    %p70 = scmp.ne.s32.totalorder %s62, %s65
    %p71 = scmp.eq.s32.totalorder %s12, 0
    %p72 = por %p70, %p71
    %p73 = scmp.ne.s32.totalorder %s62, %s65
    %p74 = scmp.eq.s32.totalorder %s17, 1
    %p75 = por %p73, %p74
    %p76 = scmp.ne.s32.totalorder %s65, %s66
    %p77 = scmp.eq.s32.totalorder %s17, 0
    %p78 = por %p76, %p77
    %p79 = scmp.ne.s32.totalorder %s65, %s66
    %p80 = scmp.eq.s32.totalorder %s18, 1
    %p81 = por %p79, %p80
    %p83 = scmp.ne.s32.totalorder %s66, %s82
    %p84 = scmp.eq.s32.totalorder %s18, 0
    %p85 = por %p83, %p84
    %s86 = ssub.s32 %s20, %s27
    %s87 = ssub.s32 %s19, %s31
    %s88 = sor.u32 %s86, %s87
    %p89 = scmp.eq.s32.totalorder %s88, 0
    %s91 = sadd.s32 %s90, 1
    %s92 = scalar_select %p89, %s90, %s91
    %p95 = pneg %p89
    %p96 = scmp.eq.s32.totalorder %s12, 1
    %p97 = por %p95, %p96
    %p98 = scmp.ne.s32.totalorder %s90, %s93
    %p99 = scmp.eq.s32.totalorder %s12, 0
    %p100 = por %p98, %p99
    %p101 = scmp.ne.s32.totalorder %s90, %s93
    %p102 = scmp.eq.s32.totalorder %s17, 1
    %p103 = por %p101, %p102
    %p104 = scmp.ne.s32.totalorder %s93, %s94
    %p105 = scmp.eq.s32.totalorder %s17, 0
    %p106 = por %p104, %p105
    %p107 = scmp.ne.s32.totalorder %s93, %s94
    %p108 = scmp.eq.s32.totalorder %s18, 1
    %p109 = por %p107, %p108
    %p111 = scmp.ne.s32.totalorder %s94, %s110
    %p112 = scmp.eq.s32.totalorder %s18, 0
    %p113 = por %p111, %p112
    %s114 = ssub.s32 %s20, %s27
    %s115 = ssub.s32 %s19, %s31
    %s116 = sor.u32 %s114, %s115
    %p117 = scmp.eq.s32.totalorder %s116, 0
    %s119 = sadd.s32 %s118, 1
    %s120 = scalar_select %p117, %s118, %s119
    %p123 = pneg %p117
    %p124 = scmp.eq.s32.totalorder %s12, 1
    %p125 = por %p123, %p124
    %p126 = scmp.ne.s32.totalorder %s118, %s121
    %p127 = scmp.eq.s32.totalorder %s12, 0
    %p128 = por %p126, %p127
    %p129 = scmp.ne.s32.totalorder %s118, %s121
    %p130 = scmp.eq.s32.totalorder %s17, 1
    %p131 = por %p129, %p130
    %p132 = scmp.ne.s32.totalorder %s121, %s122
    %p133 = scmp.eq.s32.totalorder %s17, 0
    %p134 = por %p132, %p133
    %p135 = scmp.ne.s32.totalorder %s121, %s122
    %p136 = scmp.eq.s32.totalorder %s18, 1
    %p137 = por %p135, %p136
    %p139 = scmp.ne.s32.totalorder %s122, %s138
    %p140 = scmp.eq.s32.totalorder %s18, 0
    %p141 = por %p139, %p140
    %p142 = scmp.le.s32.totalorder 1, %s12
    %p143 = scmp.lt.s32.totalorder %s12, 3
    %p144 = pnand %p142, %p143
    %p145 = pneg %p144
    // Predicated region
    $region9: #{sepconv_bn.2} parent=5 // pred_check
      _
    $region10: #{sepconv_bn.2} parent=5 // pred_check_branch
      %147 = sbr.rel (%p144) target = $region12
    $region11: #{sepconv_bn.2} parent=5 // pred_region
      %s148 = ssub.s32 %s12, 1
      // Predicated region
      $region13: #{sepconv_bn.2} parent=11 // pred_check
        %p149 = pneg %p78
      $region14: #{sepconv_bn.2} parent=11 // pred_check_branch
        %151 = sbr.rel (%p149) target = $region16
      $region15: #{sepconv_bn.2} parent=11 // pred_region
        %s152 = ssub.s32 1, %s21
        %s153 = smul.u32 896, %s152
        %p154 = scmp.lt.s32.totalorder %s21, 0
        %s155 = scalar_select %p154, %s21, 0
        %s156 = smul.addr %s155, 8
        %s157 = scalar_lea.vmem %s1, %s156
        %s158 = ssub.s32 1, %s21
        %s159 = smul.u32 896, %s158
      $region16: #{sepconv_bn.2} parent=11 // pred_fallthru
        _
    $region12: #{sepconv_bn.2} parent=5 // pred_fallthru
      _
    %p160 = scmp.lt.s32.totalorder %s12, 2
    // Predicated region
    $region17: #{sepconv_bn.2} parent=5 // pred_check
      %p161 = pneg %p160
    $region18: #{sepconv_bn.2} parent=5 // pred_check_branch
      %163 = sbr.rel (%p161) target = $region20
    $region19: #{sepconv_bn.2} parent=5 // pred_region
      // Predicated region
      $region21: #{sepconv_bn.2} parent=19 // pred_check
        %p164 = pneg %p46
      $region22: #{sepconv_bn.2} parent=19 // pred_check_branch
        %166 = sbr.rel (%p164) target = $region24
      $region23: #{sepconv_bn.2} parent=19 // pred_region
        %p167 = scmp.lt.s32.totalorder %s20, 1
        %s168 = scalar_select %p167, %s20, 1
        %p169 = scmp.lt.s32.totalorder %s19, 0
        %s170 = scalar_select %p169, %s19, 0
        %s171 = smul.addr %s168, 88
        %s172 = sadd.s32 %s170, %s171
        %s173 = smul.addr %s172, 8
        %s174 = scalar_lea.vmem %s0, %s173
      $region24: #{sepconv_bn.2} parent=19 // pred_fallthru
        _
    $region20: #{sepconv_bn.2} parent=5 // pred_fallthru
      _
    %p175 = scmp.le.s32.totalorder 1, %s12
    %p176 = scmp.lt.s32.totalorder %s12, 3
    %p177 = pnand %p175, %p176
    %p178 = pneg %p177
    // Predicated region
    $region25: #{sepconv_bn.2} parent=5 // pred_check
      _
    $region26: #{sepconv_bn.2} parent=5 // pred_check_branch
      %180 = sbr.rel (%p177) target = $region28
    $region27: #{sepconv_bn.2} parent=5 // pred_region
      #allocation7 [shape = 'u8[360448]{0}', space=vmem, size = 0x58000, dematerialized = true, scoped, tag = 'FusionAdapter Buffer %fusion.1 = f32[2,2,2,11,11,128]{5,4,3,2,1,0:T(8,128)} fusion(%param_0.10), kind=kLoop, calls=%fused_computation.1.clone, metadata={op_name="jit(sepconv_bn)/transpose" stack_frame_id=12}']
      #allocation8 [shape = 'u8[28672]{0}', space=vmem, size = 0x7000, dematerialized = true, scoped, tag = 'FusionAdapter Buffer %fusion.2 = f32[7,7,128]{2,1,0:T(8,128)} fusion(%param_1.7, %param_2.4), kind=kLoop, calls=%fused_computation.4.clone, metadata={op_name="jit(sepconv_bn)/jit(_pad)/pad" stack_frame_id=15}']
      %s181 = ssub.s32 %s12, 1
      %p182 = scmp.lt.s32.totalorder %s22, 1
      %s183 = scalar_select %p182, %s22, 1
      %p184 = scmp.lt.s32.totalorder %s21, 0
      %s185 = scalar_select %p184, %s21, 0
      %s186 = smul.addr %s183, 88
      %s187 = sadd.s32 %s185, %s186
      %s188 = smul.addr %s187, 8
      %s189 = scalar_lea.vmem %s0, %s188
      %p190 = pneg %p52
      %p191 = pneg %p49
      %s192 = ssub.s32 1, %s21
      %s193 = smul.u32 896, %s192
      %p194 = scmp.lt.s32.totalorder %s21, 0
      %s195 = scalar_select %p194, %s21, 0
      %s196 = smul.addr %s195, 8
      %s197 = scalar_lea.vmem %s1, %s196
      %p198 = pneg %p78
      %p199 = pneg %p75
      %p200 = pneg %p106
      %p201 = pneg %p103
      %p202 = scmp.lt.s32.totalorder %s22, 1
      %s203 = scalar_select %p202, %s22, 1
      %p204 = scmp.lt.s32.totalorder %s21, 0
      %s205 = scalar_select %p204, %s21, 0
      %s206 = smul.addr %s203, 8
      %s207 = sadd.s32 %s205, %s206
      %s208 = smul.addr %s207, 8
      %s209 = scalar_lea.vmem %s3, %s208
      %p210 = pneg %p134
      %p211 = pneg %p131
      %p212 = scmp.lt.s32.totalorder %s22, 1
      %s213 = scalar_select %p212, %s22, 1
      %p214 = scmp.lt.s32.totalorder %s21, 0
      %s215 = scalar_select %p214, %s21, 0
      %s216 = sadd.s32 %s215, %s213
      %s217 = smul.addr %s216, 2
      %s218 = scalar_lea.vmem %s4, %s217
      %p219 = scmp.lt.s32.totalorder %s22, 1
      %s220 = scalar_select %p219, %s22, 1
      %p221 = scmp.lt.s32.totalorder %s21, 0
      %s222 = scalar_select %p221, %s21, 0
      %s223 = smul.addr %s220, 88
      %s224 = sadd.s32 %s222, %s223
      %s225 = smul.addr %s224, 8
      %s226 = scalar_lea.vmem %s0, %s225
      %s227 = ssub.s32 1, %s21
      %s228 = smul.u32 896, %s227
      %p229 = scmp.lt.s32.totalorder %s21, 0
      %s230 = scalar_select %p229, %s21, 0
      %s231 = smul.addr %s230, 8
      %s232 = scalar_lea.vmem %s1, %s231
      %s233 = ssub.s32 1, %s21
      %s234 = smul.u32 896, %s233
      %p235 = scmp.lt.s32.totalorder %s22, 1
      %s236 = scalar_select %p235, %s22, 1
      %p237 = scmp.lt.s32.totalorder %s21, 0
      %s238 = scalar_select %p237, %s21, 0
      %s239 = smul.addr %s236, 8
      %s240 = sadd.s32 %s238, %s239
      %s241 = smul.addr %s240, 8
      %s242 = scalar_lea.vmem %s3, %s241
      %p243 = scmp.lt.s32.totalorder %s22, 1
      %s244 = scalar_select %p243, %s22, 1
      %p245 = scmp.lt.s32.totalorder %s21, 0
      %s246 = scalar_select %p245, %s21, 0
      %s247 = sadd.s32 %s246, %s244
      %s248 = smul.addr %s247, 2
      %s249 = scalar_lea.vmem %s4, %s248
      %v250 = vld [vmem:[%s226] sm:$0xff]
      %252 = vst [vmem:[#allocation7] sm:$0xff] %v250
      %s253 = scalar_lea.vmem %s226, 8
      %v254 = vld [vmem:[%s253] sm:$0xff]
      %s255 = scalar_lea.vmem [#allocation7], 8
      %257 = vst [vmem:[%s255] sm:$0xff] %v254
      %s258 = scalar_lea.vmem %s226, 16
      %v259 = vld [vmem:[%s258] sm:$0xff]
      %s260 = scalar_lea.vmem [#allocation7], 16
      %262 = vst [vmem:[%s260] sm:$0xff] %v259
      %s263 = scalar_lea.vmem %s226, 24
      %v264 = vld [vmem:[%s263] sm:$0xff]
      %s265 = scalar_lea.vmem [#allocation7], 24
      %267 = vst [vmem:[%s265] sm:$0xff] %v264
      %s268 = scalar_lea.vmem %s226, 32
      %v269 = vld [vmem:[%s268] sm:$0xff]
      %s270 = scalar_lea.vmem [#allocation7], 32
      %272 = vst [vmem:[%s270] sm:$0xff] %v269
      %s273 = scalar_lea.vmem %s226, 40
      %v274 = vld [vmem:[%s273] sm:$0xff]
      %s275 = scalar_lea.vmem [#allocation7], 40
      %277 = vst [vmem:[%s275] sm:$0xff] %v274
      %s278 = scalar_lea.vmem %s226, 48
      %v279 = vld [vmem:[%s278] sm:$0xff]
      %s280 = scalar_lea.vmem [#allocation7], 48
      %282 = vst [vmem:[%s280] sm:$0xff] %v279
      %s283 = scalar_lea.vmem %s226, 56
      %v284 = vld [vmem:[%s283] sm:$0xff]
      %s285 = scalar_lea.vmem [#allocation7], 56
      %287 = vst [vmem:[%s285] sm:$0xff] %v284
      %s288 = scalar_lea.vmem %s226, 64
      %v289 = vld [vmem:[%s288] sm:$0xff]
      %s290 = scalar_lea.vmem [#allocation7], 64
      %292 = vst [vmem:[%s290] sm:$0xff] %v289
      %s293 = scalar_lea.vmem %s226, 72
      %v294 = vld [vmem:[%s293] sm:$0xff]
      %s295 = scalar_lea.vmem [#allocation7], 72
      %297 = vst [vmem:[%s295] sm:$0xff] %v294
      %s298 = scalar_lea.vmem %s226, 80
      %v299 = vld [vmem:[%s298] sm:$0xff]
      %s300 = scalar_lea.vmem [#allocation7], 80
      %302 = vst [vmem:[%s300] sm:$0xff] %v299
      %s303 = scalar_lea.vmem %s226, 88
      %v304 = vld [vmem:[%s303] sm:$0xff]
      %s305 = scalar_lea.vmem [#allocation7], 88
      %307 = vst [vmem:[%s305] sm:$0xff] %v304
      %s308 = scalar_lea.vmem %s226, 96
      %v309 = vld [vmem:[%s308] sm:$0xff]
      %s310 = scalar_lea.vmem [#allocation7], 96
      %312 = vst [vmem:[%s310] sm:$0xff] %v309
      %s313 = scalar_lea.vmem %s226, 104
      %v314 = vld [vmem:[%s313] sm:$0xff]
      %s315 = scalar_lea.vmem [#allocation7], 104
      %317 = vst [vmem:[%s315] sm:$0xff] %v314
      %s318 = scalar_lea.vmem %s226, 112
      %v319 = vld [vmem:[%s318] sm:$0xff]
      %s320 = scalar_lea.vmem [#allocation7], 112
      %322 = vst [vmem:[%s320] sm:$0xff] %v319
      %s323 = scalar_lea.vmem %s226, 120
      %v324 = vld [vmem:[%s323] sm:$0xff]
      %s325 = scalar_lea.vmem [#allocation7], 120
      %327 = vst [vmem:[%s325] sm:$0xff] %v324
      %s328 = scalar_lea.vmem %s226, 128
      %v329 = vld [vmem:[%s328] sm:$0xff]
      %s330 = scalar_lea.vmem [#allocation7], 128
      %332 = vst [vmem:[%s330] sm:$0xff] %v329
      %s333 = scalar_lea.vmem %s226, 136
      %v334 = vld [vmem:[%s333] sm:$0xff]
      %s335 = scalar_lea.vmem [#allocation7], 136
      %337 = vst [vmem:[%s335] sm:$0xff] %v334
      %s338 = scalar_lea.vmem %s226, 144
      %v339 = vld [vmem:[%s338] sm:$0xff]
      %s340 = scalar_lea.vmem [#allocation7], 144
      %342 = vst [vmem:[%s340] sm:$0xff] %v339
      %s343 = scalar_lea.vmem %s226, 152
      %v344 = vld [vmem:[%s343] sm:$0xff]
      %s345 = scalar_lea.vmem [#allocation7], 152
      %347 = vst [vmem:[%s345] sm:$0xff] %v344
      %s348 = scalar_lea.vmem %s226, 160
      %v349 = vld [vmem:[%s348] sm:$0xff]
      %s350 = scalar_lea.vmem [#allocation7], 160
      %352 = vst [vmem:[%s350] sm:$0xff] %v349
      %s353 = scalar_lea.vmem %s226, 168
      %v354 = vld [vmem:[%s353] sm:$0xff]
      %s355 = scalar_lea.vmem [#allocation7], 168
      %357 = vst [vmem:[%s355] sm:$0xff] %v354
      %s358 = scalar_lea.vmem %s226, 176
      %v359 = vld [vmem:[%s358] sm:$0xff]
      %s360 = scalar_lea.vmem [#allocation7], 176
      %362 = vst [vmem:[%s360] sm:$0xff] %v359
      %s363 = scalar_lea.vmem %s226, 184
      %v364 = vld [vmem:[%s363] sm:$0xff]
      %s365 = scalar_lea.vmem [#allocation7], 184
      %367 = vst [vmem:[%s365] sm:$0xff] %v364
      %s368 = scalar_lea.vmem %s226, 192
      %v369 = vld [vmem:[%s368] sm:$0xff]
      %s370 = scalar_lea.vmem [#allocation7], 192
      %372 = vst [vmem:[%s370] sm:$0xff] %v369
      %s373 = scalar_lea.vmem %s226, 200
      %v374 = vld [vmem:[%s373] sm:$0xff]
      %s375 = scalar_lea.vmem [#allocation7], 200
      %377 = vst [vmem:[%s375] sm:$0xff] %v374
      %s378 = scalar_lea.vmem %s226, 208
      %v379 = vld [vmem:[%s378] sm:$0xff]
      %s380 = scalar_lea.vmem [#allocation7], 208
      %382 = vst [vmem:[%s380] sm:$0xff] %v379
      %s383 = scalar_lea.vmem %s226, 216
      %v384 = vld [vmem:[%s383] sm:$0xff]
      %s385 = scalar_lea.vmem [#allocation7], 216
      %387 = vst [vmem:[%s385] sm:$0xff] %v384
      %s388 = scalar_lea.vmem %s226, 224
      %v389 = vld [vmem:[%s388] sm:$0xff]
      %s390 = scalar_lea.vmem [#allocation7], 224
      %392 = vst [vmem:[%s390] sm:$0xff] %v389
      %s393 = scalar_lea.vmem %s226, 232
      %v394 = vld [vmem:[%s393] sm:$0xff]
      %s395 = scalar_lea.vmem [#allocation7], 232
      %397 = vst [vmem:[%s395] sm:$0xff] %v394
      %s398 = scalar_lea.vmem %s226, 240
      %v399 = vld [vmem:[%s398] sm:$0xff]
      %s400 = scalar_lea.vmem [#allocation7], 240
      %402 = vst [vmem:[%s400] sm:$0xff] %v399
      %s403 = scalar_lea.vmem %s226, 248
      %v404 = vld [vmem:[%s403] sm:$0xff]
      %s405 = scalar_lea.vmem [#allocation7], 248
      %407 = vst [vmem:[%s405] sm:$0xff] %v404
      %s408 = scalar_lea.vmem %s226, 256
      %v409 = vld [vmem:[%s408] sm:$0xff]
      %s410 = scalar_lea.vmem [#allocation7], 256
      %412 = vst [vmem:[%s410] sm:$0xff] %v409
      %s413 = scalar_lea.vmem %s226, 264
      %v414 = vld [vmem:[%s413] sm:$0xff]
      %s415 = scalar_lea.vmem [#allocation7], 264
      %417 = vst [vmem:[%s415] sm:$0xff] %v414
      %s418 = scalar_lea.vmem %s226, 272
      %v419 = vld [vmem:[%s418] sm:$0xff]
      %s420 = scalar_lea.vmem [#allocation7], 272
      %422 = vst [vmem:[%s420] sm:$0xff] %v419
      %s423 = scalar_lea.vmem %s226, 280
      %v424 = vld [vmem:[%s423] sm:$0xff]
      %s425 = scalar_lea.vmem [#allocation7], 280
      %427 = vst [vmem:[%s425] sm:$0xff] %v424
      %s428 = scalar_lea.vmem %s226, 288
      %v429 = vld [vmem:[%s428] sm:$0xff]
      %s430 = scalar_lea.vmem [#allocation7], 288
      %432 = vst [vmem:[%s430] sm:$0xff] %v429
      %s433 = scalar_lea.vmem %s226, 296
      %v434 = vld [vmem:[%s433] sm:$0xff]
      %s435 = scalar_lea.vmem [#allocation7], 296
      %437 = vst [vmem:[%s435] sm:$0xff] %v434
      %s438 = scalar_lea.vmem %s226, 304
      %v439 = vld [vmem:[%s438] sm:$0xff]
      %s440 = scalar_lea.vmem [#allocation7], 304
      %442 = vst [vmem:[%s440] sm:$0xff] %v439
      %s443 = scalar_lea.vmem %s226, 312
      %v444 = vld [vmem:[%s443] sm:$0xff]
      %s445 = scalar_lea.vmem [#allocation7], 312
      %447 = vst [vmem:[%s445] sm:$0xff] %v444
      %s448 = scalar_lea.vmem %s226, 320
      %v449 = vld [vmem:[%s448] sm:$0xff]
      %s450 = scalar_lea.vmem [#allocation7], 320
      %452 = vst [vmem:[%s450] sm:$0xff] %v449
      %s453 = scalar_lea.vmem %s226, 328
      %v454 = vld [vmem:[%s453] sm:$0xff]
      %s455 = scalar_lea.vmem [#allocation7], 328
      %457 = vst [vmem:[%s455] sm:$0xff] %v454
      %s458 = scalar_lea.vmem %s226, 336
      %v459 = vld [vmem:[%s458] sm:$0xff]
      %s460 = scalar_lea.vmem [#allocation7], 336
      %462 = vst [vmem:[%s460] sm:$0xff] %v459
      %s463 = scalar_lea.vmem %s226, 344
      %v464 = vld [vmem:[%s463] sm:$0xff]
      %s465 = scalar_lea.vmem [#allocation7], 344
      %467 = vst [vmem:[%s465] sm:$0xff] %v464
      %s468 = scalar_lea.vmem %s226, 352
      %v469 = vld [vmem:[%s468] sm:$0xff]
      %s470 = scalar_lea.vmem [#allocation7], 352
      %472 = vst [vmem:[%s470] sm:$0xff] %v469
      %s473 = scalar_lea.vmem %s226, 360
      %v474 = vld [vmem:[%s473] sm:$0xff]
      %s475 = scalar_lea.vmem [#allocation7], 360
      %477 = vst [vmem:[%s475] sm:$0xff] %v474
      %s478 = scalar_lea.vmem %s226, 368
      %v479 = vld [vmem:[%s478] sm:$0xff]
      %s480 = scalar_lea.vmem [#allocation7], 368
      %482 = vst [vmem:[%s480] sm:$0xff] %v479
      %s483 = scalar_lea.vmem %s226, 376
      %v484 = vld [vmem:[%s483] sm:$0xff]
      %s485 = scalar_lea.vmem [#allocation7], 376
      %487 = vst [vmem:[%s485] sm:$0xff] %v484
      %s488 = scalar_lea.vmem %s226, 384
      %v489 = vld [vmem:[%s488] sm:$0xff]
      %s490 = scalar_lea.vmem [#allocation7], 384
      %492 = vst [vmem:[%s490] sm:$0xff] %v489
      %s493 = scalar_lea.vmem %s226, 392
      %v494 = vld [vmem:[%s493] sm:$0xff]
      %s495 = scalar_lea.vmem [#allocation7], 392
      %497 = vst [vmem:[%s495] sm:$0xff] %v494
      %s498 = scalar_lea.vmem %s226, 400
      %v499 = vld [vmem:[%s498] sm:$0xff]
      %s500 = scalar_lea.vmem [#allocation7], 400
      %502 = vst [vmem:[%s500] sm:$0xff] %v499
      %s503 = scalar_lea.vmem %s226, 408
      %v504 = vld [vmem:[%s503] sm:$0xff]
      %s505 = scalar_lea.vmem [#allocation7], 408
      %507 = vst [vmem:[%s505] sm:$0xff] %v504
      %s508 = scalar_lea.vmem %s226, 416
      %v509 = vld [vmem:[%s508] sm:$0xff]
      %s510 = scalar_lea.vmem [#allocation7], 416
      %512 = vst [vmem:[%s510] sm:$0xff] %v509
      %s513 = scalar_lea.vmem %s226, 424
      %v514 = vld [vmem:[%s513] sm:$0xff]
      %s515 = scalar_lea.vmem [#allocation7], 424
      %517 = vst [vmem:[%s515] sm:$0xff] %v514
      %s518 = scalar_lea.vmem %s226, 432
      %v519 = vld [vmem:[%s518] sm:$0xff]
      %s520 = scalar_lea.vmem [#allocation7], 432
      %522 = vst [vmem:[%s520] sm:$0xff] %v519
      %s523 = scalar_lea.vmem %s226, 440
      %v524 = vld [vmem:[%s523] sm:$0xff]
      %s525 = scalar_lea.vmem [#allocation7], 440
      %527 = vst [vmem:[%s525] sm:$0xff] %v524
      %s528 = scalar_lea.vmem %s226, 448
      %v529 = vld [vmem:[%s528] sm:$0xff]
      %s530 = scalar_lea.vmem [#allocation7], 448
      %532 = vst [vmem:[%s530] sm:$0xff] %v529
      %s533 = scalar_lea.vmem %s226, 456
      %v534 = vld [vmem:[%s533] sm:$0xff]
      %s535 = scalar_lea.vmem [#allocation7], 456
      %537 = vst [vmem:[%s535] sm:$0xff] %v534
      %s538 = scalar_lea.vmem %s226, 464
      %v539 = vld [vmem:[%s538] sm:$0xff]
      %s540 = scalar_lea.vmem [#allocation7], 464
      %542 = vst [vmem:[%s540] sm:$0xff] %v539
      %s543 = scalar_lea.vmem %s226, 472
      %v544 = vld [vmem:[%s543] sm:$0xff]
      %s545 = scalar_lea.vmem [#allocation7], 472
      %547 = vst [vmem:[%s545] sm:$0xff] %v544
      %s548 = scalar_lea.vmem %s226, 480
      %v549 = vld [vmem:[%s548] sm:$0xff]
      %s550 = scalar_lea.vmem [#allocation7], 480
      %552 = vst [vmem:[%s550] sm:$0xff] %v549
      %s553 = scalar_lea.vmem %s226, 488
      %v554 = vld [vmem:[%s553] sm:$0xff]
      %s555 = scalar_lea.vmem [#allocation7], 488
      %557 = vst [vmem:[%s555] sm:$0xff] %v554
      %s558 = scalar_lea.vmem %s226, 496
      %v559 = vld [vmem:[%s558] sm:$0xff]
      %s560 = scalar_lea.vmem [#allocation7], 496
      %562 = vst [vmem:[%s560] sm:$0xff] %v559
      %s563 = scalar_lea.vmem %s226, 504
      %v564 = vld [vmem:[%s563] sm:$0xff]
      %s565 = scalar_lea.vmem [#allocation7], 504
      %567 = vst [vmem:[%s565] sm:$0xff] %v564
      %s568 = scalar_lea.vmem %s226, 512
      %v569 = vld [vmem:[%s568] sm:$0xff]
      %s570 = scalar_lea.vmem [#allocation7], 512
      %572 = vst [vmem:[%s570] sm:$0xff] %v569
      %s573 = scalar_lea.vmem %s226, 520
      %v574 = vld [vmem:[%s573] sm:$0xff]
      %s575 = scalar_lea.vmem [#allocation7], 520
      %577 = vst [vmem:[%s575] sm:$0xff] %v574
      %s578 = scalar_lea.vmem %s226, 528
      %v579 = vld [vmem:[%s578] sm:$0xff]
      %s580 = scalar_lea.vmem [#allocation7], 528
      %582 = vst [vmem:[%s580] sm:$0xff] %v579
      %s583 = scalar_lea.vmem %s226, 536
      %v584 = vld [vmem:[%s583] sm:$0xff]
      %s585 = scalar_lea.vmem [#allocation7], 536
      %587 = vst [vmem:[%s585] sm:$0xff] %v584
      %s588 = scalar_lea.vmem %s226, 544
      %v589 = vld [vmem:[%s588] sm:$0xff]
      %s590 = scalar_lea.vmem [#allocation7], 544
      %592 = vst [vmem:[%s590] sm:$0xff] %v589
      %s593 = scalar_lea.vmem %s226, 552
      %v594 = vld [vmem:[%s593] sm:$0xff]
      %s595 = scalar_lea.vmem [#allocation7], 552
      %597 = vst [vmem:[%s595] sm:$0xff] %v594
      %s598 = scalar_lea.vmem %s226, 560
      %v599 = vld [vmem:[%s598] sm:$0xff]
      %s600 = scalar_lea.vmem [#allocation7], 560
      %602 = vst [vmem:[%s600] sm:$0xff] %v599
      %s603 = scalar_lea.vmem %s226, 568
      %v604 = vld [vmem:[%s603] sm:$0xff]
      %s605 = scalar_lea.vmem [#allocation7], 568
      %607 = vst [vmem:[%s605] sm:$0xff] %v604
      %s608 = scalar_lea.vmem %s226, 576
      %v609 = vld [vmem:[%s608] sm:$0xff]
      %s610 = scalar_lea.vmem [#allocation7], 576
      %612 = vst [vmem:[%s610] sm:$0xff] %v609
      %s613 = scalar_lea.vmem %s226, 584
      %v614 = vld [vmem:[%s613] sm:$0xff]
      %s615 = scalar_lea.vmem [#allocation7], 584
      %617 = vst [vmem:[%s615] sm:$0xff] %v614
      %s618 = scalar_lea.vmem %s226, 592
      %v619 = vld [vmem:[%s618] sm:$0xff]
      %s620 = scalar_lea.vmem [#allocation7], 592
      %622 = vst [vmem:[%s620] sm:$0xff] %v619
      %s623 = scalar_lea.vmem %s226, 600
      %v624 = vld [vmem:[%s623] sm:$0xff]
      %s625 = scalar_lea.vmem [#allocation7], 600
      %627 = vst [vmem:[%s625] sm:$0xff] %v624
      %s628 = scalar_lea.vmem %s226, 608
      %v629 = vld [vmem:[%s628] sm:$0xff]
      %s630 = scalar_lea.vmem [#allocation7], 608
      %632 = vst [vmem:[%s630] sm:$0xff] %v629
      %s633 = scalar_lea.vmem %s226, 616
      %v634 = vld [vmem:[%s633] sm:$0xff]
      %s635 = scalar_lea.vmem [#allocation7], 616
      %637 = vst [vmem:[%s635] sm:$0xff] %v634
      %s638 = scalar_lea.vmem %s226, 624
      %v639 = vld [vmem:[%s638] sm:$0xff]
      %s640 = scalar_lea.vmem [#allocation7], 624
      %642 = vst [vmem:[%s640] sm:$0xff] %v639
      %s643 = scalar_lea.vmem %s226, 632
      %v644 = vld [vmem:[%s643] sm:$0xff]
      %s645 = scalar_lea.vmem [#allocation7], 632
      %647 = vst [vmem:[%s645] sm:$0xff] %v644
      %s648 = scalar_lea.vmem %s226, 640
      %v649 = vld [vmem:[%s648] sm:$0xff]
      %s650 = scalar_lea.vmem [#allocation7], 640
      %652 = vst [vmem:[%s650] sm:$0xff] %v649
      %s653 = scalar_lea.vmem %s226, 648
      %v654 = vld [vmem:[%s653] sm:$0xff]
      %s655 = scalar_lea.vmem [#allocation7], 648
      %657 = vst [vmem:[%s655] sm:$0xff] %v654
      %s658 = scalar_lea.vmem %s226, 656
      %v659 = vld [vmem:[%s658] sm:$0xff]
      %s660 = scalar_lea.vmem [#allocation7], 656
      %662 = vst [vmem:[%s660] sm:$0xff] %v659
      %s663 = scalar_lea.vmem %s226, 664
      %v664 = vld [vmem:[%s663] sm:$0xff]
      %s665 = scalar_lea.vmem [#allocation7], 664
      %667 = vst [vmem:[%s665] sm:$0xff] %v664
      %s668 = scalar_lea.vmem %s226, 672
      %v669 = vld [vmem:[%s668] sm:$0xff]
      %s670 = scalar_lea.vmem [#allocation7], 672
      %672 = vst [vmem:[%s670] sm:$0xff] %v669
      %s673 = scalar_lea.vmem %s226, 680
      %v674 = vld [vmem:[%s673] sm:$0xff]
      %s675 = scalar_lea.vmem [#allocation7], 680
      %677 = vst [vmem:[%s675] sm:$0xff] %v674
      %s678 = scalar_lea.vmem %s226, 688
      %v679 = vld [vmem:[%s678] sm:$0xff]
      %s680 = scalar_lea.vmem [#allocation7], 688
      %682 = vst [vmem:[%s680] sm:$0xff] %v679
      %s683 = scalar_lea.vmem %s226, 696
      %v684 = vld [vmem:[%s683] sm:$0xff]
      %s685 = scalar_lea.vmem [#allocation7], 696
      %687 = vst [vmem:[%s685] sm:$0xff] %v684
      %s688 = ssub.s32 0, %s21
      %p689 = scmp.lt.s32.totalorder %s688, 0
      %s690 = scalar_select %p689, 0, 255
      %s691 = sand.u32 127, %s690
      %v692 = vld [vmem:[%s232] sm:%s691]
      %s693 = ssub.s32 0, %s21
      %v694 = vstv %s693
      %vm695 = vcmp.lt.s32.totalorder %v694, 0
      %v696 = vsel %vm695, %v10, %v692
      %v697 = vlaneseq
      %v698 = vshrl.u32 %v697, 7
      %vm700 = vcmp.lt.s32.totalorder %v698, 7
      %v701 = vsel %vm700, %v696, %v10
      %s702 = smul.addr %s21, 128
      %v703 = vlaneseq
      %v704 = vand.u32 %v703, 127
      %v705 = vstv %s702
      %v706 = vadd.s32 %v704, %v705
      %vm707 = vcmp.lt.s32.totalorder %v706, 8
      %v708 = vsel %vm707, %v701, %v10
      %710 = vst [vmem:[#allocation8] sm:$0xff] %v708
      %s711 = scalar_lea.vmem %s232, 8
      %s712 = ssub.s32 0, %s21
      %p713 = scmp.lt.s32.totalorder %s712, 0
      %s714 = scalar_select %p713, 0, 255
      %s715 = sand.u32 127, %s714
      %v716 = vld [vmem:[%s711] sm:%s715]
      %s717 = ssub.s32 0, %s21
      %v718 = vstv %s717
      %vm719 = vcmp.lt.s32.totalorder %v718, 0
      %v720 = vsel %vm719, %v10, %v716
      %v721 = vlaneseq
      %v722 = vshrl.u32 %v721, 7
      %vm724 = vcmp.lt.s32.totalorder %v722, 7
      %v725 = vsel %vm724, %v720, %v10
      %s726 = smul.addr %s21, 128
      %v727 = vlaneseq
      %v728 = vand.u32 %v727, 127
      %v729 = vstv %s726
      %v730 = vadd.s32 %v728, %v729
      %vm731 = vcmp.lt.s32.totalorder %v730, 8
      %v732 = vsel %vm731, %v725, %v10
      %s733 = scalar_lea.vmem [#allocation8], 8
      %735 = vst [vmem:[%s733] sm:$0xff] %v732
      %s736 = scalar_lea.vmem %s232, 16
      %s737 = ssub.s32 0, %s21
      %p738 = scmp.lt.s32.totalorder %s737, 0
      %s739 = scalar_select %p738, 0, 255
      %s740 = sand.u32 127, %s739
      %v741 = vld [vmem:[%s736] sm:%s740]
      %s742 = ssub.s32 0, %s21
      %v743 = vstv %s742
      %vm744 = vcmp.lt.s32.totalorder %v743, 0
      %v745 = vsel %vm744, %v10, %v741
      %v746 = vlaneseq
      %v747 = vshrl.u32 %v746, 7
      %vm749 = vcmp.lt.s32.totalorder %v747, 7
      %v750 = vsel %vm749, %v745, %v10
      %s751 = smul.addr %s21, 128
      %v752 = vlaneseq
      %v753 = vand.u32 %v752, 127
      %v754 = vstv %s751
      %v755 = vadd.s32 %v753, %v754
      %vm756 = vcmp.lt.s32.totalorder %v755, 8
      %v757 = vsel %vm756, %v750, %v10
      %s758 = scalar_lea.vmem [#allocation8], 16
      %760 = vst [vmem:[%s758] sm:$0xff] %v757
      %s761 = scalar_lea.vmem %s232, 24
      %s762 = ssub.s32 0, %s21
      %p763 = scmp.lt.s32.totalorder %s762, 0
      %s764 = scalar_select %p763, 0, 255
      %s765 = sand.u32 127, %s764
      %v766 = vld [vmem:[%s761] sm:%s765]
      %s767 = ssub.s32 0, %s21
      %v768 = vstv %s767
      %vm769 = vcmp.lt.s32.totalorder %v768, 0
      %v770 = vsel %vm769, %v10, %v766
      %v771 = vlaneseq
      %v772 = vshrl.u32 %v771, 7
      %vm774 = vcmp.lt.s32.totalorder %v772, 7
      %v775 = vsel %vm774, %v770, %v10
      %s776 = smul.addr %s21, 128
      %v777 = vlaneseq
      %v778 = vand.u32 %v777, 127
      %v779 = vstv %s776
      %v780 = vadd.s32 %v778, %v779
      %vm781 = vcmp.lt.s32.totalorder %v780, 8
      %v782 = vsel %vm781, %v775, %v10
      %s783 = scalar_lea.vmem [#allocation8], 24
      %785 = vst [vmem:[%s783] sm:$0xff] %v782
      %s786 = scalar_lea.vmem %s232, 32
      %s787 = ssub.s32 0, %s21
      %p788 = scmp.lt.s32.totalorder %s787, 0
      %s789 = scalar_select %p788, 0, 255
      %s790 = sand.u32 127, %s789
      %v791 = vld [vmem:[%s786] sm:%s790]
      %s792 = ssub.s32 0, %s21
      %v793 = vstv %s792
      %vm794 = vcmp.lt.s32.totalorder %v793, 0
      %v795 = vsel %vm794, %v10, %v791
      %v796 = vlaneseq
      %v797 = vshrl.u32 %v796, 7
      %vm799 = vcmp.lt.s32.totalorder %v797, 7
      %v800 = vsel %vm799, %v795, %v10
      %s801 = smul.addr %s21, 128
      %v802 = vlaneseq
      %v803 = vand.u32 %v802, 127
      %v804 = vstv %s801
      %v805 = vadd.s32 %v803, %v804
      %vm806 = vcmp.lt.s32.totalorder %v805, 8
      %v807 = vsel %vm806, %v800, %v10
      %s808 = scalar_lea.vmem [#allocation8], 32
      %810 = vst [vmem:[%s808] sm:$0xff] %v807
      %s811 = scalar_lea.vmem %s232, 40
      %s812 = ssub.s32 0, %s21
      %p813 = scmp.lt.s32.totalorder %s812, 0
      %s814 = scalar_select %p813, 0, 255
      %s815 = sand.u32 127, %s814
      %v816 = vld [vmem:[%s811] sm:%s815]
      %s817 = ssub.s32 0, %s21
      %v818 = vstv %s817
      %vm819 = vcmp.lt.s32.totalorder %v818, 0
      %v820 = vsel %vm819, %v10, %v816
      %v821 = vlaneseq
      %v822 = vshrl.u32 %v821, 7
      %vm824 = vcmp.lt.s32.totalorder %v822, 7
      %v825 = vsel %vm824, %v820, %v10
      %s826 = smul.addr %s21, 128
      %v827 = vlaneseq
      %v828 = vand.u32 %v827, 127
      %v829 = vstv %s826
      %v830 = vadd.s32 %v828, %v829
      %vm831 = vcmp.lt.s32.totalorder %v830, 8
      %v832 = vsel %vm831, %v825, %v10
      %s833 = scalar_lea.vmem [#allocation8], 40
      %835 = vst [vmem:[%s833] sm:$0xff] %v832
      %s836 = scalar_lea.vmem %s232, 48
      %s837 = ssub.s32 0, %s21
      %p838 = scmp.lt.s32.totalorder %s837, 0
      %s839 = scalar_select %p838, 0, 255
      %s840 = sand.u32 127, %s839
      %v841 = vld [vmem:[%s836] sm:%s840]
      %s842 = ssub.s32 0, %s21
      %v843 = vstv %s842
      %vm844 = vcmp.lt.s32.totalorder %v843, 0
      %v845 = vsel %vm844, %v10, %v841
      %v846 = vlaneseq
      %v847 = vshrl.u32 %v846, 7
      %vm849 = vcmp.lt.s32.totalorder %v847, 7
      %v850 = vsel %vm849, %v845, %v10
      %s851 = smul.addr %s21, 128
      %v852 = vlaneseq
      %v853 = vand.u32 %v852, 127
      %v854 = vstv %s851
      %v855 = vadd.s32 %v853, %v854
      %vm856 = vcmp.lt.s32.totalorder %v855, 8
      %v857 = vsel %vm856, %v850, %v10
      %s858 = scalar_lea.vmem [#allocation8], 48
      %860 = vst [vmem:[%s858] sm:$0xff] %v857
      %s861 = smul.u32 0, 16
      %s862 = scalar_lea.vmem [#allocation7], %s861
      %v863 = vld [vmem:[%s862] sm:$0xff]
      %v864 = vld [vmem:[%s862 + $0x10] sm:$0xff]
      %v865 = vld [vmem:[%s862 + $0x20] sm:$0xff]
      %v866 = vld [vmem:[%s862 + $0x30] sm:$0xff]
      %v867 = vld [vmem:[%s862 + $0x40] sm:$0xff]
      %v868 = vld [vmem:[%s862 + $0x50] sm:$0xff]
      %v869 = vld [vmem:[%s862 + $0x60] sm:$0xff]
      %v870 = vld [vmem:[%s862 + $0x70] sm:$0xff]
      %v871 = vld [vmem:[#allocation8] sm:$0x1]
      %v872 = vlaneseq
      %v873 = vshrl.u32 %v872, 7
      %v874 = vsub.s32 0, %v873
      %v875 = vrot.slane %v871, %v874
      %v876 = vmul.f32 %v863, %v875
      %v877 = vmul.f32 %v864, %v875
      %v878 = vmul.f32 %v865, %v875
      %v879 = vmul.f32 %v866, %v875
      %v880 = vmul.f32 %v867, %v875
      %v881 = vmul.f32 %v868, %v875
      %v882 = vmul.f32 %v869, %v875
      %v883 = vmul.f32 %v870, %v875
      %v884 = vadd.f32 %v876, 0.0
      %v885 = vadd.f32 %v877, 0.0
      %v886 = vadd.f32 %v878, 0.0
      %v887 = vadd.f32 %v879, 0.0
      %v888 = vadd.f32 %v880, 0.0
      %v889 = vadd.f32 %v881, 0.0
      %v890 = vadd.f32 %v882, 0.0
      %v891 = vadd.f32 %v883, 0.0
      %s892 = sadd.s32 %s861, 176
      %s893 = scalar_lea.vmem [#allocation7], %s892
      %v894 = vld [vmem:[%s893] sm:$0xff]
      %v895 = vld [vmem:[%s893 + $0x10] sm:$0xff]
      %v896 = vld [vmem:[%s893 + $0x20] sm:$0xff]
      %v897 = vld [vmem:[%s893 + $0x30] sm:$0xff]
      %v898 = vld [vmem:[%s893 + $0x40] sm:$0xff]
      %v899 = vld [vmem:[%s893 + $0x50] sm:$0xff]
      %v900 = vld [vmem:[%s893 + $0x60] sm:$0xff]
      %v901 = vld [vmem:[%s893 + $0x70] sm:$0xff]
      %v902 = vld [vmem:[#allocation8 + $0x1] sm:$0x1]
      %v903 = vlaneseq
      %v904 = vshrl.u32 %v903, 7
      %v905 = vsub.s32 0, %v904
      %v906 = vrot.slane %v902, %v905
      %v907 = vmul.f32 %v894, %v906
      %v908 = vmul.f32 %v895, %v906
      %v909 = vmul.f32 %v896, %v906
      %v910 = vmul.f32 %v897, %v906
      %v911 = vmul.f32 %v898, %v906
      %v912 = vmul.f32 %v899, %v906
      %v913 = vmul.f32 %v900, %v906
      %v914 = vmul.f32 %v901, %v906
      %v915 = vadd.f32 %v884, %v907
      %v916 = vadd.f32 %v885, %v908
      %v917 = vadd.f32 %v886, %v909
      %v918 = vadd.f32 %v887, %v910
      %v919 = vadd.f32 %v888, %v911
      %v920 = vadd.f32 %v889, %v912
      %v921 = vadd.f32 %v890, %v913
      %v922 = vadd.f32 %v891, %v914
      %v923 = vld [vmem:[%s862 + $0x1] sm:$0xff]
      %v924 = vld [vmem:[%s862 + $0x11] sm:$0xff]
      %v925 = vld [vmem:[%s862 + $0x21] sm:$0xff]
      %v926 = vld [vmem:[%s862 + $0x31] sm:$0xff]
      %v927 = vld [vmem:[%s862 + $0x41] sm:$0xff]
      %v928 = vld [vmem:[%s862 + $0x51] sm:$0xff]
      %v929 = vld [vmem:[%s862 + $0x61] sm:$0xff]
      %v930 = vld [vmem:[%s862 + $0x71] sm:$0xff]
      %v931 = vld [vmem:[#allocation8 + $0x2] sm:$0x1]
      %v932 = vlaneseq
      %v933 = vshrl.u32 %v932, 7
      %v934 = vsub.s32 0, %v933
      %v935 = vrot.slane %v931, %v934
      %v936 = vmul.f32 %v923, %v935
      %v937 = vmul.f32 %v924, %v935
      %v938 = vmul.f32 %v925, %v935
      %v939 = vmul.f32 %v926, %v935
      %v940 = vmul.f32 %v927, %v935
      %v941 = vmul.f32 %v928, %v935
      %v942 = vmul.f32 %v929, %v935
      %v943 = vmul.f32 %v930, %v935
      %v944 = vadd.f32 %v915, %v936
      %v945 = vadd.f32 %v916, %v937
      %v946 = vadd.f32 %v917, %v938
      %v947 = vadd.f32 %v918, %v939
      %v948 = vadd.f32 %v919, %v940
      %v949 = vadd.f32 %v920, %v941
      %v950 = vadd.f32 %v921, %v942
      %v951 = vadd.f32 %v922, %v943
      %v952 = vld [vmem:[%s893 + $0x1] sm:$0xff]
      %v953 = vld [vmem:[%s893 + $0x11] sm:$0xff]
      %v954 = vld [vmem:[%s893 + $0x21] sm:$0xff]
      %v955 = vld [vmem:[%s893 + $0x31] sm:$0xff]
      %v956 = vld [vmem:[%s893 + $0x41] sm:$0xff]
      %v957 = vld [vmem:[%s893 + $0x51] sm:$0xff]
      %v958 = vld [vmem:[%s893 + $0x61] sm:$0xff]
      %v959 = vld [vmem:[%s893 + $0x71] sm:$0xff]
      %v960 = vld [vmem:[#allocation8 + $0x3] sm:$0x1]
      %v961 = vlaneseq
      %v962 = vshrl.u32 %v961, 7
      %v963 = vsub.s32 0, %v962
      %v964 = vrot.slane %v960, %v963
      %v965 = vmul.f32 %v952, %v964
      %v966 = vmul.f32 %v953, %v964
      %v967 = vmul.f32 %v954, %v964
      %v968 = vmul.f32 %v955, %v964
      %v969 = vmul.f32 %v956, %v964
      %v970 = vmul.f32 %v957, %v964
      %v971 = vmul.f32 %v958, %v964
      %v972 = vmul.f32 %v959, %v964
      %v973 = vadd.f32 %v944, %v965
      %v974 = vadd.f32 %v945, %v966
      %v975 = vadd.f32 %v946, %v967
      %v976 = vadd.f32 %v947, %v968
      %v977 = vadd.f32 %v948, %v969
      %v978 = vadd.f32 %v949, %v970
      %v979 = vadd.f32 %v950, %v971
      %v980 = vadd.f32 %v951, %v972
      %v981 = vld [vmem:[%s862 + $0x2] sm:$0xff]
      %v982 = vld [vmem:[%s862 + $0x12] sm:$0xff]
      %v983 = vld [vmem:[%s862 + $0x22] sm:$0xff]
      %v984 = vld [vmem:[%s862 + $0x32] sm:$0xff]
      %v985 = vld [vmem:[%s862 + $0x42] sm:$0xff]
      %v986 = vld [vmem:[%s862 + $0x52] sm:$0xff]
      %v987 = vld [vmem:[%s862 + $0x62] sm:$0xff]
      %v988 = vld [vmem:[%s862 + $0x72] sm:$0xff]
      %v989 = vld [vmem:[#allocation8 + $0x4] sm:$0x1]
      %v990 = vlaneseq
      %v991 = vshrl.u32 %v990, 7
      %v992 = vsub.s32 0, %v991
      %v993 = vrot.slane %v989, %v992
      %v994 = vmul.f32 %v981, %v993
      %v995 = vmul.f32 %v982, %v993
      %v996 = vmul.f32 %v983, %v993
      %v997 = vmul.f32 %v984, %v993
      %v998 = vmul.f32 %v985, %v993
      %v999 = vmul.f32 %v986, %v993
      %v1000 = vmul.f32 %v987, %v993
      %v1001 = vmul.f32 %v988, %v993
      %v1002 = vadd.f32 %v973, %v994
      %v1003 = vadd.f32 %v974, %v995
      %v1004 = vadd.f32 %v975, %v996
      %v1005 = vadd.f32 %v976, %v997
      %v1006 = vadd.f32 %v977, %v998
      %v1007 = vadd.f32 %v978, %v999
      %v1008 = vadd.f32 %v979, %v1000
      %v1009 = vadd.f32 %v980, %v1001
      %v1010 = vld [vmem:[%s893 + $0x2] sm:$0xff]
      %v1011 = vld [vmem:[%s893 + $0x12] sm:$0xff]
      %v1012 = vld [vmem:[%s893 + $0x22] sm:$0xff]
      %v1013 = vld [vmem:[%s893 + $0x32] sm:$0xff]
      %v1014 = vld [vmem:[%s893 + $0x42] sm:$0xff]
      %v1015 = vld [vmem:[%s893 + $0x52] sm:$0xff]
      %v1016 = vld [vmem:[%s893 + $0x62] sm:$0xff]
      %v1017 = vld [vmem:[%s893 + $0x72] sm:$0xff]
      %v1018 = vld [vmem:[#allocation8 + $0x5] sm:$0x1]
      %v1019 = vlaneseq
      %v1020 = vshrl.u32 %v1019, 7
      %v1021 = vsub.s32 0, %v1020
      %v1022 = vrot.slane %v1018, %v1021
      %v1023 = vmul.f32 %v1010, %v1022
      %v1024 = vmul.f32 %v1011, %v1022
      %v1025 = vmul.f32 %v1012, %v1022
      %v1026 = vmul.f32 %v1013, %v1022
      %v1027 = vmul.f32 %v1014, %v1022
      %v1028 = vmul.f32 %v1015, %v1022
      %v1029 = vmul.f32 %v1016, %v1022
      %v1030 = vmul.f32 %v1017, %v1022
      %v1031 = vadd.f32 %v1002, %v1023
      %v1032 = vadd.f32 %v1003, %v1024
      %v1033 = vadd.f32 %v1004, %v1025
      %v1034 = vadd.f32 %v1005, %v1026
      %v1035 = vadd.f32 %v1006, %v1027
      %v1036 = vadd.f32 %v1007, %v1028
      %v1037 = vadd.f32 %v1008, %v1029
      %v1038 = vadd.f32 %v1009, %v1030
      %v1039 = vld [vmem:[%s862 + $0x3] sm:$0xff]
      %v1040 = vld [vmem:[%s862 + $0x13] sm:$0xff]
      %v1041 = vld [vmem:[%s862 + $0x23] sm:$0xff]
      %v1042 = vld [vmem:[%s862 + $0x33] sm:$0xff]
      %v1043 = vld [vmem:[%s862 + $0x43] sm:$0xff]
      %v1044 = vld [vmem:[%s862 + $0x53] sm:$0xff]
      %v1045 = vld [vmem:[%s862 + $0x63] sm:$0xff]
      %v1046 = vld [vmem:[%s862 + $0x73] sm:$0xff]
      %v1047 = vld [vmem:[#allocation8 + $0x6] sm:$0x1]
      %v1048 = vlaneseq
      %v1049 = vshrl.u32 %v1048, 7
      %v1050 = vsub.s32 0, %v1049
      %v1051 = vrot.slane %v1047, %v1050
      %v1052 = vmul.f32 %v1039, %v1051
      %v1053 = vmul.f32 %v1040, %v1051
      %v1054 = vmul.f32 %v1041, %v1051
      %v1055 = vmul.f32 %v1042, %v1051
      %v1056 = vmul.f32 %v1043, %v1051
      %v1057 = vmul.f32 %v1044, %v1051
      %v1058 = vmul.f32 %v1045, %v1051
      %v1059 = vmul.f32 %v1046, %v1051
      %v1060 = vadd.f32 %v1031, %v1052
      %v1061 = vadd.f32 %v1032, %v1053
      %v1062 = vadd.f32 %v1033, %v1054
      %v1063 = vadd.f32 %v1034, %v1055
      %v1064 = vadd.f32 %v1035, %v1056
      %v1065 = vadd.f32 %v1036, %v1057
      %v1066 = vadd.f32 %v1037, %v1058
      %v1067 = vadd.f32 %v1038, %v1059
      %s1068 = sadd.s32 %s861, 352
      %s1069 = scalar_lea.vmem [#allocation7], %s1068
      %v1070 = vld [vmem:[%s1069] sm:$0xff]
      %v1071 = vld [vmem:[%s1069 + $0x10] sm:$0xff]
      %v1072 = vld [vmem:[%s1069 + $0x20] sm:$0xff]
      %v1073 = vld [vmem:[%s1069 + $0x30] sm:$0xff]
      %v1074 = vld [vmem:[%s1069 + $0x40] sm:$0xff]
      %v1075 = vld [vmem:[%s1069 + $0x50] sm:$0xff]
      %v1076 = vld [vmem:[%s1069 + $0x60] sm:$0xff]
      %v1077 = vld [vmem:[%s1069 + $0x70] sm:$0xff]
      %s1078 = scalar_lea.vmem [#allocation8], 8
      %v1079 = vld [vmem:[%s1078] sm:$0x1]
      %v1080 = vlaneseq
      %v1081 = vshrl.u32 %v1080, 7
      %v1082 = vsub.s32 0, %v1081
      %v1083 = vrot.slane %v1079, %v1082
      %v1084 = vmul.f32 %v1070, %v1083
      %v1085 = vmul.f32 %v1071, %v1083
      %v1086 = vmul.f32 %v1072, %v1083
      %v1087 = vmul.f32 %v1073, %v1083
      %v1088 = vmul.f32 %v1074, %v1083
      %v1089 = vmul.f32 %v1075, %v1083
      %v1090 = vmul.f32 %v1076, %v1083
      %v1091 = vmul.f32 %v1077, %v1083
      %v1092 = vadd.f32 %v1060, %v1084
      %v1093 = vadd.f32 %v1061, %v1085
      %v1094 = vadd.f32 %v1062, %v1086
      %v1095 = vadd.f32 %v1063, %v1087
      %v1096 = vadd.f32 %v1064, %v1088
      %v1097 = vadd.f32 %v1065, %v1089
      %v1098 = vadd.f32 %v1066, %v1090
      %v1099 = vadd.f32 %v1067, %v1091
      %s1100 = sadd.s32 %s892, 352
      %s1101 = scalar_lea.vmem [#allocation7], %s1100
      %v1102 = vld [vmem:[%s1101] sm:$0xff]
      %v1103 = vld [vmem:[%s1101 + $0x10] sm:$0xff]
      %v1104 = vld [vmem:[%s1101 + $0x20] sm:$0xff]
      %v1105 = vld [vmem:[%s1101 + $0x30] sm:$0xff]
      %v1106 = vld [vmem:[%s1101 + $0x40] sm:$0xff]
      %v1107 = vld [vmem:[%s1101 + $0x50] sm:$0xff]
      %v1108 = vld [vmem:[%s1101 + $0x60] sm:$0xff]
      %v1109 = vld [vmem:[%s1101 + $0x70] sm:$0xff]
      %v1110 = vld [vmem:[%s1078 + $0x1] sm:$0x1]
      %v1111 = vlaneseq
      %v1112 = vshrl.u32 %v1111, 7
      %v1113 = vsub.s32 0, %v1112
      %v1114 = vrot.slane %v1110, %v1113
      %v1115 = vmul.f32 %v1102, %v1114
      %v1116 = vmul.f32 %v1103, %v1114
      %v1117 = vmul.f32 %v1104, %v1114
      %v1118 = vmul.f32 %v1105, %v1114
      %v1119 = vmul.f32 %v1106, %v1114
      %v1120 = vmul.f32 %v1107, %v1114
      %v1121 = vmul.f32 %v1108, %v1114
      %v1122 = vmul.f32 %v1109, %v1114
      %v1123 = vadd.f32 %v1092, %v1115
      %v1124 = vadd.f32 %v1093, %v1116
      %v1125 = vadd.f32 %v1094, %v1117
      %v1126 = vadd.f32 %v1095, %v1118
      %v1127 = vadd.f32 %v1096, %v1119
      %v1128 = vadd.f32 %v1097, %v1120
      %v1129 = vadd.f32 %v1098, %v1121
      %v1130 = vadd.f32 %v1099, %v1122
      %v1131 = vld [vmem:[%s1069 + $0x1] sm:$0xff]
      %v1132 = vld [vmem:[%s1069 + $0x11] sm:$0xff]
      %v1133 = vld [vmem:[%s1069 + $0x21] sm:$0xff]
      %v1134 = vld [vmem:[%s1069 + $0x31] sm:$0xff]
      %v1135 = vld [vmem:[%s1069 + $0x41] sm:$0xff]
      %v1136 = vld [vmem:[%s1069 + $0x51] sm:$0xff]
      %v1137 = vld [vmem:[%s1069 + $0x61] sm:$0xff]
      %v1138 = vld [vmem:[%s1069 + $0x71] sm:$0xff]
      %v1139 = vld [vmem:[%s1078 + $0x2] sm:$0x1]
      %v1140 = vlaneseq
      %v1141 = vshrl.u32 %v1140, 7
      %v1142 = vsub.s32 0, %v1141
      %v1143 = vrot.slane %v1139, %v1142
      %v1144 = vmul.f32 %v1131, %v1143
      %v1145 = vmul.f32 %v1132, %v1143
      %v1146 = vmul.f32 %v1133, %v1143
      %v1147 = vmul.f32 %v1134, %v1143
      %v1148 = vmul.f32 %v1135, %v1143
      %v1149 = vmul.f32 %v1136, %v1143
      %v1150 = vmul.f32 %v1137, %v1143
      %v1151 = vmul.f32 %v1138, %v1143
      %v1152 = vadd.f32 %v1123, %v1144
      %v1153 = vadd.f32 %v1124, %v1145
      %v1154 = vadd.f32 %v1125, %v1146
      %v1155 = vadd.f32 %v1126, %v1147
      %v1156 = vadd.f32 %v1127, %v1148
      %v1157 = vadd.f32 %v1128, %v1149
      %v1158 = vadd.f32 %v1129, %v1150
      %v1159 = vadd.f32 %v1130, %v1151
      %v1160 = vld [vmem:[%s1101 + $0x1] sm:$0xff]
      %v1161 = vld [vmem:[%s1101 + $0x11] sm:$0xff]
      %v1162 = vld [vmem:[%s1101 + $0x21] sm:$0xff]
      %v1163 = vld [vmem:[%s1101 + $0x31] sm:$0xff]
      %v1164 = vld [vmem:[%s1101 + $0x41] sm:$0xff]
      %v1165 = vld [vmem:[%s1101 + $0x51] sm:$0xff]
      %v1166 = vld [vmem:[%s1101 + $0x61] sm:$0xff]
      %v1167 = vld [vmem:[%s1101 + $0x71] sm:$0xff]
      %v1168 = vld [vmem:[%s1078 + $0x3] sm:$0x1]
      %v1169 = vlaneseq
      %v1170 = vshrl.u32 %v1169, 7
      %v1171 = vsub.s32 0, %v1170
      %v1172 = vrot.slane %v1168, %v1171
      %v1173 = vmul.f32 %v1160, %v1172
      %v1174 = vmul.f32 %v1161, %v1172
      %v1175 = vmul.f32 %v1162, %v1172
      %v1176 = vmul.f32 %v1163, %v1172
      %v1177 = vmul.f32 %v1164, %v1172
      %v1178 = vmul.f32 %v1165, %v1172
      %v1179 = vmul.f32 %v1166, %v1172
      %v1180 = vmul.f32 %v1167, %v1172
      %v1181 = vadd.f32 %v1152, %v1173
      %v1182 = vadd.f32 %v1153, %v1174
      %v1183 = vadd.f32 %v1154, %v1175
      %v1184 = vadd.f32 %v1155, %v1176
      %v1185 = vadd.f32 %v1156, %v1177
      %v1186 = vadd.f32 %v1157, %v1178
      %v1187 = vadd.f32 %v1158, %v1179
      %v1188 = vadd.f32 %v1159, %v1180
      %v1189 = vld [vmem:[%s1069 + $0x2] sm:$0xff]
      %v1190 = vld [vmem:[%s1069 + $0x12] sm:$0xff]
      %v1191 = vld [vmem:[%s1069 + $0x22] sm:$0xff]
      %v1192 = vld [vmem:[%s1069 + $0x32] sm:$0xff]
      %v1193 = vld [vmem:[%s1069 + $0x42] sm:$0xff]
      %v1194 = vld [vmem:[%s1069 + $0x52] sm:$0xff]
      %v1195 = vld [vmem:[%s1069 + $0x62] sm:$0xff]
      %v1196 = vld [vmem:[%s1069 + $0x72] sm:$0xff]
      %v1197 = vld [vmem:[%s1078 + $0x4] sm:$0x1]
      %v1198 = vlaneseq
      %v1199 = vshrl.u32 %v1198, 7
      %v1200 = vsub.s32 0, %v1199
      %v1201 = vrot.slane %v1197, %v1200
      %v1202 = vmul.f32 %v1189, %v1201
      %v1203 = vmul.f32 %v1190, %v1201
      %v1204 = vmul.f32 %v1191, %v1201
      %v1205 = vmul.f32 %v1192, %v1201
      %v1206 = vmul.f32 %v1193, %v1201
      %v1207 = vmul.f32 %v1194, %v1201
      %v1208 = vmul.f32 %v1195, %v1201
      %v1209 = vmul.f32 %v1196, %v1201
      %v1210 = vadd.f32 %v1181, %v1202
      %v1211 = vadd.f32 %v1182, %v1203
      %v1212 = vadd.f32 %v1183, %v1204
      %v1213 = vadd.f32 %v1184, %v1205
      %v1214 = vadd.f32 %v1185, %v1206
      %v1215 = vadd.f32 %v1186, %v1207
      %v1216 = vadd.f32 %v1187, %v1208
      %v1217 = vadd.f32 %v1188, %v1209
      %v1218 = vld [vmem:[%s1101 + $0x2] sm:$0xff]
      %v1219 = vld [vmem:[%s1101 + $0x12] sm:$0xff]
      %v1220 = vld [vmem:[%s1101 + $0x22] sm:$0xff]
      %v1221 = vld [vmem:[%s1101 + $0x32] sm:$0xff]
      %v1222 = vld [vmem:[%s1101 + $0x42] sm:$0xff]
      %v1223 = vld [vmem:[%s1101 + $0x52] sm:$0xff]
      %v1224 = vld [vmem:[%s1101 + $0x62] sm:$0xff]
      %v1225 = vld [vmem:[%s1101 + $0x72] sm:$0xff]
      %v1226 = vld [vmem:[%s1078 + $0x5] sm:$0x1]
      %v1227 = vlaneseq
      %v1228 = vshrl.u32 %v1227, 7
      %v1229 = vsub.s32 0, %v1228
      %v1230 = vrot.slane %v1226, %v1229
      %v1231 = vmul.f32 %v1218, %v1230
      %v1232 = vmul.f32 %v1219, %v1230
      %v1233 = vmul.f32 %v1220, %v1230
      %v1234 = vmul.f32 %v1221, %v1230
      %v1235 = vmul.f32 %v1222, %v1230
      %v1236 = vmul.f32 %v1223, %v1230
      %v1237 = vmul.f32 %v1224, %v1230
      %v1238 = vmul.f32 %v1225, %v1230
      %v1239 = vadd.f32 %v1210, %v1231
      %v1240 = vadd.f32 %v1211, %v1232
      %v1241 = vadd.f32 %v1212, %v1233
      %v1242 = vadd.f32 %v1213, %v1234
      %v1243 = vadd.f32 %v1214, %v1235
      %v1244 = vadd.f32 %v1215, %v1236
      %v1245 = vadd.f32 %v1216, %v1237
      %v1246 = vadd.f32 %v1217, %v1238
      %v1247 = vld [vmem:[%s1069 + $0x3] sm:$0xff]
      %v1248 = vld [vmem:[%s1069 + $0x13] sm:$0xff]
      %v1249 = vld [vmem:[%s1069 + $0x23] sm:$0xff]
      %v1250 = vld [vmem:[%s1069 + $0x33] sm:$0xff]
      %v1251 = vld [vmem:[%s1069 + $0x43] sm:$0xff]
      %v1252 = vld [vmem:[%s1069 + $0x53] sm:$0xff]
      %v1253 = vld [vmem:[%s1069 + $0x63] sm:$0xff]
      %v1254 = vld [vmem:[%s1069 + $0x73] sm:$0xff]
      %v1255 = vld [vmem:[%s1078 + $0x6] sm:$0x1]
      %v1256 = vlaneseq
      %v1257 = vshrl.u32 %v1256, 7
      %v1258 = vsub.s32 0, %v1257
      %v1259 = vrot.slane %v1255, %v1258
      %v1260 = vmul.f32 %v1247, %v1259
      %v1261 = vmul.f32 %v1248, %v1259
      %v1262 = vmul.f32 %v1249, %v1259
      %v1263 = vmul.f32 %v1250, %v1259
      %v1264 = vmul.f32 %v1251, %v1259
      %v1265 = vmul.f32 %v1252, %v1259
      %v1266 = vmul.f32 %v1253, %v1259
      %v1267 = vmul.f32 %v1254, %v1259
      %v1268 = vadd.f32 %v1239, %v1260
      %v1269 = vadd.f32 %v1240, %v1261
      %v1270 = vadd.f32 %v1241, %v1262
      %v1271 = vadd.f32 %v1242, %v1263
      %v1272 = vadd.f32 %v1243, %v1264
      %v1273 = vadd.f32 %v1244, %v1265
      %v1274 = vadd.f32 %v1245, %v1266
      %v1275 = vadd.f32 %v1246, %v1267
      %s1276 = sadd.s32 0, 1
      %s1277 = smul.u32 %s1276, 16
      %s1278 = scalar_lea.vmem [#allocation7], %s1277
      %v1279 = vld [vmem:[%s1278] sm:$0xff]
      %v1280 = vld [vmem:[%s1278 + $0x10] sm:$0xff]
      %v1281 = vld [vmem:[%s1278 + $0x20] sm:$0xff]
      %v1282 = vld [vmem:[%s1278 + $0x30] sm:$0xff]
      %v1283 = vld [vmem:[%s1278 + $0x40] sm:$0xff]
      %v1284 = vld [vmem:[%s1278 + $0x50] sm:$0xff]
      %v1285 = vld [vmem:[%s1278 + $0x60] sm:$0xff]
      %v1286 = vld [vmem:[%s1278 + $0x70] sm:$0xff]
      %s1287 = scalar_lea.vmem [#allocation8], 16
      %v1288 = vld [vmem:[%s1287] sm:$0x1]
      %v1289 = vlaneseq
      %v1290 = vshrl.u32 %v1289, 7
      %v1291 = vsub.s32 0, %v1290
      %v1292 = vrot.slane %v1288, %v1291
      %v1293 = vmul.f32 %v1279, %v1292
      %v1294 = vmul.f32 %v1280, %v1292
      %v1295 = vmul.f32 %v1281, %v1292
      %v1296 = vmul.f32 %v1282, %v1292
      %v1297 = vmul.f32 %v1283, %v1292
      %v1298 = vmul.f32 %v1284, %v1292
      %v1299 = vmul.f32 %v1285, %v1292
      %v1300 = vmul.f32 %v1286, %v1292
      %v1301 = vadd.f32 %v1268, %v1293
      %v1302 = vadd.f32 %v1269, %v1294
      %v1303 = vadd.f32 %v1270, %v1295
      %v1304 = vadd.f32 %v1271, %v1296
      %v1305 = vadd.f32 %v1272, %v1297
      %v1306 = vadd.f32 %v1273, %v1298
      %v1307 = vadd.f32 %v1274, %v1299
      %v1308 = vadd.f32 %v1275, %v1300
      %s1309 = sadd.s32 %s1277, 176
      %s1310 = scalar_lea.vmem [#allocation7], %s1309
      %v1311 = vld [vmem:[%s1310] sm:$0xff]
      %v1312 = vld [vmem:[%s1310 + $0x10] sm:$0xff]
      %v1313 = vld [vmem:[%s1310 + $0x20] sm:$0xff]
      %v1314 = vld [vmem:[%s1310 + $0x30] sm:$0xff]
      %v1315 = vld [vmem:[%s1310 + $0x40] sm:$0xff]
      %v1316 = vld [vmem:[%s1310 + $0x50] sm:$0xff]
      %v1317 = vld [vmem:[%s1310 + $0x60] sm:$0xff]
      %v1318 = vld [vmem:[%s1310 + $0x70] sm:$0xff]
      %v1319 = vld [vmem:[%s1287 + $0x1] sm:$0x1]
      %v1320 = vlaneseq
      %v1321 = vshrl.u32 %v1320, 7
      %v1322 = vsub.s32 0, %v1321
      %v1323 = vrot.slane %v1319, %v1322
      %v1324 = vmul.f32 %v1311, %v1323
      %v1325 = vmul.f32 %v1312, %v1323
      %v1326 = vmul.f32 %v1313, %v1323
      %v1327 = vmul.f32 %v1314, %v1323
      %v1328 = vmul.f32 %v1315, %v1323
      %v1329 = vmul.f32 %v1316, %v1323
      %v1330 = vmul.f32 %v1317, %v1323
      %v1331 = vmul.f32 %v1318, %v1323
      %v1332 = vadd.f32 %v1301, %v1324
      %v1333 = vadd.f32 %v1302, %v1325
      %v1334 = vadd.f32 %v1303, %v1326
      %v1335 = vadd.f32 %v1304, %v1327
      %v1336 = vadd.f32 %v1305, %v1328
      %v1337 = vadd.f32 %v1306, %v1329
      %v1338 = vadd.f32 %v1307, %v1330
      %v1339 = vadd.f32 %v1308, %v1331
      %v1340 = vld [vmem:[%s1278 + $0x1] sm:$0xff]
      %v1341 = vld [vmem:[%s1278 + $0x11] sm:$0xff]
      %v1342 = vld [vmem:[%s1278 + $0x21] sm:$0xff]
      %v1343 = vld [vmem:[%s1278 + $0x31] sm:$0xff]
      %v1344 = vld [vmem:[%s1278 + $0x41] sm:$0xff]
      %v1345 = vld [vmem:[%s1278 + $0x51] sm:$0xff]
      %v1346 = vld [vmem:[%s1278 + $0x61] sm:$0xff]
      %v1347 = vld [vmem:[%s1278 + $0x71] sm:$0xff]
      %v1348 = vld [vmem:[%s1287 + $0x2] sm:$0x1]
      %v1349 = vlaneseq
      %v1350 = vshrl.u32 %v1349, 7
      %v1351 = vsub.s32 0, %v1350
      %v1352 = vrot.slane %v1348, %v1351
      %v1353 = vmul.f32 %v1340, %v1352
      %v1354 = vmul.f32 %v1341, %v1352
      %v1355 = vmul.f32 %v1342, %v1352
      %v1356 = vmul.f32 %v1343, %v1352
      %v1357 = vmul.f32 %v1344, %v1352
      %v1358 = vmul.f32 %v1345, %v1352
      %v1359 = vmul.f32 %v1346, %v1352
      %v1360 = vmul.f32 %v1347, %v1352
      %v1361 = vadd.f32 %v1332, %v1353
      %v1362 = vadd.f32 %v1333, %v1354
      %v1363 = vadd.f32 %v1334, %v1355
      %v1364 = vadd.f32 %v1335, %v1356
      %v1365 = vadd.f32 %v1336, %v1357
      %v1366 = vadd.f32 %v1337, %v1358
      %v1367 = vadd.f32 %v1338, %v1359
      %v1368 = vadd.f32 %v1339, %v1360
      %v1369 = vld [vmem:[%s1310 + $0x1] sm:$0xff]
      %v1370 = vld [vmem:[%s1310 + $0x11] sm:$0xff]
      %v1371 = vld [vmem:[%s1310 + $0x21] sm:$0xff]
      %v1372 = vld [vmem:[%s1310 + $0x31] sm:$0xff]
      %v1373 = vld [vmem:[%s1310 + $0x41] sm:$0xff]
      %v1374 = vld [vmem:[%s1310 + $0x51] sm:$0xff]
      %v1375 = vld [vmem:[%s1310 + $0x61] sm:$0xff]
      %v1376 = vld [vmem:[%s1310 + $0x71] sm:$0xff]
      %v1377 = vld [vmem:[%s1287 + $0x3] sm:$0x1]
      %v1378 = vlaneseq
      %v1379 = vshrl.u32 %v1378, 7
      %v1380 = vsub.s32 0, %v1379
      %v1381 = vrot.slane %v1377, %v1380
      %v1382 = vmul.f32 %v1369, %v1381
      %v1383 = vmul.f32 %v1370, %v1381
      %v1384 = vmul.f32 %v1371, %v1381
      %v1385 = vmul.f32 %v1372, %v1381
      %v1386 = vmul.f32 %v1373, %v1381
      %v1387 = vmul.f32 %v1374, %v1381
      %v1388 = vmul.f32 %v1375, %v1381
      %v1389 = vmul.f32 %v1376, %v1381
      %v1390 = vadd.f32 %v1361, %v1382
      %v1391 = vadd.f32 %v1362, %v1383
      %v1392 = vadd.f32 %v1363, %v1384
      %v1393 = vadd.f32 %v1364, %v1385
      %v1394 = vadd.f32 %v1365, %v1386
      %v1395 = vadd.f32 %v1366, %v1387
      %v1396 = vadd.f32 %v1367, %v1388
      %v1397 = vadd.f32 %v1368, %v1389
      %v1398 = vld [vmem:[%s1278 + $0x2] sm:$0xff]
      %v1399 = vld [vmem:[%s1278 + $0x12] sm:$0xff]
      %v1400 = vld [vmem:[%s1278 + $0x22] sm:$0xff]
      %v1401 = vld [vmem:[%s1278 + $0x32] sm:$0xff]
      %v1402 = vld [vmem:[%s1278 + $0x42] sm:$0xff]
      %v1403 = vld [vmem:[%s1278 + $0x52] sm:$0xff]
      %v1404 = vld [vmem:[%s1278 + $0x62] sm:$0xff]
      %v1405 = vld [vmem:[%s1278 + $0x72] sm:$0xff]
      %v1406 = vld [vmem:[%s1287 + $0x4] sm:$0x1]
      %v1407 = vlaneseq
      %v1408 = vshrl.u32 %v1407, 7
      %v1409 = vsub.s32 0, %v1408
      %v1410 = vrot.slane %v1406, %v1409
      %v1411 = vmul.f32 %v1398, %v1410
      %v1412 = vmul.f32 %v1399, %v1410
      %v1413 = vmul.f32 %v1400, %v1410
      %v1414 = vmul.f32 %v1401, %v1410
      %v1415 = vmul.f32 %v1402, %v1410
      %v1416 = vmul.f32 %v1403, %v1410
      %v1417 = vmul.f32 %v1404, %v1410
      %v1418 = vmul.f32 %v1405, %v1410
      %v1419 = vadd.f32 %v1390, %v1411
      %v1420 = vadd.f32 %v1391, %v1412
      %v1421 = vadd.f32 %v1392, %v1413
      %v1422 = vadd.f32 %v1393, %v1414
      %v1423 = vadd.f32 %v1394, %v1415
      %v1424 = vadd.f32 %v1395, %v1416
      %v1425 = vadd.f32 %v1396, %v1417
      %v1426 = vadd.f32 %v1397, %v1418
      %v1427 = vld [vmem:[%s1310 + $0x2] sm:$0xff]
      %v1428 = vld [vmem:[%s1310 + $0x12] sm:$0xff]
      %v1429 = vld [vmem:[%s1310 + $0x22] sm:$0xff]
      %v1430 = vld [vmem:[%s1310 + $0x32] sm:$0xff]
      %v1431 = vld [vmem:[%s1310 + $0x42] sm:$0xff]
      %v1432 = vld [vmem:[%s1310 + $0x52] sm:$0xff]
      %v1433 = vld [vmem:[%s1310 + $0x62] sm:$0xff]
      %v1434 = vld [vmem:[%s1310 + $0x72] sm:$0xff]
      %v1435 = vld [vmem:[%s1287 + $0x5] sm:$0x1]
      %v1436 = vlaneseq
      %v1437 = vshrl.u32 %v1436, 7
      %v1438 = vsub.s32 0, %v1437
      %v1439 = vrot.slane %v1435, %v1438
      %v1440 = vmul.f32 %v1427, %v1439
      %v1441 = vmul.f32 %v1428, %v1439
      %v1442 = vmul.f32 %v1429, %v1439
      %v1443 = vmul.f32 %v1430, %v1439
      %v1444 = vmul.f32 %v1431, %v1439
      %v1445 = vmul.f32 %v1432, %v1439
      %v1446 = vmul.f32 %v1433, %v1439
      %v1447 = vmul.f32 %v1434, %v1439
      %v1448 = vadd.f32 %v1419, %v1440
      %v1449 = vadd.f32 %v1420, %v1441
      %v1450 = vadd.f32 %v1421, %v1442
      %v1451 = vadd.f32 %v1422, %v1443
      %v1452 = vadd.f32 %v1423, %v1444
      %v1453 = vadd.f32 %v1424, %v1445
      %v1454 = vadd.f32 %v1425, %v1446
      %v1455 = vadd.f32 %v1426, %v1447
      %v1456 = vld [vmem:[%s1278 + $0x3] sm:$0xff]
      %v1457 = vld [vmem:[%s1278 + $0x13] sm:$0xff]
      %v1458 = vld [vmem:[%s1278 + $0x23] sm:$0xff]
      %v1459 = vld [vmem:[%s1278 + $0x33] sm:$0xff]
      %v1460 = vld [vmem:[%s1278 + $0x43] sm:$0xff]
      %v1461 = vld [vmem:[%s1278 + $0x53] sm:$0xff]
      %v1462 = vld [vmem:[%s1278 + $0x63] sm:$0xff]
      %v1463 = vld [vmem:[%s1278 + $0x73] sm:$0xff]
      %v1464 = vld [vmem:[%s1287 + $0x6] sm:$0x1]
      %v1465 = vlaneseq
      %v1466 = vshrl.u32 %v1465, 7
      %v1467 = vsub.s32 0, %v1466
      %v1468 = vrot.slane %v1464, %v1467
      %v1469 = vmul.f32 %v1456, %v1468
      %v1470 = vmul.f32 %v1457, %v1468
      %v1471 = vmul.f32 %v1458, %v1468
      %v1472 = vmul.f32 %v1459, %v1468
      %v1473 = vmul.f32 %v1460, %v1468
      %v1474 = vmul.f32 %v1461, %v1468
      %v1475 = vmul.f32 %v1462, %v1468
      %v1476 = vmul.f32 %v1463, %v1468
      %v1477 = vadd.f32 %v1448, %v1469
      %v1478 = vadd.f32 %v1449, %v1470
      %v1479 = vadd.f32 %v1450, %v1471
      %v1480 = vadd.f32 %v1451, %v1472
      %v1481 = vadd.f32 %v1452, %v1473
      %v1482 = vadd.f32 %v1453, %v1474
      %v1483 = vadd.f32 %v1454, %v1475
      %v1484 = vadd.f32 %v1455, %v1476
      %s1485 = sadd.s32 %s1277, 352
      %s1486 = scalar_lea.vmem [#allocation7], %s1485
      %v1487 = vld [vmem:[%s1486] sm:$0xff]
      %v1488 = vld [vmem:[%s1486 + $0x10] sm:$0xff]
      %v1489 = vld [vmem:[%s1486 + $0x20] sm:$0xff]
      %v1490 = vld [vmem:[%s1486 + $0x30] sm:$0xff]
      %v1491 = vld [vmem:[%s1486 + $0x40] sm:$0xff]
      %v1492 = vld [vmem:[%s1486 + $0x50] sm:$0xff]
      %v1493 = vld [vmem:[%s1486 + $0x60] sm:$0xff]
      %v1494 = vld [vmem:[%s1486 + $0x70] sm:$0xff]
      %s1495 = scalar_lea.vmem [#allocation8], 24
      %v1496 = vld [vmem:[%s1495] sm:$0x1]
      %v1497 = vlaneseq
      %v1498 = vshrl.u32 %v1497, 7
      %v1499 = vsub.s32 0, %v1498
      %v1500 = vrot.slane %v1496, %v1499
      %v1501 = vmul.f32 %v1487, %v1500
      %v1502 = vmul.f32 %v1488, %v1500
      %v1503 = vmul.f32 %v1489, %v1500
      %v1504 = vmul.f32 %v1490, %v1500
      %v1505 = vmul.f32 %v1491, %v1500
      %v1506 = vmul.f32 %v1492, %v1500
      %v1507 = vmul.f32 %v1493, %v1500
      %v1508 = vmul.f32 %v1494, %v1500
      %v1509 = vadd.f32 %v1477, %v1501
      %v1510 = vadd.f32 %v1478, %v1502
      %v1511 = vadd.f32 %v1479, %v1503
      %v1512 = vadd.f32 %v1480, %v1504
      %v1513 = vadd.f32 %v1481, %v1505
      %v1514 = vadd.f32 %v1482, %v1506
      %v1515 = vadd.f32 %v1483, %v1507
      %v1516 = vadd.f32 %v1484, %v1508
      %s1517 = sadd.s32 %s1309, 352
      %s1518 = scalar_lea.vmem [#allocation7], %s1517
      %v1519 = vld [vmem:[%s1518] sm:$0xff]
      %v1520 = vld [vmem:[%s1518 + $0x10] sm:$0xff]
      %v1521 = vld [vmem:[%s1518 + $0x20] sm:$0xff]
      %v1522 = vld [vmem:[%s1518 + $0x30] sm:$0xff]
      %v1523 = vld [vmem:[%s1518 + $0x40] sm:$0xff]
      %v1524 = vld [vmem:[%s1518 + $0x50] sm:$0xff]
      %v1525 = vld [vmem:[%s1518 + $0x60] sm:$0xff]
      %v1526 = vld [vmem:[%s1518 + $0x70] sm:$0xff]
      %v1527 = vld [vmem:[%s1495 + $0x1] sm:$0x1]
      %v1528 = vlaneseq
      %v1529 = vshrl.u32 %v1528, 7
      %v1530 = vsub.s32 0, %v1529
      %v1531 = vrot.slane %v1527, %v1530
      %v1532 = vmul.f32 %v1519, %v1531
      %v1533 = vmul.f32 %v1520, %v1531
      %v1534 = vmul.f32 %v1521, %v1531
      %v1535 = vmul.f32 %v1522, %v1531
      %v1536 = vmul.f32 %v1523, %v1531
      %v1537 = vmul.f32 %v1524, %v1531
      %v1538 = vmul.f32 %v1525, %v1531
      %v1539 = vmul.f32 %v1526, %v1531
      %v1540 = vadd.f32 %v1509, %v1532
      %v1541 = vadd.f32 %v1510, %v1533
      %v1542 = vadd.f32 %v1511, %v1534
      %v1543 = vadd.f32 %v1512, %v1535
      %v1544 = vadd.f32 %v1513, %v1536
      %v1545 = vadd.f32 %v1514, %v1537
      %v1546 = vadd.f32 %v1515, %v1538
      %v1547 = vadd.f32 %v1516, %v1539
      %v1548 = vld [vmem:[%s1486 + $0x1] sm:$0xff]
      %v1549 = vld [vmem:[%s1486 + $0x11] sm:$0xff]
      %v1550 = vld [vmem:[%s1486 + $0x21] sm:$0xff]
      %v1551 = vld [vmem:[%s1486 + $0x31] sm:$0xff]
      %v1552 = vld [vmem:[%s1486 + $0x41] sm:$0xff]
      %v1553 = vld [vmem:[%s1486 + $0x51] sm:$0xff]
      %v1554 = vld [vmem:[%s1486 + $0x61] sm:$0xff]
      %v1555 = vld [vmem:[%s1486 + $0x71] sm:$0xff]
      %v1556 = vld [vmem:[%s1495 + $0x2] sm:$0x1]
      %v1557 = vlaneseq
      %v1558 = vshrl.u32 %v1557, 7
      %v1559 = vsub.s32 0, %v1558
      %v1560 = vrot.slane %v1556, %v1559
      %v1561 = vmul.f32 %v1548, %v1560
      %v1562 = vmul.f32 %v1549, %v1560
      %v1563 = vmul.f32 %v1550, %v1560
      %v1564 = vmul.f32 %v1551, %v1560
      %v1565 = vmul.f32 %v1552, %v1560
      %v1566 = vmul.f32 %v1553, %v1560
      %v1567 = vmul.f32 %v1554, %v1560
      %v1568 = vmul.f32 %v1555, %v1560
      %v1569 = vadd.f32 %v1540, %v1561
      %v1570 = vadd.f32 %v1541, %v1562
      %v1571 = vadd.f32 %v1542, %v1563
      %v1572 = vadd.f32 %v1543, %v1564
      %v1573 = vadd.f32 %v1544, %v1565
      %v1574 = vadd.f32 %v1545, %v1566
      %v1575 = vadd.f32 %v1546, %v1567
      %v1576 = vadd.f32 %v1547, %v1568
      %v1577 = vld [vmem:[%s1518 + $0x1] sm:$0xff]
      %v1578 = vld [vmem:[%s1518 + $0x11] sm:$0xff]
      %v1579 = vld [vmem:[%s1518 + $0x21] sm:$0xff]
      %v1580 = vld [vmem:[%s1518 + $0x31] sm:$0xff]
      %v1581 = vld [vmem:[%s1518 + $0x41] sm:$0xff]
      %v1582 = vld [vmem:[%s1518 + $0x51] sm:$0xff]
      %v1583 = vld [vmem:[%s1518 + $0x61] sm:$0xff]
      %v1584 = vld [vmem:[%s1518 + $0x71] sm:$0xff]
      %v1585 = vld [vmem:[%s1495 + $0x3] sm:$0x1]
      %v1586 = vlaneseq
      %v1587 = vshrl.u32 %v1586, 7
      %v1588 = vsub.s32 0, %v1587
      %v1589 = vrot.slane %v1585, %v1588
      %v1590 = vmul.f32 %v1577, %v1589
      %v1591 = vmul.f32 %v1578, %v1589
      %v1592 = vmul.f32 %v1579, %v1589
      %v1593 = vmul.f32 %v1580, %v1589
      %v1594 = vmul.f32 %v1581, %v1589
      %v1595 = vmul.f32 %v1582, %v1589
      %v1596 = vmul.f32 %v1583, %v1589
      %v1597 = vmul.f32 %v1584, %v1589
      %v1598 = vadd.f32 %v1569, %v1590
      %v1599 = vadd.f32 %v1570, %v1591
      %v1600 = vadd.f32 %v1571, %v1592
      %v1601 = vadd.f32 %v1572, %v1593
      %v1602 = vadd.f32 %v1573, %v1594
      %v1603 = vadd.f32 %v1574, %v1595
      %v1604 = vadd.f32 %v1575, %v1596
      %v1605 = vadd.f32 %v1576, %v1597
      %v1606 = vld [vmem:[%s1486 + $0x2] sm:$0xff]
      %v1607 = vld [vmem:[%s1486 + $0x12] sm:$0xff]
      %v1608 = vld [vmem:[%s1486 + $0x22] sm:$0xff]
      %v1609 = vld [vmem:[%s1486 + $0x32] sm:$0xff]
      %v1610 = vld [vmem:[%s1486 + $0x42] sm:$0xff]
      %v1611 = vld [vmem:[%s1486 + $0x52] sm:$0xff]
      %v1612 = vld [vmem:[%s1486 + $0x62] sm:$0xff]
      %v1613 = vld [vmem:[%s1486 + $0x72] sm:$0xff]
      %v1614 = vld [vmem:[%s1495 + $0x4] sm:$0x1]
      %v1615 = vlaneseq
      %v1616 = vshrl.u32 %v1615, 7
      %v1617 = vsub.s32 0, %v1616
      %v1618 = vrot.slane %v1614, %v1617
      %v1619 = vmul.f32 %v1606, %v1618
      %v1620 = vmul.f32 %v1607, %v1618
      %v1621 = vmul.f32 %v1608, %v1618
      %v1622 = vmul.f32 %v1609, %v1618
      %v1623 = vmul.f32 %v1610, %v1618
      %v1624 = vmul.f32 %v1611, %v1618
      %v1625 = vmul.f32 %v1612, %v1618
      %v1626 = vmul.f32 %v1613, %v1618
      %v1627 = vadd.f32 %v1598, %v1619
      %v1628 = vadd.f32 %v1599, %v1620
      %v1629 = vadd.f32 %v1600, %v1621
      %v1630 = vadd.f32 %v1601, %v1622
      %v1631 = vadd.f32 %v1602, %v1623
      %v1632 = vadd.f32 %v1603, %v1624
      %v1633 = vadd.f32 %v1604, %v1625
      %v1634 = vadd.f32 %v1605, %v1626
      %v1635 = vld [vmem:[%s1518 + $0x2] sm:$0xff]
      %v1636 = vld [vmem:[%s1518 + $0x12] sm:$0xff]
      %v1637 = vld [vmem:[%s1518 + $0x22] sm:$0xff]
      %v1638 = vld [vmem:[%s1518 + $0x32] sm:$0xff]
      %v1639 = vld [vmem:[%s1518 + $0x42] sm:$0xff]
      %v1640 = vld [vmem:[%s1518 + $0x52] sm:$0xff]
      %v1641 = vld [vmem:[%s1518 + $0x62] sm:$0xff]
      %v1642 = vld [vmem:[%s1518 + $0x72] sm:$0xff]
      %v1643 = vld [vmem:[%s1495 + $0x5] sm:$0x1]
      %v1644 = vlaneseq
      %v1645 = vshrl.u32 %v1644, 7
      %v1646 = vsub.s32 0, %v1645
      %v1647 = vrot.slane %v1643, %v1646
      %v1648 = vmul.f32 %v1635, %v1647
      %v1649 = vmul.f32 %v1636, %v1647
      %v1650 = vmul.f32 %v1637, %v1647
      %v1651 = vmul.f32 %v1638, %v1647
      %v1652 = vmul.f32 %v1639, %v1647
      %v1653 = vmul.f32 %v1640, %v1647
      %v1654 = vmul.f32 %v1641, %v1647
      %v1655 = vmul.f32 %v1642, %v1647
      %v1656 = vadd.f32 %v1627, %v1648
      %v1657 = vadd.f32 %v1628, %v1649
      %v1658 = vadd.f32 %v1629, %v1650
      %v1659 = vadd.f32 %v1630, %v1651
      %v1660 = vadd.f32 %v1631, %v1652
      %v1661 = vadd.f32 %v1632, %v1653
      %v1662 = vadd.f32 %v1633, %v1654
      %v1663 = vadd.f32 %v1634, %v1655
      %v1664 = vld [vmem:[%s1486 + $0x3] sm:$0xff]
      %v1665 = vld [vmem:[%s1486 + $0x13] sm:$0xff]
      %v1666 = vld [vmem:[%s1486 + $0x23] sm:$0xff]
      %v1667 = vld [vmem:[%s1486 + $0x33] sm:$0xff]
      %v1668 = vld [vmem:[%s1486 + $0x43] sm:$0xff]
      %v1669 = vld [vmem:[%s1486 + $0x53] sm:$0xff]
      %v1670 = vld [vmem:[%s1486 + $0x63] sm:$0xff]
      %v1671 = vld [vmem:[%s1486 + $0x73] sm:$0xff]
      %v1672 = vld [vmem:[%s1495 + $0x6] sm:$0x1]
      %v1673 = vlaneseq
      %v1674 = vshrl.u32 %v1673, 7
      %v1675 = vsub.s32 0, %v1674
      %v1676 = vrot.slane %v1672, %v1675
      %v1677 = vmul.f32 %v1664, %v1676
      %v1678 = vmul.f32 %v1665, %v1676
      %v1679 = vmul.f32 %v1666, %v1676
      %v1680 = vmul.f32 %v1667, %v1676
      %v1681 = vmul.f32 %v1668, %v1676
      %v1682 = vmul.f32 %v1669, %v1676
      %v1683 = vmul.f32 %v1670, %v1676
      %v1684 = vmul.f32 %v1671, %v1676
      %v1685 = vadd.f32 %v1656, %v1677
      %v1686 = vadd.f32 %v1657, %v1678
      %v1687 = vadd.f32 %v1658, %v1679
      %v1688 = vadd.f32 %v1659, %v1680
      %v1689 = vadd.f32 %v1660, %v1681
      %v1690 = vadd.f32 %v1661, %v1682
      %v1691 = vadd.f32 %v1662, %v1683
      %v1692 = vadd.f32 %v1663, %v1684
      %s1693 = sadd.s32 0, 2
      %s1694 = smul.u32 %s1693, 16
      %s1695 = scalar_lea.vmem [#allocation7], %s1694
      %v1696 = vld [vmem:[%s1695] sm:$0xff]
      %v1697 = vld [vmem:[%s1695 + $0x10] sm:$0xff]
      %v1698 = vld [vmem:[%s1695 + $0x20] sm:$0xff]
      %v1699 = vld [vmem:[%s1695 + $0x30] sm:$0xff]
      %v1700 = vld [vmem:[%s1695 + $0x40] sm:$0xff]
      %v1701 = vld [vmem:[%s1695 + $0x50] sm:$0xff]
      %v1702 = vld [vmem:[%s1695 + $0x60] sm:$0xff]
      %v1703 = vld [vmem:[%s1695 + $0x70] sm:$0xff]
      %s1704 = scalar_lea.vmem [#allocation8], 32
      %v1705 = vld [vmem:[%s1704] sm:$0x1]
      %v1706 = vlaneseq
      %v1707 = vshrl.u32 %v1706, 7
      %v1708 = vsub.s32 0, %v1707
      %v1709 = vrot.slane %v1705, %v1708
      %v1710 = vmul.f32 %v1696, %v1709
      %v1711 = vmul.f32 %v1697, %v1709
      %v1712 = vmul.f32 %v1698, %v1709
      %v1713 = vmul.f32 %v1699, %v1709
      %v1714 = vmul.f32 %v1700, %v1709
      %v1715 = vmul.f32 %v1701, %v1709
      %v1716 = vmul.f32 %v1702, %v1709
      %v1717 = vmul.f32 %v1703, %v1709
      %v1718 = vadd.f32 %v1685, %v1710
      %v1719 = vadd.f32 %v1686, %v1711
      %v1720 = vadd.f32 %v1687, %v1712
      %v1721 = vadd.f32 %v1688, %v1713
      %v1722 = vadd.f32 %v1689, %v1714
      %v1723 = vadd.f32 %v1690, %v1715
      %v1724 = vadd.f32 %v1691, %v1716
      %v1725 = vadd.f32 %v1692, %v1717
      %s1726 = sadd.s32 %s1694, 176
      %s1727 = scalar_lea.vmem [#allocation7], %s1726
      %v1728 = vld [vmem:[%s1727] sm:$0xff]
      %v1729 = vld [vmem:[%s1727 + $0x10] sm:$0xff]
      %v1730 = vld [vmem:[%s1727 + $0x20] sm:$0xff]
      %v1731 = vld [vmem:[%s1727 + $0x30] sm:$0xff]
      %v1732 = vld [vmem:[%s1727 + $0x40] sm:$0xff]
      %v1733 = vld [vmem:[%s1727 + $0x50] sm:$0xff]
      %v1734 = vld [vmem:[%s1727 + $0x60] sm:$0xff]
      %v1735 = vld [vmem:[%s1727 + $0x70] sm:$0xff]
      %v1736 = vld [vmem:[%s1704 + $0x1] sm:$0x1]
      %v1737 = vlaneseq
      %v1738 = vshrl.u32 %v1737, 7
      %v1739 = vsub.s32 0, %v1738
      %v1740 = vrot.slane %v1736, %v1739
      %v1741 = vmul.f32 %v1728, %v1740
      %v1742 = vmul.f32 %v1729, %v1740
      %v1743 = vmul.f32 %v1730, %v1740
      %v1744 = vmul.f32 %v1731, %v1740
      %v1745 = vmul.f32 %v1732, %v1740
      %v1746 = vmul.f32 %v1733, %v1740
      %v1747 = vmul.f32 %v1734, %v1740
      %v1748 = vmul.f32 %v1735, %v1740
      %v1749 = vadd.f32 %v1718, %v1741
      %v1750 = vadd.f32 %v1719, %v1742
      %v1751 = vadd.f32 %v1720, %v1743
      %v1752 = vadd.f32 %v1721, %v1744
      %v1753 = vadd.f32 %v1722, %v1745
      %v1754 = vadd.f32 %v1723, %v1746
      %v1755 = vadd.f32 %v1724, %v1747
      %v1756 = vadd.f32 %v1725, %v1748
      %v1757 = vld [vmem:[%s1695 + $0x1] sm:$0xff]
      %v1758 = vld [vmem:[%s1695 + $0x11] sm:$0xff]
      %v1759 = vld [vmem:[%s1695 + $0x21] sm:$0xff]
      %v1760 = vld [vmem:[%s1695 + $0x31] sm:$0xff]
      %v1761 = vld [vmem:[%s1695 + $0x41] sm:$0xff]
      %v1762 = vld [vmem:[%s1695 + $0x51] sm:$0xff]
      %v1763 = vld [vmem:[%s1695 + $0x61] sm:$0xff]
      %v1764 = vld [vmem:[%s1695 + $0x71] sm:$0xff]
      %v1765 = vld [vmem:[%s1704 + $0x2] sm:$0x1]
      %v1766 = vlaneseq
      %v1767 = vshrl.u32 %v1766, 7
      %v1768 = vsub.s32 0, %v1767
      %v1769 = vrot.slane %v1765, %v1768
      %v1770 = vmul.f32 %v1757, %v1769
      %v1771 = vmul.f32 %v1758, %v1769
      %v1772 = vmul.f32 %v1759, %v1769
      %v1773 = vmul.f32 %v1760, %v1769
      %v1774 = vmul.f32 %v1761, %v1769
      %v1775 = vmul.f32 %v1762, %v1769
      %v1776 = vmul.f32 %v1763, %v1769
      %v1777 = vmul.f32 %v1764, %v1769
      %v1778 = vadd.f32 %v1749, %v1770
      %v1779 = vadd.f32 %v1750, %v1771
      %v1780 = vadd.f32 %v1751, %v1772
      %v1781 = vadd.f32 %v1752, %v1773
      %v1782 = vadd.f32 %v1753, %v1774
      %v1783 = vadd.f32 %v1754, %v1775
      %v1784 = vadd.f32 %v1755, %v1776
      %v1785 = vadd.f32 %v1756, %v1777
      %v1786 = vld [vmem:[%s1727 + $0x1] sm:$0xff]
      %v1787 = vld [vmem:[%s1727 + $0x11] sm:$0xff]
      %v1788 = vld [vmem:[%s1727 + $0x21] sm:$0xff]
      %v1789 = vld [vmem:[%s1727 + $0x31] sm:$0xff]
      %v1790 = vld [vmem:[%s1727 + $0x41] sm:$0xff]
      %v1791 = vld [vmem:[%s1727 + $0x51] sm:$0xff]
      %v1792 = vld [vmem:[%s1727 + $0x61] sm:$0xff]
      %v1793 = vld [vmem:[%s1727 + $0x71] sm:$0xff]
      %v1794 = vld [vmem:[%s1704 + $0x3] sm:$0x1]
      %v1795 = vlaneseq
      %v1796 = vshrl.u32 %v1795, 7
      %v1797 = vsub.s32 0, %v1796
      %v1798 = vrot.slane %v1794, %v1797
      %v1799 = vmul.f32 %v1786, %v1798
      %v1800 = vmul.f32 %v1787, %v1798
      %v1801 = vmul.f32 %v1788, %v1798
      %v1802 = vmul.f32 %v1789, %v1798
      %v1803 = vmul.f32 %v1790, %v1798
      %v1804 = vmul.f32 %v1791, %v1798
      %v1805 = vmul.f32 %v1792, %v1798
      %v1806 = vmul.f32 %v1793, %v1798
      %v1807 = vadd.f32 %v1778, %v1799
      %v1808 = vadd.f32 %v1779, %v1800
      %v1809 = vadd.f32 %v1780, %v1801
      %v1810 = vadd.f32 %v1781, %v1802
      %v1811 = vadd.f32 %v1782, %v1803
      %v1812 = vadd.f32 %v1783, %v1804
      %v1813 = vadd.f32 %v1784, %v1805
      %v1814 = vadd.f32 %v1785, %v1806
      %v1815 = vld [vmem:[%s1695 + $0x2] sm:$0xff]
      %v1816 = vld [vmem:[%s1695 + $0x12] sm:$0xff]
      %v1817 = vld [vmem:[%s1695 + $0x22] sm:$0xff]
      %v1818 = vld [vmem:[%s1695 + $0x32] sm:$0xff]
      %v1819 = vld [vmem:[%s1695 + $0x42] sm:$0xff]
      %v1820 = vld [vmem:[%s1695 + $0x52] sm:$0xff]
      %v1821 = vld [vmem:[%s1695 + $0x62] sm:$0xff]
      %v1822 = vld [vmem:[%s1695 + $0x72] sm:$0xff]
      %v1823 = vld [vmem:[%s1704 + $0x4] sm:$0x1]
      %v1824 = vlaneseq
      %v1825 = vshrl.u32 %v1824, 7
      %v1826 = vsub.s32 0, %v1825
      %v1827 = vrot.slane %v1823, %v1826
      %v1828 = vmul.f32 %v1815, %v1827
      %v1829 = vmul.f32 %v1816, %v1827
      %v1830 = vmul.f32 %v1817, %v1827
      %v1831 = vmul.f32 %v1818, %v1827
      %v1832 = vmul.f32 %v1819, %v1827
      %v1833 = vmul.f32 %v1820, %v1827
      %v1834 = vmul.f32 %v1821, %v1827
      %v1835 = vmul.f32 %v1822, %v1827
      %v1836 = vadd.f32 %v1807, %v1828
      %v1837 = vadd.f32 %v1808, %v1829
      %v1838 = vadd.f32 %v1809, %v1830
      %v1839 = vadd.f32 %v1810, %v1831
      %v1840 = vadd.f32 %v1811, %v1832
      %v1841 = vadd.f32 %v1812, %v1833
      %v1842 = vadd.f32 %v1813, %v1834
      %v1843 = vadd.f32 %v1814, %v1835
      %v1844 = vld [vmem:[%s1727 + $0x2] sm:$0xff]
      %v1845 = vld [vmem:[%s1727 + $0x12] sm:$0xff]
      %v1846 = vld [vmem:[%s1727 + $0x22] sm:$0xff]
      %v1847 = vld [vmem:[%s1727 + $0x32] sm:$0xff]
      %v1848 = vld [vmem:[%s1727 + $0x42] sm:$0xff]
      %v1849 = vld [vmem:[%s1727 + $0x52] sm:$0xff]
      %v1850 = vld [vmem:[%s1727 + $0x62] sm:$0xff]
      %v1851 = vld [vmem:[%s1727 + $0x72] sm:$0xff]
      %v1852 = vld [vmem:[%s1704 + $0x5] sm:$0x1]
      %v1853 = vlaneseq
      %v1854 = vshrl.u32 %v1853, 7
      %v1855 = vsub.s32 0, %v1854
      %v1856 = vrot.slane %v1852, %v1855
      %v1857 = vmul.f32 %v1844, %v1856
      %v1858 = vmul.f32 %v1845, %v1856
      %v1859 = vmul.f32 %v1846, %v1856
      %v1860 = vmul.f32 %v1847, %v1856
      %v1861 = vmul.f32 %v1848, %v1856
      %v1862 = vmul.f32 %v1849, %v1856
      %v1863 = vmul.f32 %v1850, %v1856
      %v1864 = vmul.f32 %v1851, %v1856
      %v1865 = vadd.f32 %v1836, %v1857
      %v1866 = vadd.f32 %v1837, %v1858
      %v1867 = vadd.f32 %v1838, %v1859
      %v1868 = vadd.f32 %v1839, %v1860
      %v1869 = vadd.f32 %v1840, %v1861
      %v1870 = vadd.f32 %v1841, %v1862
      %v1871 = vadd.f32 %v1842, %v1863
      %v1872 = vadd.f32 %v1843, %v1864
      %v1873 = vld [vmem:[%s1695 + $0x3] sm:$0xff]
      %v1874 = vld [vmem:[%s1695 + $0x13] sm:$0xff]
      %v1875 = vld [vmem:[%s1695 + $0x23] sm:$0xff]
      %v1876 = vld [vmem:[%s1695 + $0x33] sm:$0xff]
      %v1877 = vld [vmem:[%s1695 + $0x43] sm:$0xff]
      %v1878 = vld [vmem:[%s1695 + $0x53] sm:$0xff]
      %v1879 = vld [vmem:[%s1695 + $0x63] sm:$0xff]
      %v1880 = vld [vmem:[%s1695 + $0x73] sm:$0xff]
      %v1881 = vld [vmem:[%s1704 + $0x6] sm:$0x1]
      %v1882 = vlaneseq
      %v1883 = vshrl.u32 %v1882, 7
      %v1884 = vsub.s32 0, %v1883
      %v1885 = vrot.slane %v1881, %v1884
      %v1886 = vmul.f32 %v1873, %v1885
      %v1887 = vmul.f32 %v1874, %v1885
      %v1888 = vmul.f32 %v1875, %v1885
      %v1889 = vmul.f32 %v1876, %v1885
      %v1890 = vmul.f32 %v1877, %v1885
      %v1891 = vmul.f32 %v1878, %v1885
      %v1892 = vmul.f32 %v1879, %v1885
      %v1893 = vmul.f32 %v1880, %v1885
      %v1894 = vadd.f32 %v1865, %v1886
      %v1895 = vadd.f32 %v1866, %v1887
      %v1896 = vadd.f32 %v1867, %v1888
      %v1897 = vadd.f32 %v1868, %v1889
      %v1898 = vadd.f32 %v1869, %v1890
      %v1899 = vadd.f32 %v1870, %v1891
      %v1900 = vadd.f32 %v1871, %v1892
      %v1901 = vadd.f32 %v1872, %v1893
      %s1902 = sadd.s32 %s1694, 352
      %s1903 = scalar_lea.vmem [#allocation7], %s1902
      %v1904 = vld [vmem:[%s1903] sm:$0xff]
      %v1905 = vld [vmem:[%s1903 + $0x10] sm:$0xff]
      %v1906 = vld [vmem:[%s1903 + $0x20] sm:$0xff]
      %v1907 = vld [vmem:[%s1903 + $0x30] sm:$0xff]
      %v1908 = vld [vmem:[%s1903 + $0x40] sm:$0xff]
      %v1909 = vld [vmem:[%s1903 + $0x50] sm:$0xff]
      %v1910 = vld [vmem:[%s1903 + $0x60] sm:$0xff]
      %v1911 = vld [vmem:[%s1903 + $0x70] sm:$0xff]
      %s1912 = scalar_lea.vmem [#allocation8], 40
      %v1913 = vld [vmem:[%s1912] sm:$0x1]
      %v1914 = vlaneseq
      %v1915 = vshrl.u32 %v1914, 7
      %v1916 = vsub.s32 0, %v1915
      %v1917 = vrot.slane %v1913, %v1916
      %v1918 = vmul.f32 %v1904, %v1917
      %v1919 = vmul.f32 %v1905, %v1917
      %v1920 = vmul.f32 %v1906, %v1917
      %v1921 = vmul.f32 %v1907, %v1917
      %v1922 = vmul.f32 %v1908, %v1917
      %v1923 = vmul.f32 %v1909, %v1917
      %v1924 = vmul.f32 %v1910, %v1917
      %v1925 = vmul.f32 %v1911, %v1917
      %v1926 = vadd.f32 %v1894, %v1918
      %v1927 = vadd.f32 %v1895, %v1919
      %v1928 = vadd.f32 %v1896, %v1920
      %v1929 = vadd.f32 %v1897, %v1921
      %v1930 = vadd.f32 %v1898, %v1922
      %v1931 = vadd.f32 %v1899, %v1923
      %v1932 = vadd.f32 %v1900, %v1924
      %v1933 = vadd.f32 %v1901, %v1925
      %s1934 = sadd.s32 %s1726, 352
      %s1935 = scalar_lea.vmem [#allocation7], %s1934
      %v1936 = vld [vmem:[%s1935] sm:$0xff]
      %v1937 = vld [vmem:[%s1935 + $0x10] sm:$0xff]
      %v1938 = vld [vmem:[%s1935 + $0x20] sm:$0xff]
      %v1939 = vld [vmem:[%s1935 + $0x30] sm:$0xff]
      %v1940 = vld [vmem:[%s1935 + $0x40] sm:$0xff]
      %v1941 = vld [vmem:[%s1935 + $0x50] sm:$0xff]
      %v1942 = vld [vmem:[%s1935 + $0x60] sm:$0xff]
      %v1943 = vld [vmem:[%s1935 + $0x70] sm:$0xff]
      %v1944 = vld [vmem:[%s1912 + $0x1] sm:$0x1]
      %v1945 = vlaneseq
      %v1946 = vshrl.u32 %v1945, 7
      %v1947 = vsub.s32 0, %v1946
      %v1948 = vrot.slane %v1944, %v1947
      %v1949 = vmul.f32 %v1936, %v1948
      %v1950 = vmul.f32 %v1937, %v1948
      %v1951 = vmul.f32 %v1938, %v1948
      %v1952 = vmul.f32 %v1939, %v1948
      %v1953 = vmul.f32 %v1940, %v1948
      %v1954 = vmul.f32 %v1941, %v1948
      %v1955 = vmul.f32 %v1942, %v1948
      %v1956 = vmul.f32 %v1943, %v1948
      %v1957 = vadd.f32 %v1926, %v1949
      %v1958 = vadd.f32 %v1927, %v1950
      %v1959 = vadd.f32 %v1928, %v1951
      %v1960 = vadd.f32 %v1929, %v1952
      %v1961 = vadd.f32 %v1930, %v1953
      %v1962 = vadd.f32 %v1931, %v1954
      %v1963 = vadd.f32 %v1932, %v1955
      %v1964 = vadd.f32 %v1933, %v1956
      %v1965 = vld [vmem:[%s1903 + $0x1] sm:$0xff]
      %v1966 = vld [vmem:[%s1903 + $0x11] sm:$0xff]
      %v1967 = vld [vmem:[%s1903 + $0x21] sm:$0xff]
      %v1968 = vld [vmem:[%s1903 + $0x31] sm:$0xff]
      %v1969 = vld [vmem:[%s1903 + $0x41] sm:$0xff]
      %v1970 = vld [vmem:[%s1903 + $0x51] sm:$0xff]
      %v1971 = vld [vmem:[%s1903 + $0x61] sm:$0xff]
      %v1972 = vld [vmem:[%s1903 + $0x71] sm:$0xff]
      %v1973 = vld [vmem:[%s1912 + $0x2] sm:$0x1]
      %v1974 = vlaneseq
      %v1975 = vshrl.u32 %v1974, 7
      %v1976 = vsub.s32 0, %v1975
      %v1977 = vrot.slane %v1973, %v1976
      %v1978 = vmul.f32 %v1965, %v1977
      %v1979 = vmul.f32 %v1966, %v1977
      %v1980 = vmul.f32 %v1967, %v1977
      %v1981 = vmul.f32 %v1968, %v1977
      %v1982 = vmul.f32 %v1969, %v1977
      %v1983 = vmul.f32 %v1970, %v1977
      %v1984 = vmul.f32 %v1971, %v1977
      %v1985 = vmul.f32 %v1972, %v1977
      %v1986 = vadd.f32 %v1957, %v1978
      %v1987 = vadd.f32 %v1958, %v1979
      %v1988 = vadd.f32 %v1959, %v1980
      %v1989 = vadd.f32 %v1960, %v1981
      %v1990 = vadd.f32 %v1961, %v1982
      %v1991 = vadd.f32 %v1962, %v1983
      %v1992 = vadd.f32 %v1963, %v1984
      %v1993 = vadd.f32 %v1964, %v1985
      %v1994 = vld [vmem:[%s1935 + $0x1] sm:$0xff]
      %v1995 = vld [vmem:[%s1935 + $0x11] sm:$0xff]
      %v1996 = vld [vmem:[%s1935 + $0x21] sm:$0xff]
      %v1997 = vld [vmem:[%s1935 + $0x31] sm:$0xff]
      %v1998 = vld [vmem:[%s1935 + $0x41] sm:$0xff]
      %v1999 = vld [vmem:[%s1935 + $0x51] sm:$0xff]
      %v2000 = vld [vmem:[%s1935 + $0x61] sm:$0xff]
      %v2001 = vld [vmem:[%s1935 + $0x71] sm:$0xff]
      %v2002 = vld [vmem:[%s1912 + $0x3] sm:$0x1]
      %v2003 = vlaneseq
      %v2004 = vshrl.u32 %v2003, 7
      %v2005 = vsub.s32 0, %v2004
      %v2006 = vrot.slane %v2002, %v2005
      %v2007 = vmul.f32 %v1994, %v2006
      %v2008 = vmul.f32 %v1995, %v2006
      %v2009 = vmul.f32 %v1996, %v2006
      %v2010 = vmul.f32 %v1997, %v2006
      %v2011 = vmul.f32 %v1998, %v2006
      %v2012 = vmul.f32 %v1999, %v2006
      %v2013 = vmul.f32 %v2000, %v2006
      %v2014 = vmul.f32 %v2001, %v2006
      %v2015 = vadd.f32 %v1986, %v2007
      %v2016 = vadd.f32 %v1987, %v2008
      %v2017 = vadd.f32 %v1988, %v2009
      %v2018 = vadd.f32 %v1989, %v2010
      %v2019 = vadd.f32 %v1990, %v2011
      %v2020 = vadd.f32 %v1991, %v2012
      %v2021 = vadd.f32 %v1992, %v2013
      %v2022 = vadd.f32 %v1993, %v2014
      %v2023 = vld [vmem:[%s1903 + $0x2] sm:$0xff]
      %v2024 = vld [vmem:[%s1903 + $0x12] sm:$0xff]
      %v2025 = vld [vmem:[%s1903 + $0x22] sm:$0xff]
      %v2026 = vld [vmem:[%s1903 + $0x32] sm:$0xff]
      %v2027 = vld [vmem:[%s1903 + $0x42] sm:$0xff]
      %v2028 = vld [vmem:[%s1903 + $0x52] sm:$0xff]
      %v2029 = vld [vmem:[%s1903 + $0x62] sm:$0xff]
      %v2030 = vld [vmem:[%s1903 + $0x72] sm:$0xff]
      %v2031 = vld [vmem:[%s1912 + $0x4] sm:$0x1]
      %v2032 = vlaneseq
      %v2033 = vshrl.u32 %v2032, 7
      %v2034 = vsub.s32 0, %v2033
      %v2035 = vrot.slane %v2031, %v2034
      %v2036 = vmul.f32 %v2023, %v2035
      %v2037 = vmul.f32 %v2024, %v2035
      %v2038 = vmul.f32 %v2025, %v2035
      %v2039 = vmul.f32 %v2026, %v2035
      %v2040 = vmul.f32 %v2027, %v2035
      %v2041 = vmul.f32 %v2028, %v2035
      %v2042 = vmul.f32 %v2029, %v2035
      %v2043 = vmul.f32 %v2030, %v2035
      %v2044 = vadd.f32 %v2015, %v2036
      %v2045 = vadd.f32 %v2016, %v2037
      %v2046 = vadd.f32 %v2017, %v2038
      %v2047 = vadd.f32 %v2018, %v2039
      %v2048 = vadd.f32 %v2019, %v2040
      %v2049 = vadd.f32 %v2020, %v2041
      %v2050 = vadd.f32 %v2021, %v2042
      %v2051 = vadd.f32 %v2022, %v2043
      %v2052 = vld [vmem:[%s1935 + $0x2] sm:$0xff]
      %v2053 = vld [vmem:[%s1935 + $0x12] sm:$0xff]
      %v2054 = vld [vmem:[%s1935 + $0x22] sm:$0xff]
      %v2055 = vld [vmem:[%s1935 + $0x32] sm:$0xff]
      %v2056 = vld [vmem:[%s1935 + $0x42] sm:$0xff]
      %v2057 = vld [vmem:[%s1935 + $0x52] sm:$0xff]
      %v2058 = vld [vmem:[%s1935 + $0x62] sm:$0xff]
      %v2059 = vld [vmem:[%s1935 + $0x72] sm:$0xff]
      %v2060 = vld [vmem:[%s1912 + $0x5] sm:$0x1]
      %v2061 = vlaneseq
      %v2062 = vshrl.u32 %v2061, 7
      %v2063 = vsub.s32 0, %v2062
      %v2064 = vrot.slane %v2060, %v2063
      %v2065 = vmul.f32 %v2052, %v2064
      %v2066 = vmul.f32 %v2053, %v2064
      %v2067 = vmul.f32 %v2054, %v2064
      %v2068 = vmul.f32 %v2055, %v2064
      %v2069 = vmul.f32 %v2056, %v2064
      %v2070 = vmul.f32 %v2057, %v2064
      %v2071 = vmul.f32 %v2058, %v2064
      %v2072 = vmul.f32 %v2059, %v2064
      %v2073 = vadd.f32 %v2044, %v2065
      %v2074 = vadd.f32 %v2045, %v2066
      %v2075 = vadd.f32 %v2046, %v2067
      %v2076 = vadd.f32 %v2047, %v2068
      %v2077 = vadd.f32 %v2048, %v2069
      %v2078 = vadd.f32 %v2049, %v2070
      %v2079 = vadd.f32 %v2050, %v2071
      %v2080 = vadd.f32 %v2051, %v2072
      %v2081 = vld [vmem:[%s1903 + $0x3] sm:$0xff]
      %v2082 = vld [vmem:[%s1903 + $0x13] sm:$0xff]
      %v2083 = vld [vmem:[%s1903 + $0x23] sm:$0xff]
      %v2084 = vld [vmem:[%s1903 + $0x33] sm:$0xff]
      %v2085 = vld [vmem:[%s1903 + $0x43] sm:$0xff]
      %v2086 = vld [vmem:[%s1903 + $0x53] sm:$0xff]
      %v2087 = vld [vmem:[%s1903 + $0x63] sm:$0xff]
      %v2088 = vld [vmem:[%s1903 + $0x73] sm:$0xff]
      %v2089 = vld [vmem:[%s1912 + $0x6] sm:$0x1]
      %v2090 = vlaneseq
      %v2091 = vshrl.u32 %v2090, 7
      %v2092 = vsub.s32 0, %v2091
      %v2093 = vrot.slane %v2089, %v2092
      %v2094 = vmul.f32 %v2081, %v2093
      %v2095 = vmul.f32 %v2082, %v2093
      %v2096 = vmul.f32 %v2083, %v2093
      %v2097 = vmul.f32 %v2084, %v2093
      %v2098 = vmul.f32 %v2085, %v2093
      %v2099 = vmul.f32 %v2086, %v2093
      %v2100 = vmul.f32 %v2087, %v2093
      %v2101 = vmul.f32 %v2088, %v2093
      %v2102 = vadd.f32 %v2073, %v2094
      %v2103 = vadd.f32 %v2074, %v2095
      %v2104 = vadd.f32 %v2075, %v2096
      %v2105 = vadd.f32 %v2076, %v2097
      %v2106 = vadd.f32 %v2077, %v2098
      %v2107 = vadd.f32 %v2078, %v2099
      %v2108 = vadd.f32 %v2079, %v2100
      %v2109 = vadd.f32 %v2080, %v2101
      %s2110 = sadd.s32 0, 3
      %s2111 = smul.u32 %s2110, 16
      %s2112 = scalar_lea.vmem [#allocation7], %s2111
      %v2113 = vld [vmem:[%s2112] sm:$0xff]
      %v2114 = vld [vmem:[%s2112 + $0x10] sm:$0xff]
      %v2115 = vld [vmem:[%s2112 + $0x20] sm:$0xff]
      %v2116 = vld [vmem:[%s2112 + $0x30] sm:$0xff]
      %v2117 = vld [vmem:[%s2112 + $0x40] sm:$0xff]
      %v2118 = vld [vmem:[%s2112 + $0x50] sm:$0xff]
      %v2119 = vld [vmem:[%s2112 + $0x60] sm:$0xff]
      %v2120 = vld [vmem:[%s2112 + $0x70] sm:$0xff]
      %s2121 = scalar_lea.vmem [#allocation8], 48
      %v2122 = vld [vmem:[%s2121] sm:$0x1]
      %v2123 = vlaneseq
      %v2124 = vshrl.u32 %v2123, 7
      %v2125 = vsub.s32 0, %v2124
      %v2126 = vrot.slane %v2122, %v2125
      %v2127 = vmul.f32 %v2113, %v2126
      %v2128 = vmul.f32 %v2114, %v2126
      %v2129 = vmul.f32 %v2115, %v2126
      %v2130 = vmul.f32 %v2116, %v2126
      %v2131 = vmul.f32 %v2117, %v2126
      %v2132 = vmul.f32 %v2118, %v2126
      %v2133 = vmul.f32 %v2119, %v2126
      %v2134 = vmul.f32 %v2120, %v2126
      %v2135 = vadd.f32 %v2102, %v2127
      %v2136 = vadd.f32 %v2103, %v2128
      %v2137 = vadd.f32 %v2104, %v2129
      %v2138 = vadd.f32 %v2105, %v2130
      %v2139 = vadd.f32 %v2106, %v2131
      %v2140 = vadd.f32 %v2107, %v2132
      %v2141 = vadd.f32 %v2108, %v2133
      %v2142 = vadd.f32 %v2109, %v2134
      %s2143 = sadd.s32 %s2111, 176
      %s2144 = scalar_lea.vmem [#allocation7], %s2143
      %v2145 = vld [vmem:[%s2144] sm:$0xff]
      %v2146 = vld [vmem:[%s2144 + $0x10] sm:$0xff]
      %v2147 = vld [vmem:[%s2144 + $0x20] sm:$0xff]
      %v2148 = vld [vmem:[%s2144 + $0x30] sm:$0xff]
      %v2149 = vld [vmem:[%s2144 + $0x40] sm:$0xff]
      %v2150 = vld [vmem:[%s2144 + $0x50] sm:$0xff]
      %v2151 = vld [vmem:[%s2144 + $0x60] sm:$0xff]
      %v2152 = vld [vmem:[%s2144 + $0x70] sm:$0xff]
      %v2153 = vld [vmem:[%s2121 + $0x1] sm:$0x1]
      %v2154 = vlaneseq
      %v2155 = vshrl.u32 %v2154, 7
      %v2156 = vsub.s32 0, %v2155
      %v2157 = vrot.slane %v2153, %v2156
      %v2158 = vmul.f32 %v2145, %v2157
      %v2159 = vmul.f32 %v2146, %v2157
      %v2160 = vmul.f32 %v2147, %v2157
      %v2161 = vmul.f32 %v2148, %v2157
      %v2162 = vmul.f32 %v2149, %v2157
      %v2163 = vmul.f32 %v2150, %v2157
      %v2164 = vmul.f32 %v2151, %v2157
      %v2165 = vmul.f32 %v2152, %v2157
      %v2166 = vadd.f32 %v2135, %v2158
      %v2167 = vadd.f32 %v2136, %v2159
      %v2168 = vadd.f32 %v2137, %v2160
      %v2169 = vadd.f32 %v2138, %v2161
      %v2170 = vadd.f32 %v2139, %v2162
      %v2171 = vadd.f32 %v2140, %v2163
      %v2172 = vadd.f32 %v2141, %v2164
      %v2173 = vadd.f32 %v2142, %v2165
      %v2174 = vld [vmem:[%s2112 + $0x1] sm:$0xff]
      %v2175 = vld [vmem:[%s2112 + $0x11] sm:$0xff]
      %v2176 = vld [vmem:[%s2112 + $0x21] sm:$0xff]
      %v2177 = vld [vmem:[%s2112 + $0x31] sm:$0xff]
      %v2178 = vld [vmem:[%s2112 + $0x41] sm:$0xff]
      %v2179 = vld [vmem:[%s2112 + $0x51] sm:$0xff]
      %v2180 = vld [vmem:[%s2112 + $0x61] sm:$0xff]
      %v2181 = vld [vmem:[%s2112 + $0x71] sm:$0xff]
      %v2182 = vld [vmem:[%s2121 + $0x2] sm:$0x1]
      %v2183 = vlaneseq
      %v2184 = vshrl.u32 %v2183, 7
      %v2185 = vsub.s32 0, %v2184
      %v2186 = vrot.slane %v2182, %v2185
      %v2187 = vmul.f32 %v2174, %v2186
      %v2188 = vmul.f32 %v2175, %v2186
      %v2189 = vmul.f32 %v2176, %v2186
      %v2190 = vmul.f32 %v2177, %v2186
      %v2191 = vmul.f32 %v2178, %v2186
      %v2192 = vmul.f32 %v2179, %v2186
      %v2193 = vmul.f32 %v2180, %v2186
      %v2194 = vmul.f32 %v2181, %v2186
      %v2195 = vadd.f32 %v2166, %v2187
      %v2196 = vadd.f32 %v2167, %v2188
      %v2197 = vadd.f32 %v2168, %v2189
      %v2198 = vadd.f32 %v2169, %v2190
      %v2199 = vadd.f32 %v2170, %v2191
      %v2200 = vadd.f32 %v2171, %v2192
      %v2201 = vadd.f32 %v2172, %v2193
      %v2202 = vadd.f32 %v2173, %v2194
      %v2203 = vld [vmem:[%s2144 + $0x1] sm:$0xff]
      %v2204 = vld [vmem:[%s2144 + $0x11] sm:$0xff]
      %v2205 = vld [vmem:[%s2144 + $0x21] sm:$0xff]
      %v2206 = vld [vmem:[%s2144 + $0x31] sm:$0xff]
      %v2207 = vld [vmem:[%s2144 + $0x41] sm:$0xff]
      %v2208 = vld [vmem:[%s2144 + $0x51] sm:$0xff]
      %v2209 = vld [vmem:[%s2144 + $0x61] sm:$0xff]
      %v2210 = vld [vmem:[%s2144 + $0x71] sm:$0xff]
      %v2211 = vld [vmem:[%s2121 + $0x3] sm:$0x1]
      %v2212 = vlaneseq
      %v2213 = vshrl.u32 %v2212, 7
      %v2214 = vsub.s32 0, %v2213
      %v2215 = vrot.slane %v2211, %v2214
      %v2216 = vmul.f32 %v2203, %v2215
      %v2217 = vmul.f32 %v2204, %v2215
      %v2218 = vmul.f32 %v2205, %v2215
      %v2219 = vmul.f32 %v2206, %v2215
      %v2220 = vmul.f32 %v2207, %v2215
      %v2221 = vmul.f32 %v2208, %v2215
      %v2222 = vmul.f32 %v2209, %v2215
      %v2223 = vmul.f32 %v2210, %v2215
      %v2224 = vadd.f32 %v2195, %v2216
      %v2225 = vadd.f32 %v2196, %v2217
      %v2226 = vadd.f32 %v2197, %v2218
      %v2227 = vadd.f32 %v2198, %v2219
      %v2228 = vadd.f32 %v2199, %v2220
      %v2229 = vadd.f32 %v2200, %v2221
      %v2230 = vadd.f32 %v2201, %v2222
      %v2231 = vadd.f32 %v2202, %v2223
      %v2232 = vld [vmem:[%s2112 + $0x2] sm:$0xff]
      %v2233 = vld [vmem:[%s2112 + $0x12] sm:$0xff]
      %v2234 = vld [vmem:[%s2112 + $0x22] sm:$0xff]
      %v2235 = vld [vmem:[%s2112 + $0x32] sm:$0xff]
      %v2236 = vld [vmem:[%s2112 + $0x42] sm:$0xff]
      %v2237 = vld [vmem:[%s2112 + $0x52] sm:$0xff]
      %v2238 = vld [vmem:[%s2112 + $0x62] sm:$0xff]
      %v2239 = vld [vmem:[%s2112 + $0x72] sm:$0xff]
      %v2240 = vld [vmem:[%s2121 + $0x4] sm:$0x1]
      %v2241 = vlaneseq
      %v2242 = vshrl.u32 %v2241, 7
      %v2243 = vsub.s32 0, %v2242
      %v2244 = vrot.slane %v2240, %v2243
      %v2245 = vmul.f32 %v2232, %v2244
      %v2246 = vmul.f32 %v2233, %v2244
      %v2247 = vmul.f32 %v2234, %v2244
      %v2248 = vmul.f32 %v2235, %v2244
      %v2249 = vmul.f32 %v2236, %v2244
      %v2250 = vmul.f32 %v2237, %v2244
      %v2251 = vmul.f32 %v2238, %v2244
      %v2252 = vmul.f32 %v2239, %v2244
      %v2253 = vadd.f32 %v2224, %v2245
      %v2254 = vadd.f32 %v2225, %v2246
      %v2255 = vadd.f32 %v2226, %v2247
      %v2256 = vadd.f32 %v2227, %v2248
      %v2257 = vadd.f32 %v2228, %v2249
      %v2258 = vadd.f32 %v2229, %v2250
      %v2259 = vadd.f32 %v2230, %v2251
      %v2260 = vadd.f32 %v2231, %v2252
      %v2261 = vld [vmem:[%s2144 + $0x2] sm:$0xff]
      %v2262 = vld [vmem:[%s2144 + $0x12] sm:$0xff]
      %v2263 = vld [vmem:[%s2144 + $0x22] sm:$0xff]
      %v2264 = vld [vmem:[%s2144 + $0x32] sm:$0xff]
      %v2265 = vld [vmem:[%s2144 + $0x42] sm:$0xff]
      %v2266 = vld [vmem:[%s2144 + $0x52] sm:$0xff]
      %v2267 = vld [vmem:[%s2144 + $0x62] sm:$0xff]
      %v2268 = vld [vmem:[%s2144 + $0x72] sm:$0xff]
      %v2269 = vld [vmem:[%s2121 + $0x5] sm:$0x1]
      %v2270 = vlaneseq
      %v2271 = vshrl.u32 %v2270, 7
      %v2272 = vsub.s32 0, %v2271
      %v2273 = vrot.slane %v2269, %v2272
      %v2274 = vmul.f32 %v2261, %v2273
      %v2275 = vmul.f32 %v2262, %v2273
      %v2276 = vmul.f32 %v2263, %v2273
      %v2277 = vmul.f32 %v2264, %v2273
      %v2278 = vmul.f32 %v2265, %v2273
      %v2279 = vmul.f32 %v2266, %v2273
      %v2280 = vmul.f32 %v2267, %v2273
      %v2281 = vmul.f32 %v2268, %v2273
      %v2282 = vadd.f32 %v2253, %v2274
      %v2283 = vadd.f32 %v2254, %v2275
      %v2284 = vadd.f32 %v2255, %v2276
      %v2285 = vadd.f32 %v2256, %v2277
      %v2286 = vadd.f32 %v2257, %v2278
      %v2287 = vadd.f32 %v2258, %v2279
      %v2288 = vadd.f32 %v2259, %v2280
      %v2289 = vadd.f32 %v2260, %v2281
      %v2290 = vld [vmem:[%s2112 + $0x3] sm:$0xff]
      %v2291 = vld [vmem:[%s2112 + $0x13] sm:$0xff]
      %v2292 = vld [vmem:[%s2112 + $0x23] sm:$0xff]
      %v2293 = vld [vmem:[%s2112 + $0x33] sm:$0xff]
      %v2294 = vld [vmem:[%s2112 + $0x43] sm:$0xff]
      %v2295 = vld [vmem:[%s2112 + $0x53] sm:$0xff]
      %v2296 = vld [vmem:[%s2112 + $0x63] sm:$0xff]
      %v2297 = vld [vmem:[%s2112 + $0x73] sm:$0xff]
      %v2298 = vld [vmem:[%s2121 + $0x6] sm:$0x1]
      %v2299 = vlaneseq
      %v2300 = vshrl.u32 %v2299, 7
      %v2301 = vsub.s32 0, %v2300
      %v2302 = vrot.slane %v2298, %v2301
      %v2303 = vmul.f32 %v2290, %v2302
      %v2304 = vmul.f32 %v2291, %v2302
      %v2305 = vmul.f32 %v2292, %v2302
      %v2306 = vmul.f32 %v2293, %v2302
      %v2307 = vmul.f32 %v2294, %v2302
      %v2308 = vmul.f32 %v2295, %v2302
      %v2309 = vmul.f32 %v2296, %v2302
      %v2310 = vmul.f32 %v2297, %v2302
      %v2311 = vadd.f32 %v2282, %v2303
      %v2312 = vadd.f32 %v2283, %v2304
      %v2313 = vadd.f32 %v2284, %v2305
      %v2314 = vadd.f32 %v2285, %v2306
      %v2315 = vadd.f32 %v2286, %v2307
      %v2316 = vadd.f32 %v2287, %v2308
      %v2317 = vadd.f32 %v2288, %v2309
      %v2318 = vadd.f32 %v2289, %v2310
      %s2319 = smul.u32 0, 8
      %s2320 = scalar_lea.vmem %s242, %s2319
      %2321 = vst [vmem:[%s2320] sm:$0xff] %v2311
      %2322 = vst [vmem:[%s2320 + $0x8] sm:$0xff] %v2312
      %2323 = vst [vmem:[%s2320 + $0x10] sm:$0xff] %v2313
      %2324 = vst [vmem:[%s2320 + $0x18] sm:$0xff] %v2314
      %2325 = vst [vmem:[%s2320 + $0x20] sm:$0xff] %v2315
      %2326 = vst [vmem:[%s2320 + $0x28] sm:$0xff] %v2316
      %2327 = vst [vmem:[%s2320 + $0x30] sm:$0xff] %v2317
      %2328 = vst [vmem:[%s2320 + $0x38] sm:$0xff] %v2318
      %v2329 = vadd.f32 %v2311, %v2312
      %v2330 = vadd.f32 %v2329, %v2313
      %v2331 = vadd.f32 %v2330, %v2314
      %v2332 = vadd.f32 %v2331, %v2315
      %v2333 = vadd.f32 %v2332, %v2316
      %v2334 = vadd.f32 %v2333, %v2317
      %v2335 = vadd.f32 %v2334, %v2318
      %v2336 = vrot.slane %v2335, 4
      %v2337 = vadd.f32 %v2335, %v2336
      %v2338 = vrot.slane %v2337, 2
      %v2339 = vadd.f32 %v2337, %v2338
      %v2340 = vrot.slane %v2339, 1
      %v2341 = vadd.f32 %v2339, %v2340
      %v2342 = vmul.f32 %v2311, %v2311
      %v2343 = vmul.f32 %v2312, %v2312
      %v2344 = vmul.f32 %v2313, %v2313
      %v2345 = vmul.f32 %v2314, %v2314
      %v2346 = vmul.f32 %v2315, %v2315
      %v2347 = vmul.f32 %v2316, %v2316
      %v2348 = vmul.f32 %v2317, %v2317
      %v2349 = vmul.f32 %v2318, %v2318
      %v2350 = vadd.f32 %v2342, %v2343
      %v2351 = vadd.f32 %v2350, %v2344
      %v2352 = vadd.f32 %v2351, %v2345
      %v2353 = vadd.f32 %v2352, %v2346
      %v2354 = vadd.f32 %v2353, %v2347
      %v2355 = vadd.f32 %v2354, %v2348
      %v2356 = vadd.f32 %v2355, %v2349
      %v2357 = vrot.slane %v2356, 4
      %v2358 = vadd.f32 %v2356, %v2357
      %v2359 = vrot.slane %v2358, 2
      %v2360 = vadd.f32 %v2358, %v2359
      %v2361 = vrot.slane %v2360, 1
      %v2362 = vadd.f32 %v2360, %v2361
      %v2363 = vadd.f32 %v2341, 0.0
      %v2364 = vadd.f32 %v2362, 0.0
      %vm2365 = vcmask 1040384
      %v2366 = vsel %vm2365, %v2363, %v2364
      %2367 = vst [vmem:[%s249] sm:$0x3] %v2366
      %p2368 = scmp.lt.s32.totalorder %s22, 1
      %s2369 = scalar_select %p2368, %s22, 1
      %p2370 = scmp.lt.s32.totalorder %s21, 0
      %s2371 = scalar_select %p2370, %s21, 0
      %s2372 = smul.addr %s2369, 8
      %s2373 = sadd.s32 %s2371, %s2372
      %s2374 = smul.addr %s2373, 8
      %s2375 = scalar_lea.vmem %s3, %s2374
      %p2376 = scmp.lt.s32.totalorder %s22, 1
      %s2377 = scalar_select %p2376, %s22, 1
      %p2378 = scmp.lt.s32.totalorder %s21, 0
      %s2379 = scalar_select %p2378, %s21, 0
      %s2380 = sadd.s32 %s2379, %s2377
      %s2381 = smul.addr %s2380, 2
      %s2382 = scalar_lea.vmem %s4, %s2381
      // Predicated region
      $region29: #{sepconv_bn.2} parent=27 // pred_check
        %p2383 = pneg %p103
      $region30: #{sepconv_bn.2} parent=27 // pred_check_branch
        %2385 = sbr.rel (%p2383) target = $region32
      $region31: #{sepconv_bn.2} parent=27 // pred_region
        _
      $region32: #{sepconv_bn.2} parent=27 // pred_fallthru
        _
      // Predicated region
      $region33: #{sepconv_bn.2} parent=27 // pred_check
        %p2386 = pneg %p131
      $region34: #{sepconv_bn.2} parent=27 // pred_check_branch
        %2388 = sbr.rel (%p2386) target = $region36
      $region35: #{sepconv_bn.2} parent=27 // pred_region
        _
      $region36: #{sepconv_bn.2} parent=27 // pred_fallthru
        _
    $region28: #{sepconv_bn.2} parent=5 // pred_fallthru
      _
    %p2389 = scmp.le.s32.totalorder 2, %s12
    // Predicated region
    $region37: #{sepconv_bn.2} parent=5 // pred_check
      %p2390 = pneg %p2389
    $region38: #{sepconv_bn.2} parent=5 // pred_check_branch
      %2392 = sbr.rel (%p2390) target = $region40
    $region39: #{sepconv_bn.2} parent=5 // pred_region
      %s2393 = ssub.s32 %s12, 2
      // Predicated region
      $region41: #{sepconv_bn.2} parent=39 // pred_check
        %p2394 = pneg %p109
      $region42: #{sepconv_bn.2} parent=39 // pred_check_branch
        %2396 = sbr.rel (%p2394) target = $region44
      $region43: #{sepconv_bn.2} parent=39 // pred_region
        %p2397 = scmp.lt.s32.totalorder %s24, 1
        %s2398 = scalar_select %p2397, %s24, 1
        %p2399 = scmp.lt.s32.totalorder %s23, 0
        %s2400 = scalar_select %p2399, %s23, 0
        %s2401 = smul.addr %s2398, 8
        %s2402 = sadd.s32 %s2400, %s2401
        %s2403 = smul.addr %s2402, 8
        %s2404 = scalar_lea.vmem %s3, %s2403
      $region44: #{sepconv_bn.2} parent=39 // pred_fallthru
        _
      // Predicated region
      $region45: #{sepconv_bn.2} parent=39 // pred_check
        %p2405 = pneg %p137
      $region46: #{sepconv_bn.2} parent=39 // pred_check_branch
        %2407 = sbr.rel (%p2405) target = $region48
      $region47: #{sepconv_bn.2} parent=39 // pred_region
        %p2408 = scmp.lt.s32.totalorder %s24, 1
        %s2409 = scalar_select %p2408, %s24, 1
        %p2410 = scmp.lt.s32.totalorder %s23, 0
        %s2411 = scalar_select %p2410, %s23, 0
        %s2412 = sadd.s32 %s2411, %s2409
        %s2413 = smul.addr %s2412, 2
        %s2414 = scalar_lea.vmem %s4, %s2413
      $region48: #{sepconv_bn.2} parent=39 // pred_fallthru
        _
    $region40: #{sepconv_bn.2} parent=5 // pred_fallthru
      _
  $region6: #{sepconv_bn.2} parent=0 // loop_footer
    %s16 = sadd.s32 1, %s12
  $region7: #{sepconv_bn.2} parent=0 // loop_footer_branch
    %11 = sbr.rel target = $region3
  $region8: #{sepconv_bn.2} parent=0 // loop_exit
    _

</llo_original>
